<compile_context>
chip_gen: v7x
topology: tpu7x:2x2x1
jax: 0.10.0
libtpu: 0.0.40
codegen_flags: <defaults>
</compile_context>

<pallas_src>
import functools

import jax
import jax.numpy as jnp
from jax.experimental import pallas as pl
from jax.experimental.pallas import tpu as pltpu

DIMS = 512   # hidden width hard-coded in the PyTorch module (dims=512)
G_PAD = 8    # pooled-output rows padded to one full f32 sublane group


# ----------------------------- Pallas kernel --------------------------------

def _fused_gcn_kernel(a_ref, x_ref, w1_ref, b1_ref, w2_ref, b2_ref,
                      wp_ref, bp_ref, pool_ref, h2_ref, pooled_ref):
    """Entire EmbeddingModel forward, VMEM-resident, single invocation.

    a_ref     : (n_pad, n_pad) bf16  normalized adjacency (post dropout_node)
    x_ref     : (n_pad, f_pad) bf16  node features
    w1_ref    : (f_pad, 512)   bf16 ; w2_ref, wp_ref : (512, 512) bf16
    b*_ref    : (1, 512)       f32
    pool_ref  : (G_PAD, n_pad) f32   one-hot sum-pool matrix
    h2_ref    : (n_pad, 512)   f32   encoder output (returned as `x`)
    pooled_ref: (G_PAD, 512)   f32   per-graph sum pool of predictor output
    """
    a = a_ref[...]

    # ContextEncoder layer 1, reordered: relu((A @ X) @ W1 + b1)
    ax = jnp.dot(a, x_ref[...], preferred_element_type=jnp.float32)
    h1 = jnp.maximum(
        jnp.dot(ax.astype(jnp.bfloat16), w1_ref[...],
                preferred_element_type=jnp.float32) + b1_ref[...], 0.0)

    # ContextEncoder layer 2: relu(A @ (H1 @ W2) + b2)
    h1w = jnp.dot(h1.astype(jnp.bfloat16), w2_ref[...],
                  preferred_element_type=jnp.float32)
    h2 = jnp.maximum(
        jnp.dot(a, h1w.astype(jnp.bfloat16),
                preferred_element_type=jnp.float32) + b2_ref[...], 0.0)
    h2_ref[...] = h2

    # ContextTargetPredictor: relu(A @ (H2 @ Wp) + bp)
    # Hoisted out of the num_targets loop: the loop body in the spec is
    # deterministic (same x, edge_index, weights) so every iteration yields
    # the identical graph embedding.
    # TODO(synk): if the real ContextTargetPredictor is stochastic per
    # target, re-introduce per-target randomness here.
    hw = jnp.dot(h2.astype(jnp.bfloat16), wp_ref[...],
                 preferred_element_type=jnp.float32)
    v = jnp.maximum(
        jnp.dot(a, hw.astype(jnp.bfloat16),
                preferred_element_type=jnp.float32) + bp_ref[...], 0.0)

    # Fused sum pool (global_mean_pool numerator); mean-divide runs outside.
    pooled_ref[...] = jnp.dot(pool_ref[...], v,
                              preferred_element_type=jnp.float32)


def fused_forward(a_pad, x_pad, w1, b1, w2, b2, wp, bp, pool_pad):
    """Single pallas_call for the whole forward; everything VMEM-resident."""
    n_pad = a_pad.shape[0]
    vmem = lambda: pl.BlockSpec(memory_space=pltpu.MemorySpace.VMEM)
    return pl.pallas_call(
        _fused_gcn_kernel,
        out_shape=(jax.ShapeDtypeStruct((n_pad, DIMS), jnp.float32),
                   jax.ShapeDtypeStruct((G_PAD, DIMS), jnp.float32)),
        in_specs=[vmem() for _ in range(9)],
        out_specs=(vmem(), vmem()),
    )(a_pad, x_pad, w1, b1, w2, b2, wp, bp, pool_pad)


# ------------------------------ JAX-side glue --------------------------------

def _round_up(v, m):
    return ((v + m - 1) // m) * m


def dropout_node_edge_keep(key, edge_index, num_nodes, p=0.3):
    """torch_geometric.utils.dropout_node: drop nodes w.p. p, keep edges whose
    both endpoints survive."""
    keep_node = jax.random.bernoulli(key, 1.0 - p, (num_nodes,))
    src, dst = edge_index[0], edge_index[1]
    return keep_node[src] & keep_node[dst]


def build_norm_adj(edge_index, edge_keep, num_nodes):
    """Dense normalized adjacency with self-loops (GCN style), built via a
    one-hot matmul (avoids the serializing XLA scatter).
    TODO(synk): PyG GCNConv sums duplicate edges; the min(.,1) dedup here
    differs on multigraphs."""
    src, dst = edge_index[0], edge_index[1]
    node_ids = jnp.arange(num_nodes)
    src_oh = (src[:, None] == node_ids[None, :]).astype(jnp.float32)  # (E, N)
    dst_oh = (dst[:, None] == node_ids[None, :]).astype(jnp.float32)  # (E, N)
    a = (src_oh * edge_keep[:, None].astype(jnp.float32)).T @ dst_oh  # (N, N)
    a = jnp.minimum(a, 1.0)  # de-duplicate multi-edges
    a = a + jnp.eye(num_nodes, dtype=jnp.float32)
    deg = a.sum(axis=1)
    dinv = jnp.where(deg > 0, 1.0 / jnp.sqrt(deg), 0.0)
    return a * dinv[:, None] * dinv[None, :]


def build_pool_onehot(batch, num_graphs, num_nodes, g_pad, n_pad):
    """Padded one-hot pool matrix (sum pool) + per-graph node counts."""
    onehot = (batch[None, :] == jnp.arange(num_graphs)[:, None]).astype(
        jnp.float32)
    counts = jnp.maximum(onehot.sum(axis=1), 1.0)
    padded = jnp.zeros((g_pad, n_pad), jnp.float32)
    padded = padded.at[:num_graphs, :num_nodes].set(onehot)
    return padded, counts


def glorot(key, shape):
    fan_in, fan_out = shape
    lim = jnp.sqrt(6.0 / (fan_in + fan_out))
    return jax.random.uniform(key, shape, jnp.float32, -lim, lim)


def init_params(key, num_features):
    ks = jax.random.split(key, 3)
    return {
        "enc_w1": glorot(ks[0], (num_features, DIMS)),
        "enc_b1": jnp.zeros((1, DIMS), jnp.float32),
        "enc_w2": glorot(ks[1], (DIMS, DIMS)),
        "enc_b2": jnp.zeros((1, DIMS), jnp.float32),
        "pred_w": glorot(ks[2], (DIMS, DIMS)),
        "pred_b": jnp.zeros((1, DIMS), jnp.float32),
    }


@functools.partial(jax.jit, static_argnames=("num_targets", "num_graphs"))
def embedding_model_forward(params, x, edge_index, batch, drop_key,
                            *, num_targets, num_graphs):
    n, f = x.shape
    n_pad = _round_up(n, 128)    # (8,128)/bf16-(16,128) aligned node axis
    f_pad = _round_up(f, 128)    # MXU-aligned feature axis

    # dropout_node(edge_index, p=0.3) + normalized adjacency (zero-padded).
    edge_keep = dropout_node_edge_keep(drop_key, edge_index, n, p=0.3)
    a_norm = build_norm_adj(edge_index, edge_keep, n)

    # Cast / pad each reused operand exactly once (bf16 MXU operands).
    a_pad = jnp.zeros((n_pad, n_pad), jnp.bfloat16).at[:n, :n].set(
        a_norm.astype(jnp.bfloat16))
    x_pad = jnp.zeros((n_pad, f_pad), jnp.bfloat16).at[:n, :f].set(
        x.astype(jnp.bfloat16))
    w1_pad = jnp.zeros((f_pad, DIMS), jnp.bfloat16).at[:f, :].set(
        params["enc_w1"].astype(jnp.bfloat16))
    pool_pad, counts = build_pool_onehot(batch, num_graphs, n, G_PAD, n_pad)

    h2_pad, pooled_sum = fused_forward(
        a_pad, x_pad,
        w1_pad, params["enc_b1"],
        params["enc_w2"].astype(jnp.bfloat16), params["enc_b2"],
        params["pred_w"].astype(jnp.bfloat16), params["pred_b"],
        pool_pad)

    # global_mean_pool = sum-pool (fused in kernel) / per-graph node count.
    pooled = pooled_sum[:num_graphs] / counts[:, None]

    e_u = [pooled for _ in range(num_targets)]
    return e_u, h2_pad[:n]


# ---------------------------------- main -------------------------------------

if __name__ == "__main__":
    key = jax.random.PRNGKey(0)
    k_x, k_src, k_dst, k_par = jax.random.split(key, 4)

    num_features = 32
    num_targets = 3
    num_nodes = 100
    num_graphs = 2
    num_edges = 400

    x = jax.random.normal(k_x, (num_nodes, num_features), jnp.float32)
    src = jax.random.randint(k_src, (num_edges,), 0, num_nodes)
    dst = jax.random.randint(k_dst, (num_edges,), 0, num_nodes)
    edge_index = jnp.stack([src, dst]).astype(jnp.int32)
    batch = jnp.concatenate([
        jnp.zeros(num_nodes // 2, jnp.int32),
        jnp.ones(num_nodes - num_nodes // 2, jnp.int32),
    ])

    params = init_params(k_par, num_features)

    e_u, x_out = embedding_model_forward(
        params, x, edge_index, batch, jax.random.PRNGKey(1),
        num_targets=num_targets, num_graphs=num_graphs)

    jax.block_until_ready(x_out)
    for v in e_u:
        jax.block_until_ready(v)

    assert x_out.shape == (num_nodes, DIMS)
    assert len(e_u) == num_targets
    assert all(v.shape == (num_graphs, DIMS) for v in e_u)
    assert bool(jnp.isfinite(x_out).all())
    assert all(bool(jnp.isfinite(v).all()) for v in e_u)
    print("KERNEL_OK")
</pallas_src>

<mosaic_0001>
module attributes {stable_mosaic.version = 11 : i64} {
  func.func @_fused_gcn_kernel(%arg0: memref<128x128xbf16, #tpu.memory_space<vmem>>, %arg1: memref<128x128xbf16, #tpu.memory_space<vmem>>, %arg2: memref<128x512xbf16, #tpu.memory_space<vmem>>, %arg3: memref<1x512xf32, #tpu.memory_space<vmem>>, %arg4: memref<512x512xbf16, #tpu.memory_space<vmem>>, %arg5: memref<1x512xf32, #tpu.memory_space<vmem>>, %arg6: memref<512x512xbf16, #tpu.memory_space<vmem>>, %arg7: memref<1x512xf32, #tpu.memory_space<vmem>>, %arg8: memref<8x128xf32, #tpu.memory_space<vmem>>, %arg9: memref<128x512xf32, #tpu.memory_space<vmem>>, %arg10: memref<8x512xf32, #tpu.memory_space<vmem>>) attributes {dimension_semantics = [], scalar_prefetch = 0 : i64, scratch_operands = 0 : i64, tpu.core_type = #tpu.core_type<tc>} {
    %c0 = arith.constant 0 : index
    %c0_0 = arith.constant 0 : index
    %0 = vector.load %arg0[%c0, %c0_0] : memref<128x128xbf16, #tpu.memory_space<vmem>>, vector<128x128xbf16>
    %c0_1 = arith.constant 0 : index
    %c0_2 = arith.constant 0 : index
    %1 = vector.load %arg1[%c0_1, %c0_2] : memref<128x128xbf16, #tpu.memory_space<vmem>>, vector<128x128xbf16>
    %cst = arith.constant dense<0.000000e+00> : vector<128x128xf32>
    %2 = tpu.matmul %0, %1, %cst {dimension_numbers = #tpu.dot_dimension_numbers<[1], [0], [0], [1], [0, 0, 1, 1], [], []>} : vector<128x128xbf16>, vector<128x128xbf16>, vector<128x128xf32> -> vector<128x128xf32>
    %3 = arith.truncf %2 : vector<128x128xf32> to vector<128x128xbf16>
    %c0_3 = arith.constant 0 : index
    %c0_4 = arith.constant 0 : index
    %4 = vector.load %arg2[%c0_3, %c0_4] : memref<128x512xbf16, #tpu.memory_space<vmem>>, vector<128x512xbf16>
    %cst_5 = arith.constant dense<0.000000e+00> : vector<128x512xf32>
    %5 = tpu.matmul %3, %4, %cst_5 {dimension_numbers = #tpu.dot_dimension_numbers<[1], [0], [0], [1], [0, 0, 1, 1], [], []>} : vector<128x128xbf16>, vector<128x512xbf16>, vector<128x512xf32> -> vector<128x512xf32>
    %c0_6 = arith.constant 0 : index
    %c0_7 = arith.constant 0 : index
    %6 = vector.load %arg3[%c0_6, %c0_7] : memref<1x512xf32, #tpu.memory_space<vmem>>, vector<1x512xf32>
    %7 = vector.broadcast %6 : vector<1x512xf32> to vector<128x512xf32>
    %8 = arith.addf %5, %7 : vector<128x512xf32>
    %cst_8 = arith.constant 0.000000e+00 : f32
    %9 = vector.broadcast %cst_8 : f32 to vector<128x512xf32>
    %10 = arith.maximumf %8, %9 : vector<128x512xf32>
    %11 = arith.truncf %10 : vector<128x512xf32> to vector<128x512xbf16>
    %c0_9 = arith.constant 0 : index
    %c0_10 = arith.constant 0 : index
    %12 = vector.load %arg4[%c0_9, %c0_10] : memref<512x512xbf16, #tpu.memory_space<vmem>>, vector<512x512xbf16>
    %cst_11 = arith.constant dense<0.000000e+00> : vector<128x512xf32>
    %13 = tpu.matmul %11, %12, %cst_11 {dimension_numbers = #tpu.dot_dimension_numbers<[1], [0], [0], [1], [0, 0, 1, 1], [], []>} : vector<128x512xbf16>, vector<512x512xbf16>, vector<128x512xf32> -> vector<128x512xf32>
    %14 = arith.truncf %13 : vector<128x512xf32> to vector<128x512xbf16>
    %cst_12 = arith.constant dense<0.000000e+00> : vector<128x512xf32>
    %15 = tpu.matmul %0, %14, %cst_12 {dimension_numbers = #tpu.dot_dimension_numbers<[1], [0], [0], [1], [0, 0, 1, 1], [], []>} : vector<128x128xbf16>, vector<128x512xbf16>, vector<128x512xf32> -> vector<128x512xf32>
    %c0_13 = arith.constant 0 : index
    %c0_14 = arith.constant 0 : index
    %16 = vector.load %arg5[%c0_13, %c0_14] : memref<1x512xf32, #tpu.memory_space<vmem>>, vector<1x512xf32>
    %17 = vector.broadcast %16 : vector<1x512xf32> to vector<128x512xf32>
    %18 = arith.addf %15, %17 : vector<128x512xf32>
    %cst_15 = arith.constant 0.000000e+00 : f32
    %19 = vector.broadcast %cst_15 : f32 to vector<128x512xf32>
    %20 = arith.maximumf %18, %19 : vector<128x512xf32>
    %c0_16 = arith.constant 0 : index
    %c0_17 = arith.constant 0 : index
    %21 = vector.load %arg9[%c0_16, %c0_17] : memref<128x512xf32, #tpu.memory_space<vmem>>, vector<128x512xf32>
    tpu.vector_store %arg9[%c0_16, %c0_17], %20 {strides = array<i32>} : memref<128x512xf32, #tpu.memory_space<vmem>>, vector<128x512xf32>,
    %22 = arith.truncf %20 : vector<128x512xf32> to vector<128x512xbf16>
    %c0_18 = arith.constant 0 : index
    %c0_19 = arith.constant 0 : index
    %23 = vector.load %arg6[%c0_18, %c0_19] : memref<512x512xbf16, #tpu.memory_space<vmem>>, vector<512x512xbf16>
    %cst_20 = arith.constant dense<0.000000e+00> : vector<128x512xf32>
    %24 = tpu.matmul %22, %23, %cst_20 {dimension_numbers = #tpu.dot_dimension_numbers<[1], [0], [0], [1], [0, 0, 1, 1], [], []>} : vector<128x512xbf16>, vector<512x512xbf16>, vector<128x512xf32> -> vector<128x512xf32>
    %25 = arith.truncf %24 : vector<128x512xf32> to vector<128x512xbf16>
    %cst_21 = arith.constant dense<0.000000e+00> : vector<128x512xf32>
    %26 = tpu.matmul %0, %25, %cst_21 {dimension_numbers = #tpu.dot_dimension_numbers<[1], [0], [0], [1], [0, 0, 1, 1], [], []>} : vector<128x128xbf16>, vector<128x512xbf16>, vector<128x512xf32> -> vector<128x512xf32>
    %c0_22 = arith.constant 0 : index
    %c0_23 = arith.constant 0 : index
    %27 = vector.load %arg7[%c0_22, %c0_23] : memref<1x512xf32, #tpu.memory_space<vmem>>, vector<1x512xf32>
    %28 = vector.broadcast %27 : vector<1x512xf32> to vector<128x512xf32>
    %29 = arith.addf %26, %28 : vector<128x512xf32>
    %cst_24 = arith.constant 0.000000e+00 : f32
    %30 = vector.broadcast %cst_24 : f32 to vector<128x512xf32>
    %31 = arith.maximumf %29, %30 : vector<128x512xf32>
    %c0_25 = arith.constant 0 : index
    %c0_26 = arith.constant 0 : index
    %32 = vector.load %arg8[%c0_25, %c0_26] : memref<8x128xf32, #tpu.memory_space<vmem>>, vector<8x128xf32>
    %cst_27 = arith.constant dense<0.000000e+00> : vector<8x512xf32>
    %33 = tpu.matmul %32, %31, %cst_27 {dimension_numbers = #tpu.dot_dimension_numbers<[1], [0], [0], [1], [0, 0, 1, 1], [], []>} : vector<8x128xf32>, vector<128x512xf32>, vector<8x512xf32> -> vector<8x512xf32>
    %c0_28 = arith.constant 0 : index
    %c0_29 = arith.constant 0 : index
    %34 = vector.load %arg10[%c0_28, %c0_29] : memref<8x512xf32, #tpu.memory_space<vmem>>, vector<8x512xf32>
    tpu.vector_store %arg10[%c0_28, %c0_29], %33 {strides = array<i32>} : memref<8x512xf32, #tpu.memory_space<vmem>>, vector<8x512xf32>,
    return
  }
}

</mosaic_0001>

<llo_original>
// kernel: embedding_model_forward.1
$region0: #{embedding_model_forward.1}
  #allocation0 [shape = 'u32[]', space=smem, size = 0x4, offset = 0x4, fixed_abs, tag = 'smem constant byte address 0x4 - core index']
  #allocation1 [shape = 'u32[144,128]{1,0:T(1,128)}', space=vmem, size = 0x12000, scoped, tag = 'internal scratch']
  %s0 = inlined_call_operand.vmem [shape: bf16[128,128], index: 0, kind: input, shape index: {}]
  %s1 = inlined_call_operand.vmem [shape: bf16[128,128], index: 1, kind: input, shape index: {}]
  %s2 = inlined_call_operand.vmem [shape: bf16[128,512], index: 2, kind: input, shape index: {}]
  %s3 = inlined_call_operand.vmem [shape: f32[1,512], index: 3, kind: input, shape index: {}]
  %s4 = inlined_call_operand.vmem [shape: bf16[512,512], index: 4, kind: input, shape index: {}]
  %s5 = inlined_call_operand.vmem [shape: f32[1,512], index: 5, kind: input, shape index: {}]
  %s6 = inlined_call_operand.vmem [shape: bf16[512,512], index: 6, kind: input, shape index: {}]
  %s7 = inlined_call_operand.vmem [shape: f32[1,512], index: 7, kind: input, shape index: {}]
  %s8 = inlined_call_operand.vmem [shape: f32[8,128], index: 8, kind: input, shape index: {}]
  %s9 = inlined_call_operand.vmem [shape: f32[128,512], index: 9, kind: output, shape index: {0}]
  %s10 = inlined_call_operand.vmem [shape: f32[8,512], index: 10, kind: output, shape index: {1}]
  %11 = xla_tuple %s9, %s10
  %s12 = sld [smem:[#allocation0]]
  $region54: #{embedding_model_forward.1} parent=0
    _
  %s14 = ssub.s32 1, %s12
  %s15 = scalar_select 0, %s14, %s12
  // Predicated region
  $region2: #{embedding_model_forward.1} parent=0 // pred_check
    _
  $region3: #{embedding_model_forward.1} parent=0 // pred_check_branch
    %17 = sbr.rel (0) target = $region5
  $region4: #{embedding_model_forward.1} parent=0 // pred_region
    _
  $region5: #{embedding_model_forward.1} parent=0 // pred_fallthru
    _
  // Predicated region
  $region6: #{embedding_model_forward.1} parent=0 // pred_check
    _
  $region7: #{embedding_model_forward.1} parent=0 // pred_check_branch
    %19 = sbr.rel (0) target = $region9
  $region8: #{embedding_model_forward.1} parent=0 // pred_region
    _
  $region9: #{embedding_model_forward.1} parent=0 // pred_fallthru
    _
  // Predicated region
  $region10: #{embedding_model_forward.1} parent=0 // pred_check
    _
  $region11: #{embedding_model_forward.1} parent=0 // pred_check_branch
    %21 = sbr.rel (0) target = $region13
  $region12: #{embedding_model_forward.1} parent=0 // pred_region
    _
  $region13: #{embedding_model_forward.1} parent=0 // pred_fallthru
    _
  // Predicated region
  $region14: #{embedding_model_forward.1} parent=0 // pred_check
    _
  $region15: #{embedding_model_forward.1} parent=0 // pred_check_branch
    %23 = sbr.rel (0) target = $region17
  $region16: #{embedding_model_forward.1} parent=0 // pred_region
    _
  $region17: #{embedding_model_forward.1} parent=0 // pred_fallthru
    _
  // Predicated region
  $region18: #{embedding_model_forward.1} parent=0 // pred_check
    _
  $region19: #{embedding_model_forward.1} parent=0 // pred_check_branch
    %25 = sbr.rel (0) target = $region21
  $region20: #{embedding_model_forward.1} parent=0 // pred_region
    _
  $region21: #{embedding_model_forward.1} parent=0 // pred_fallthru
    _
  // Predicated region
  $region22: #{embedding_model_forward.1} parent=0 // pred_check
    _
  $region23: #{embedding_model_forward.1} parent=0 // pred_check_branch
    %27 = sbr.rel (0) target = $region25
  $region24: #{embedding_model_forward.1} parent=0 // pred_region
    _
  $region25: #{embedding_model_forward.1} parent=0 // pred_fallthru
    _
  // Predicated region
  $region26: #{embedding_model_forward.1} parent=0 // pred_check
    _
  $region27: #{embedding_model_forward.1} parent=0 // pred_check_branch
    %29 = sbr.rel (0) target = $region29
  $region28: #{embedding_model_forward.1} parent=0 // pred_region
    _
  $region29: #{embedding_model_forward.1} parent=0 // pred_fallthru
    _
  // Predicated region
  $region30: #{embedding_model_forward.1} parent=0 // pred_check
    _
  $region31: #{embedding_model_forward.1} parent=0 // pred_check_branch
    %31 = sbr.rel (0) target = $region33
  $region32: #{embedding_model_forward.1} parent=0 // pred_region
    _
  $region33: #{embedding_model_forward.1} parent=0 // pred_fallthru
    _
  // Predicated region
  $region34: #{embedding_model_forward.1} parent=0 // pred_check
    _
  $region35: #{embedding_model_forward.1} parent=0 // pred_check_branch
    %33 = sbr.rel (0) target = $region37
  $region36: #{embedding_model_forward.1} parent=0 // pred_region
    _
  $region37: #{embedding_model_forward.1} parent=0 // pred_fallthru
    _
  %v35 = vld [vmem:[%s0] sm:$0xf]
  %v36 = vld [vmem:[%s0 + $0x4] sm:$0xf]
  %v37 = vld [vmem:[%s0 + $0x8] sm:$0xf]
  %v38 = vld [vmem:[%s0 + $0xc] sm:$0xf]
  %v39 = vld [vmem:[%s0 + $0x10] sm:$0xf]
  %v40 = vld [vmem:[%s0 + $0x14] sm:$0xf]
  %v41 = vld [vmem:[%s0 + $0x18] sm:$0xf]
  %v42 = vld [vmem:[%s0 + $0x1c] sm:$0xf]
  %v43 = vld [vmem:[%s0 + $0x20] sm:$0xf]
  %v44 = vld [vmem:[%s0 + $0x24] sm:$0xf]
  %v45 = vld [vmem:[%s0 + $0x28] sm:$0xf]
  %v46 = vld [vmem:[%s0 + $0x2c] sm:$0xf]
  %v47 = vld [vmem:[%s0 + $0x30] sm:$0xf]
  %v48 = vld [vmem:[%s0 + $0x34] sm:$0xf]
  %v49 = vld [vmem:[%s0 + $0x38] sm:$0xf]
  %v50 = vld [vmem:[%s0 + $0x3c] sm:$0xf]
  %v51 = vld [vmem:[%s1] sm:$0xf]
  %v52 = vld [vmem:[%s1 + $0x4] sm:$0xf]
  %v53 = vld [vmem:[%s1 + $0x8] sm:$0xf]
  %v54 = vld [vmem:[%s1 + $0xc] sm:$0xf]
  %v55 = vld [vmem:[%s1 + $0x10] sm:$0xf]
  %v56 = vld [vmem:[%s1 + $0x14] sm:$0xf]
  %v57 = vld [vmem:[%s1 + $0x18] sm:$0xf]
  %v58 = vld [vmem:[%s1 + $0x1c] sm:$0xf]
  %v59 = vld [vmem:[%s1 + $0x20] sm:$0xf]
  %v60 = vld [vmem:[%s1 + $0x24] sm:$0xf]
  %v61 = vld [vmem:[%s1 + $0x28] sm:$0xf]
  %v62 = vld [vmem:[%s1 + $0x2c] sm:$0xf]
  %v63 = vld [vmem:[%s1 + $0x30] sm:$0xf]
  %v64 = vld [vmem:[%s1 + $0x34] sm:$0xf]
  %v65 = vld [vmem:[%s1 + $0x38] sm:$0xf]
  %v66 = vld [vmem:[%s1 + $0x3c] sm:$0xf]
  %v83 = vunpack.c.l.b16 %v35
  %v84 = vunpack.c.l.b16 %v36
  %v85 = vunpack.c.l.b16 %v37
  %v86 = vunpack.c.l.b16 %v38
  %v87 = vunpack.c.l.b16 %v39
  %v88 = vunpack.c.l.b16 %v40
  %v89 = vunpack.c.l.b16 %v41
  %v90 = vunpack.c.l.b16 %v42
  %v91 = vunpack.c.l.b16 %v43
  %v92 = vunpack.c.l.b16 %v44
  %v93 = vunpack.c.l.b16 %v45
  %v94 = vunpack.c.l.b16 %v46
  %v95 = vunpack.c.l.b16 %v47
  %v96 = vunpack.c.l.b16 %v48
  %v97 = vunpack.c.l.b16 %v49
  %v98 = vunpack.c.l.b16 %v50
  %v99 = vpack.c.b16 %v84, %v83
  %v100 = vpack.c.b16 %v86, %v85
  %v101 = vpack.c.b16 %v88, %v87
  %v102 = vpack.c.b16 %v90, %v89
  %v103 = vpack.c.b16 %v92, %v91
  %v104 = vpack.c.b16 %v94, %v93
  %v105 = vpack.c.b16 %v96, %v95
  %v106 = vpack.c.b16 %v98, %v97
  %v131 = vunpack.c.l.b16 %v51
  %v132 = vunpack.c.l.b16 %v52
  %v133 = vunpack.c.l.b16 %v53
  %v134 = vunpack.c.l.b16 %v54
  %v135 = vunpack.c.l.b16 %v55
  %v136 = vunpack.c.l.b16 %v56
  %v137 = vunpack.c.l.b16 %v57
  %v138 = vunpack.c.l.b16 %v58
  %v139 = vunpack.c.l.b16 %v59
  %v140 = vunpack.c.l.b16 %v60
  %v141 = vunpack.c.l.b16 %v61
  %v142 = vunpack.c.l.b16 %v62
  %v143 = vunpack.c.l.b16 %v63
  %v144 = vunpack.c.l.b16 %v64
  %v145 = vunpack.c.l.b16 %v65
  %v146 = vunpack.c.l.b16 %v66
  %v147 = vpack.c.b16 %v132, %v131
  %v148 = vpack.c.b16 %v134, %v133
  %v149 = vpack.c.b16 %v136, %v135
  %v150 = vpack.c.b16 %v138, %v137
  %v151 = vpack.c.b16 %v140, %v139
  %v152 = vpack.c.b16 %v142, %v141
  %v153 = vpack.c.b16 %v144, %v143
  %v154 = vpack.c.b16 %v146, %v145
  %163 = vmatprep.subr.bf16.mxu0 0
  %164 = vmatpush1.bf16.msra.mxu0 %v147
  %165 = vmatprep.subr.bf16.mxu0 0
  %166 = vmatpush1.bf16.msra.mxu0 %v148
  %167 = vmatprep.subr.bf16.mxu0 0
  %168 = vmatpush1.bf16.msra.mxu0 %v149
  %169 = vmatprep.subr.bf16.mxu0 0
  %170 = vmatpush1.bf16.msra.mxu0 %v150
  %171 = vmatprep.subr.bf16.mxu0 0
  %172 = vmatpush1.bf16.msra.mxu0 %v151
  %173 = vmatprep.subr.bf16.mxu0 0
  %174 = vmatpush1.bf16.msra.mxu0 %v152
  %175 = vmatprep.subr.bf16.mxu0 0
  %176 = vmatpush1.bf16.msra.mxu0 %v153
  %177 = vmatprep.subr.bf16.mxu0 0
  %178 = vmatpush1.bf16.msra.mxu0 %v154
  %179 = vmatprep.subr.bf16.mxu0 0
  %180 = vmatpush1.bf16.msra.mxu0 0
  %181 = vmatprep.subr.bf16.mxu0 0
  %182 = vmatpush1.bf16.msra.mxu0 0
  %183 = vmatprep.subr.bf16.mxu0 0
  %184 = vmatpush1.bf16.msra.mxu0 0
  %185 = vmatprep.subr.bf16.mxu0 0
  %186 = vmatpush1.bf16.msra.mxu0 0
  %187 = vmatprep.subr.bf16.mxu0 0
  %188 = vmatpush1.bf16.msra.mxu0 0
  %189 = vmatprep.subr.bf16.mxu0 0
  %190 = vmatpush1.bf16.msra.mxu0 0
  %191 = vmatprep.subr.bf16.mxu0 0
  %192 = vmatpush1.bf16.msra.mxu0 0
  %193 = vmatprep.subr.bf16.mxu0 0
  %194 = vmatpush1.bf16.msra.mxu0 0
  %195 = vmatprep.mubr.bf16.mxu0 0
  %196 = vmatmul.mubr.bf16.gmra.mrb[0].mxu0 %v99
  %v197 = vpop.f32.mrb[0].mxu0
  %v198 = vadd.f32 0.0, %v197
  %v199 = vpop.f32.mrb[0].mxu0
  %v200 = vpop.f32.mrb[0].mxu0
  %v201 = vadd.f32 0.0, %v200
  %v202 = vpop.f32.mrb[0].mxu0
  %203 = vmatprep.mubr.bf16.mxu0 0
  %204 = vmatmul.mubr.bf16.gmra.mrb[0].mxu0 %v100
  %v205 = vpop.f32.mrb[0].mxu0
  %v206 = vadd.f32 0.0, %v205
  %v207 = vpop.f32.mrb[0].mxu0
  %v208 = vpop.f32.mrb[0].mxu0
  %v209 = vadd.f32 0.0, %v208
  %v210 = vpop.f32.mrb[0].mxu0
  %211 = vmatprep.mubr.bf16.mxu0 0
  %212 = vmatmul.mubr.bf16.gmra.mrb[0].mxu0 %v101
  %v213 = vpop.f32.mrb[0].mxu0
  %v214 = vadd.f32 0.0, %v213
  %v215 = vpop.f32.mrb[0].mxu0
  %v216 = vpop.f32.mrb[0].mxu0
  %v217 = vadd.f32 0.0, %v216
  %v218 = vpop.f32.mrb[0].mxu0
  %219 = vmatprep.mubr.bf16.mxu0 0
  %220 = vmatmul.mubr.bf16.gmra.mrb[0].mxu0 %v102
  %v221 = vpop.f32.mrb[0].mxu0
  %v222 = vadd.f32 0.0, %v221
  %v223 = vpop.f32.mrb[0].mxu0
  %v224 = vpop.f32.mrb[0].mxu0
  %v225 = vadd.f32 0.0, %v224
  %v226 = vpop.f32.mrb[0].mxu0
  %227 = vmatprep.mubr.bf16.mxu0 0
  %228 = vmatmul.mubr.bf16.gmra.mrb[0].mxu0 %v103
  %v229 = vpop.f32.mrb[0].mxu0
  %v230 = vadd.f32 0.0, %v229
  %v231 = vpop.f32.mrb[0].mxu0
  %v232 = vpop.f32.mrb[0].mxu0
  %v233 = vadd.f32 0.0, %v232
  %v234 = vpop.f32.mrb[0].mxu0
  %235 = vmatprep.mubr.bf16.mxu0 0
  %236 = vmatmul.mubr.bf16.gmra.mrb[0].mxu0 %v104
  %v237 = vpop.f32.mrb[0].mxu0
  %v238 = vadd.f32 0.0, %v237
  %v239 = vpop.f32.mrb[0].mxu0
  %v240 = vpop.f32.mrb[0].mxu0
  %v241 = vadd.f32 0.0, %v240
  %v242 = vpop.f32.mrb[0].mxu0
  %243 = vmatprep.mubr.bf16.mxu0 0
  %244 = vmatmul.mubr.bf16.gmra.mrb[0].mxu0 %v105
  %v245 = vpop.f32.mrb[0].mxu0
  %v246 = vadd.f32 0.0, %v245
  %v247 = vpop.f32.mrb[0].mxu0
  %v248 = vpop.f32.mrb[0].mxu0
  %v249 = vadd.f32 0.0, %v248
  %v250 = vpop.f32.mrb[0].mxu0
  %251 = vmatprep.mubr.bf16.mxu0 0
  %252 = vmatmul.mubr.bf16.gmra.mrb[0].mxu0 %v106
  %v253 = vpop.f32.mrb[0].mxu0
  %v254 = vadd.f32 0.0, %v253
  %v255 = vpop.f32.mrb[0].mxu0
  %v256 = vpop.f32.mrb[0].mxu0
  %v257 = vadd.f32 0.0, %v256
  %v258 = vpop.f32.mrb[0].mxu0
  %259 = vdwg.mxu0
  %v260 = vpack.c.bf16 %v201, %v198
  %v261 = vpack.c.bf16 %v209, %v206
  %v262 = vpack.c.bf16 %v217, %v214
  %v263 = vpack.c.bf16 %v225, %v222
  %v264 = vpack.c.bf16 %v233, %v230
  %v265 = vpack.c.bf16 %v241, %v238
  %v266 = vpack.c.bf16 %v249, %v246
  %v267 = vpack.c.bf16 %v257, %v254
  %v268 = vld [vmem:[%s2] sm:$0xff]
  %v269 = vld [vmem:[%s2 + $0x8] sm:$0xff]
  %v270 = vld [vmem:[%s2 + $0x10] sm:$0xff]
  %v271 = vld [vmem:[%s2 + $0x18] sm:$0xff]
  %v272 = vld [vmem:[%s2 + $0x20] sm:$0xff]
  %v273 = vld [vmem:[%s2 + $0x28] sm:$0xff]
  %v274 = vld [vmem:[%s2 + $0x30] sm:$0xff]
  %v275 = vld [vmem:[%s2 + $0x38] sm:$0xff]
  %v276 = vld [vmem:[%s2 + $0x40] sm:$0xff]
  %v277 = vld [vmem:[%s2 + $0x48] sm:$0xff]
  %v278 = vld [vmem:[%s2 + $0x50] sm:$0xff]
  %v279 = vld [vmem:[%s2 + $0x58] sm:$0xff]
  %v280 = vld [vmem:[%s2 + $0x60] sm:$0xff]
  %v281 = vld [vmem:[%s2 + $0x68] sm:$0xff]
  %v282 = vld [vmem:[%s2 + $0x70] sm:$0xff]
  %v283 = vld [vmem:[%s2 + $0x78] sm:$0xff]
  %v284 = vld [vmem:[%s2 + $0x80] sm:$0xff]
  %v285 = vld [vmem:[%s2 + $0x88] sm:$0xff]
  %v286 = vld [vmem:[%s2 + $0x90] sm:$0xff]
  %v287 = vld [vmem:[%s2 + $0x98] sm:$0xff]
  %v288 = vld [vmem:[%s2 + $0xa0] sm:$0xff]
  %v289 = vld [vmem:[%s2 + $0xa8] sm:$0xff]
  %v290 = vld [vmem:[%s2 + $0xb0] sm:$0xff]
  %v291 = vld [vmem:[%s2 + $0xb8] sm:$0xff]
  %v292 = vld [vmem:[%s2 + $0xc0] sm:$0xff]
  %v293 = vld [vmem:[%s2 + $0xc8] sm:$0xff]
  %v294 = vld [vmem:[%s2 + $0xd0] sm:$0xff]
  %v295 = vld [vmem:[%s2 + $0xd8] sm:$0xff]
  %v296 = vld [vmem:[%s2 + $0xe0] sm:$0xff]
  %v297 = vld [vmem:[%s2 + $0xe8] sm:$0xff]
  %v298 = vld [vmem:[%s2 + $0xf0] sm:$0xff]
  %v299 = vld [vmem:[%s2 + $0xf8] sm:$0xff]
  %v300 = vld [vmem:[%s3] sm:$0xf]
  %v302 = vlaneseq
  %v303 = vshrl.u32 %v302, 7
  %v304 = vsub.s32 0, %v303
  %v305 = vrot.slane %v300, %v304
  %v306 = vlaneseq
  %v307 = vshrl.u32 %v306, 7
  %v308 = vsub.s32 1, %v307
  %v309 = vrot.slane %v300, %v308
  %v310 = vlaneseq
  %v311 = vshrl.u32 %v310, 7
  %v312 = vsub.s32 2, %v311
  %v313 = vrot.slane %v300, %v312
  %v314 = vlaneseq
  %v315 = vshrl.u32 %v314, 7
  %v316 = vsub.s32 3, %v315
  %v317 = vrot.slane %v300, %v316
  %v354 = vunpack.c.l.b16 %v268
  %v355 = vunpack.c.h.b16 %v268
  %v356 = vunpack.c.l.b16 %v269
  %v357 = vunpack.c.h.b16 %v269
  %v358 = vunpack.c.l.b16 %v270
  %v359 = vunpack.c.h.b16 %v270
  %v360 = vunpack.c.l.b16 %v271
  %v361 = vunpack.c.h.b16 %v271
  %v362 = vunpack.c.l.b16 %v272
  %v363 = vunpack.c.h.b16 %v272
  %v364 = vunpack.c.l.b16 %v273
  %v365 = vunpack.c.h.b16 %v273
  %v366 = vunpack.c.l.b16 %v274
  %v367 = vunpack.c.h.b16 %v274
  %v368 = vunpack.c.l.b16 %v275
  %v369 = vunpack.c.h.b16 %v275
  %v370 = vunpack.c.l.b16 %v276
  %v371 = vunpack.c.h.b16 %v276
  %v372 = vunpack.c.l.b16 %v277
  %v373 = vunpack.c.h.b16 %v277
  %v374 = vunpack.c.l.b16 %v278
  %v375 = vunpack.c.h.b16 %v278
  %v376 = vunpack.c.l.b16 %v279
  %v377 = vunpack.c.h.b16 %v279
  %v378 = vunpack.c.l.b16 %v280
  %v379 = vunpack.c.h.b16 %v280
  %v380 = vunpack.c.l.b16 %v281
  %v381 = vunpack.c.h.b16 %v281
  %v382 = vunpack.c.l.b16 %v282
  %v383 = vunpack.c.h.b16 %v282
  %v384 = vunpack.c.l.b16 %v283
  %v385 = vunpack.c.h.b16 %v283
  %v386 = vunpack.c.l.b16 %v284
  %v387 = vunpack.c.h.b16 %v284
  %v388 = vunpack.c.l.b16 %v285
  %v389 = vunpack.c.h.b16 %v285
  %v390 = vunpack.c.l.b16 %v286
  %v391 = vunpack.c.h.b16 %v286
  %v392 = vunpack.c.l.b16 %v287
  %v393 = vunpack.c.h.b16 %v287
  %v394 = vunpack.c.l.b16 %v288
  %v395 = vunpack.c.h.b16 %v288
  %v396 = vunpack.c.l.b16 %v289
  %v397 = vunpack.c.h.b16 %v289
  %v398 = vunpack.c.l.b16 %v290
  %v399 = vunpack.c.h.b16 %v290
  %v400 = vunpack.c.l.b16 %v291
  %v401 = vunpack.c.h.b16 %v291
  %v402 = vunpack.c.l.b16 %v292
  %v403 = vunpack.c.h.b16 %v292
  %v404 = vunpack.c.l.b16 %v293
  %v405 = vunpack.c.h.b16 %v293
  %v406 = vunpack.c.l.b16 %v294
  %v407 = vunpack.c.h.b16 %v294
  %v408 = vunpack.c.l.b16 %v295
  %v409 = vunpack.c.h.b16 %v295
  %v410 = vunpack.c.l.b16 %v296
  %v411 = vunpack.c.h.b16 %v296
  %v412 = vunpack.c.l.b16 %v297
  %v413 = vunpack.c.h.b16 %v297
  %v414 = vunpack.c.l.b16 %v298
  %v415 = vunpack.c.h.b16 %v298
  %v416 = vunpack.c.l.b16 %v299
  %v417 = vunpack.c.h.b16 %v299
  %v418 = vpack.c.b16 %v358, %v354
  %v419 = vpack.c.b16 %v359, %v355
  %v420 = vpack.c.b16 %v360, %v356
  %v421 = vpack.c.b16 %v361, %v357
  %v422 = vpack.c.b16 %v366, %v362
  %v423 = vpack.c.b16 %v367, %v363
  %v424 = vpack.c.b16 %v368, %v364
  %v425 = vpack.c.b16 %v369, %v365
  %v426 = vpack.c.b16 %v374, %v370
  %v427 = vpack.c.b16 %v375, %v371
  %v428 = vpack.c.b16 %v376, %v372
  %v429 = vpack.c.b16 %v377, %v373
  %v430 = vpack.c.b16 %v382, %v378
  %v431 = vpack.c.b16 %v383, %v379
  %v432 = vpack.c.b16 %v384, %v380
  %v433 = vpack.c.b16 %v385, %v381
  %v434 = vpack.c.b16 %v390, %v386
  %v435 = vpack.c.b16 %v391, %v387
  %v436 = vpack.c.b16 %v392, %v388
  %v437 = vpack.c.b16 %v393, %v389
  %v438 = vpack.c.b16 %v398, %v394
  %v439 = vpack.c.b16 %v399, %v395
  %v440 = vpack.c.b16 %v400, %v396
  %v441 = vpack.c.b16 %v401, %v397
  %v442 = vpack.c.b16 %v406, %v402
  %v443 = vpack.c.b16 %v407, %v403
  %v444 = vpack.c.b16 %v408, %v404
  %v445 = vpack.c.b16 %v409, %v405
  %v446 = vpack.c.b16 %v414, %v410
  %v447 = vpack.c.b16 %v415, %v411
  %v448 = vpack.c.b16 %v416, %v412
  %v449 = vpack.c.b16 %v417, %v413
  %482 = vmatprep.subr.bf16.mxu0 %v419
  %483 = vmatpush1.bf16.msra.mxu0 %v418
  %484 = vmatprep.subr.bf16.mxu0 %v423
  %485 = vmatpush1.bf16.msra.mxu0 %v422
  %486 = vmatprep.subr.bf16.mxu0 %v427
  %487 = vmatpush1.bf16.msra.mxu0 %v426
  %488 = vmatprep.subr.bf16.mxu0 %v431
  %489 = vmatpush1.bf16.msra.mxu0 %v430
  %490 = vmatprep.subr.bf16.mxu0 %v435
  %491 = vmatpush1.bf16.msra.mxu0 %v434
  %492 = vmatprep.subr.bf16.mxu0 %v439
  %493 = vmatpush1.bf16.msra.mxu0 %v438
  %494 = vmatprep.subr.bf16.mxu0 %v443
  %495 = vmatpush1.bf16.msra.mxu0 %v442
  %496 = vmatprep.subr.bf16.mxu0 %v447
  %497 = vmatpush1.bf16.msra.mxu0 %v446
  %498 = vmatprep.subr.bf16.mxu0 0
  %499 = vmatpush1.bf16.msra.mxu0 0
  %500 = vmatprep.subr.bf16.mxu0 0
  %501 = vmatpush1.bf16.msra.mxu0 0
  %502 = vmatprep.subr.bf16.mxu0 0
  %503 = vmatpush1.bf16.msra.mxu0 0
  %504 = vmatprep.subr.bf16.mxu0 0
  %505 = vmatpush1.bf16.msra.mxu0 0
  %506 = vmatprep.subr.bf16.mxu0 0
  %507 = vmatpush1.bf16.msra.mxu0 0
  %508 = vmatprep.subr.bf16.mxu0 0
  %509 = vmatpush1.bf16.msra.mxu0 0
  %510 = vmatprep.subr.bf16.mxu0 0
  %511 = vmatpush1.bf16.msra.mxu0 0
  %512 = vmatprep.subr.bf16.mxu0 0
  %513 = vmatpush1.bf16.msra.mxu0 0
  %514 = vmatprep.mubr.bf16.mxu0 0
  %515 = vmatmul.mubr.bf16.gmra.mrb[0].mxu0 %v260
  %v516 = vpop.f32.mrb[0].mxu0
  %v517 = vadd.f32 %v305, %v516
  %v518 = vpop.f32.mrb[0].mxu0
  %v519 = vadd.f32 %v309, %v518
  %v520 = vpop.f32.mrb[0].mxu0
  %v521 = vadd.f32 %v305, %v520
  %v522 = vpop.f32.mrb[0].mxu0
  %v523 = vadd.f32 %v309, %v522
  %524 = vmatprep.mubr.bf16.mxu0 0
  %525 = vmatmul.mubr.bf16.gmra.mrb[0].mxu0 %v261
  %v526 = vpop.f32.mrb[0].mxu0
  %v527 = vadd.f32 %v305, %v526
  %v528 = vpop.f32.mrb[0].mxu0
  %v529 = vadd.f32 %v309, %v528
  %v530 = vpop.f32.mrb[0].mxu0
  %v531 = vadd.f32 %v305, %v530
  %v532 = vpop.f32.mrb[0].mxu0
  %v533 = vadd.f32 %v309, %v532
  %534 = vmatprep.mubr.bf16.mxu0 0
  %535 = vmatmul.mubr.bf16.gmra.mrb[0].mxu0 %v262
  %v536 = vpop.f32.mrb[0].mxu0
  %v537 = vadd.f32 %v305, %v536
  %v538 = vpop.f32.mrb[0].mxu0
  %v539 = vadd.f32 %v309, %v538
  %v540 = vpop.f32.mrb[0].mxu0
  %v541 = vadd.f32 %v305, %v540
  %v542 = vpop.f32.mrb[0].mxu0
  %v543 = vadd.f32 %v309, %v542
  %544 = vmatprep.mubr.bf16.mxu0 0
  %545 = vmatmul.mubr.bf16.gmra.mrb[0].mxu0 %v263
  %v546 = vpop.f32.mrb[0].mxu0
  %v547 = vadd.f32 %v305, %v546
  %v548 = vpop.f32.mrb[0].mxu0
  %v549 = vadd.f32 %v309, %v548
  %v550 = vpop.f32.mrb[0].mxu0
  %v551 = vadd.f32 %v305, %v550
  %v552 = vpop.f32.mrb[0].mxu0
  %v553 = vadd.f32 %v309, %v552
  %554 = vmatprep.mubr.bf16.mxu0 0
  %555 = vmatmul.mubr.bf16.gmra.mrb[0].mxu0 %v264
  %v556 = vpop.f32.mrb[0].mxu0
  %v557 = vadd.f32 %v305, %v556
  %v558 = vpop.f32.mrb[0].mxu0
  %v559 = vadd.f32 %v309, %v558
  %v560 = vpop.f32.mrb[0].mxu0
  %v561 = vadd.f32 %v305, %v560
  %v562 = vpop.f32.mrb[0].mxu0
  %v563 = vadd.f32 %v309, %v562
  %564 = vmatprep.mubr.bf16.mxu0 0
  %565 = vmatmul.mubr.bf16.gmra.mrb[0].mxu0 %v265
  %v566 = vpop.f32.mrb[0].mxu0
  %v567 = vadd.f32 %v305, %v566
  %v568 = vpop.f32.mrb[0].mxu0
  %v569 = vadd.f32 %v309, %v568
  %v570 = vpop.f32.mrb[0].mxu0
  %v571 = vadd.f32 %v305, %v570
  %v572 = vpop.f32.mrb[0].mxu0
  %v573 = vadd.f32 %v309, %v572
  %574 = vmatprep.mubr.bf16.mxu0 0
  %575 = vmatmul.mubr.bf16.gmra.mrb[0].mxu0 %v266
  %v576 = vpop.f32.mrb[0].mxu0
  %v577 = vadd.f32 %v305, %v576
  %v578 = vpop.f32.mrb[0].mxu0
  %v579 = vadd.f32 %v309, %v578
  %v580 = vpop.f32.mrb[0].mxu0
  %v581 = vadd.f32 %v305, %v580
  %v582 = vpop.f32.mrb[0].mxu0
  %v583 = vadd.f32 %v309, %v582
  %584 = vmatprep.mubr.bf16.mxu0 0
  %585 = vmatmul.mubr.bf16.gmra.mrb[0].mxu0 %v267
  %v586 = vpop.f32.mrb[0].mxu0
  %v587 = vadd.f32 %v305, %v586
  %v588 = vpop.f32.mrb[0].mxu0
  %v589 = vadd.f32 %v309, %v588
  %v590 = vpop.f32.mrb[0].mxu0
  %v591 = vadd.f32 %v305, %v590
  %v592 = vpop.f32.mrb[0].mxu0
  %v593 = vadd.f32 %v309, %v592
  %594 = vdwg.mxu0
  %595 = vmatprep.subr.bf16.mxu0 %v421
  %596 = vmatpush1.bf16.msra.mxu0 %v420
  %597 = vmatprep.subr.bf16.mxu0 %v425
  %598 = vmatpush1.bf16.msra.mxu0 %v424
  %599 = vmatprep.subr.bf16.mxu0 %v429
  %600 = vmatpush1.bf16.msra.mxu0 %v428
  %601 = vmatprep.subr.bf16.mxu0 %v433
  %602 = vmatpush1.bf16.msra.mxu0 %v432
  %603 = vmatprep.subr.bf16.mxu0 %v437
  %604 = vmatpush1.bf16.msra.mxu0 %v436
  %605 = vmatprep.subr.bf16.mxu0 %v441
  %606 = vmatpush1.bf16.msra.mxu0 %v440
  %607 = vmatprep.subr.bf16.mxu0 %v445
  %608 = vmatpush1.bf16.msra.mxu0 %v444
  %609 = vmatprep.subr.bf16.mxu0 %v449
  %610 = vmatpush1.bf16.msra.mxu0 %v448
  %611 = vmatprep.subr.bf16.mxu0 0
  %612 = vmatpush1.bf16.msra.mxu0 0
  %613 = vmatprep.subr.bf16.mxu0 0
  %614 = vmatpush1.bf16.msra.mxu0 0
  %615 = vmatprep.subr.bf16.mxu0 0
  %616 = vmatpush1.bf16.msra.mxu0 0
  %617 = vmatprep.subr.bf16.mxu0 0
  %618 = vmatpush1.bf16.msra.mxu0 0
  %619 = vmatprep.subr.bf16.mxu0 0
  %620 = vmatpush1.bf16.msra.mxu0 0
  %621 = vmatprep.subr.bf16.mxu0 0
  %622 = vmatpush1.bf16.msra.mxu0 0
  %623 = vmatprep.subr.bf16.mxu0 0
  %624 = vmatpush1.bf16.msra.mxu0 0
  %625 = vmatprep.subr.bf16.mxu0 0
  %626 = vmatpush1.bf16.msra.mxu0 0
  %627 = vmatprep.mubr.bf16.mxu0 0
  %628 = vmatmul.mubr.bf16.gmra.mrb[0].mxu0 %v260
  %v629 = vpop.f32.mrb[0].mxu0
  %v630 = vadd.f32 %v313, %v629
  %v631 = vpop.f32.mrb[0].mxu0
  %v632 = vadd.f32 %v317, %v631
  %v633 = vpop.f32.mrb[0].mxu0
  %v634 = vadd.f32 %v313, %v633
  %v635 = vpop.f32.mrb[0].mxu0
  %v636 = vadd.f32 %v317, %v635
  %637 = vmatprep.mubr.bf16.mxu0 0
  %638 = vmatmul.mubr.bf16.gmra.mrb[0].mxu0 %v261
  %v639 = vpop.f32.mrb[0].mxu0
  %v640 = vadd.f32 %v313, %v639
  %v641 = vpop.f32.mrb[0].mxu0
  %v642 = vadd.f32 %v317, %v641
  %v643 = vpop.f32.mrb[0].mxu0
  %v644 = vadd.f32 %v313, %v643
  %v645 = vpop.f32.mrb[0].mxu0
  %v646 = vadd.f32 %v317, %v645
  %647 = vmatprep.mubr.bf16.mxu0 0
  %648 = vmatmul.mubr.bf16.gmra.mrb[0].mxu0 %v262
  %v649 = vpop.f32.mrb[0].mxu0
  %v650 = vadd.f32 %v313, %v649
  %v651 = vpop.f32.mrb[0].mxu0
  %v652 = vadd.f32 %v317, %v651
  %v653 = vpop.f32.mrb[0].mxu0
  %v654 = vadd.f32 %v313, %v653
  %v655 = vpop.f32.mrb[0].mxu0
  %v656 = vadd.f32 %v317, %v655
  %657 = vmatprep.mubr.bf16.mxu0 0
  %658 = vmatmul.mubr.bf16.gmra.mrb[0].mxu0 %v263
  %v659 = vpop.f32.mrb[0].mxu0
  %v660 = vadd.f32 %v313, %v659
  %v661 = vpop.f32.mrb[0].mxu0
  %v662 = vadd.f32 %v317, %v661
  %v663 = vpop.f32.mrb[0].mxu0
  %v664 = vadd.f32 %v313, %v663
  %v665 = vpop.f32.mrb[0].mxu0
  %v666 = vadd.f32 %v317, %v665
  %667 = vmatprep.mubr.bf16.mxu0 0
  %668 = vmatmul.mubr.bf16.gmra.mrb[0].mxu0 %v264
  %v669 = vpop.f32.mrb[0].mxu0
  %v670 = vadd.f32 %v313, %v669
  %v671 = vpop.f32.mrb[0].mxu0
  %v672 = vadd.f32 %v317, %v671
  %v673 = vpop.f32.mrb[0].mxu0
  %v674 = vadd.f32 %v313, %v673
  %v675 = vpop.f32.mrb[0].mxu0
  %v676 = vadd.f32 %v317, %v675
  %677 = vmatprep.mubr.bf16.mxu0 0
  %678 = vmatmul.mubr.bf16.gmra.mrb[0].mxu0 %v265
  %v679 = vpop.f32.mrb[0].mxu0
  %v680 = vadd.f32 %v313, %v679
  %v681 = vpop.f32.mrb[0].mxu0
  %v682 = vadd.f32 %v317, %v681
  %v683 = vpop.f32.mrb[0].mxu0
  %v684 = vadd.f32 %v313, %v683
  %v685 = vpop.f32.mrb[0].mxu0
  %v686 = vadd.f32 %v317, %v685
  %687 = vmatprep.mubr.bf16.mxu0 0
  %688 = vmatmul.mubr.bf16.gmra.mrb[0].mxu0 %v266
  %v689 = vpop.f32.mrb[0].mxu0
  %v690 = vadd.f32 %v313, %v689
  %v691 = vpop.f32.mrb[0].mxu0
  %v692 = vadd.f32 %v317, %v691
  %v693 = vpop.f32.mrb[0].mxu0
  %v694 = vadd.f32 %v313, %v693
  %v695 = vpop.f32.mrb[0].mxu0
  %v696 = vadd.f32 %v317, %v695
  %697 = vmatprep.mubr.bf16.mxu0 0
  %698 = vmatmul.mubr.bf16.gmra.mrb[0].mxu0 %v267
  %v699 = vpop.f32.mrb[0].mxu0
  %v700 = vadd.f32 %v313, %v699
  %v701 = vpop.f32.mrb[0].mxu0
  %v702 = vadd.f32 %v317, %v701
  %v703 = vpop.f32.mrb[0].mxu0
  %v704 = vadd.f32 %v313, %v703
  %v705 = vpop.f32.mrb[0].mxu0
  %v706 = vadd.f32 %v317, %v705
  %707 = vdwg.mxu0
  %v708 = vmax.f32 %v517, 0.0
  %v709 = vmax.f32 %v519, 0.0
  %v710 = vmax.f32 %v630, 0.0
  %v711 = vmax.f32 %v632, 0.0
  %v712 = vmax.f32 %v521, 0.0
  %v713 = vmax.f32 %v523, 0.0
  %v714 = vmax.f32 %v634, 0.0
  %v715 = vmax.f32 %v636, 0.0
  %v716 = vmax.f32 %v527, 0.0
  %v717 = vmax.f32 %v529, 0.0
  %v718 = vmax.f32 %v640, 0.0
  %v719 = vmax.f32 %v642, 0.0
  %v720 = vmax.f32 %v531, 0.0
  %v721 = vmax.f32 %v533, 0.0
  %v722 = vmax.f32 %v644, 0.0
  %v723 = vmax.f32 %v646, 0.0
  %v724 = vmax.f32 %v537, 0.0
  %v725 = vmax.f32 %v539, 0.0
  %v726 = vmax.f32 %v650, 0.0
  %v727 = vmax.f32 %v652, 0.0
  %v728 = vmax.f32 %v541, 0.0
  %v729 = vmax.f32 %v543, 0.0
  %v730 = vmax.f32 %v654, 0.0
  %v731 = vmax.f32 %v656, 0.0
  %v732 = vmax.f32 %v547, 0.0
  %v733 = vmax.f32 %v549, 0.0
  %v734 = vmax.f32 %v660, 0.0
  %v735 = vmax.f32 %v662, 0.0
  %v736 = vmax.f32 %v551, 0.0
  %v737 = vmax.f32 %v553, 0.0
  %v738 = vmax.f32 %v664, 0.0
  %v739 = vmax.f32 %v666, 0.0
  %v740 = vmax.f32 %v557, 0.0
  %v741 = vmax.f32 %v559, 0.0
  %v742 = vmax.f32 %v670, 0.0
  %v743 = vmax.f32 %v672, 0.0
  %v744 = vmax.f32 %v561, 0.0
  %v745 = vmax.f32 %v563, 0.0
  %v746 = vmax.f32 %v674, 0.0
  %v747 = vmax.f32 %v676, 0.0
  %v748 = vmax.f32 %v567, 0.0
  %v749 = vmax.f32 %v569, 0.0
  %v750 = vmax.f32 %v680, 0.0
  %v751 = vmax.f32 %v682, 0.0
  %v752 = vmax.f32 %v571, 0.0
  %v753 = vmax.f32 %v573, 0.0
  %v754 = vmax.f32 %v684, 0.0
  %v755 = vmax.f32 %v686, 0.0
  %v756 = vmax.f32 %v577, 0.0
  %v757 = vmax.f32 %v579, 0.0
  %v758 = vmax.f32 %v690, 0.0
  %v759 = vmax.f32 %v692, 0.0
  %v760 = vmax.f32 %v581, 0.0
  %v761 = vmax.f32 %v583, 0.0
  %v762 = vmax.f32 %v694, 0.0
  %v763 = vmax.f32 %v696, 0.0
  %v764 = vmax.f32 %v587, 0.0
  %v765 = vmax.f32 %v589, 0.0
  %v766 = vmax.f32 %v700, 0.0
  %v767 = vmax.f32 %v702, 0.0
  %v768 = vmax.f32 %v591, 0.0
  %v769 = vmax.f32 %v593, 0.0
  %v770 = vmax.f32 %v704, 0.0
  %v771 = vmax.f32 %v706, 0.0
  %v772 = vpack.c.bf16 %v712, %v708
  %v773 = vpack.c.bf16 %v713, %v709
  %v774 = vpack.c.bf16 %v714, %v710
  %v775 = vpack.c.bf16 %v715, %v711
  %v776 = vpack.c.bf16 %v720, %v716
  %v777 = vpack.c.bf16 %v721, %v717
  %v778 = vpack.c.bf16 %v722, %v718
  %v779 = vpack.c.bf16 %v723, %v719
  %v780 = vpack.c.bf16 %v728, %v724
  %v781 = vpack.c.bf16 %v729, %v725
  %v782 = vpack.c.bf16 %v730, %v726
  %v783 = vpack.c.bf16 %v731, %v727
  %v784 = vpack.c.bf16 %v736, %v732
  %v785 = vpack.c.bf16 %v737, %v733
  %v786 = vpack.c.bf16 %v738, %v734
  %v787 = vpack.c.bf16 %v739, %v735
  %v788 = vpack.c.bf16 %v744, %v740
  %v789 = vpack.c.bf16 %v745, %v741
  %v790 = vpack.c.bf16 %v746, %v742
  %v791 = vpack.c.bf16 %v747, %v743
  %v792 = vpack.c.bf16 %v752, %v748
  %v793 = vpack.c.bf16 %v753, %v749
  %v794 = vpack.c.bf16 %v754, %v750
  %v795 = vpack.c.bf16 %v755, %v751
  %v796 = vpack.c.bf16 %v760, %v756
  %v797 = vpack.c.bf16 %v761, %v757
  %v798 = vpack.c.bf16 %v762, %v758
  %v799 = vpack.c.bf16 %v763, %v759
  %v800 = vpack.c.bf16 %v768, %v764
  %v801 = vpack.c.bf16 %v769, %v765
  %v802 = vpack.c.bf16 %v770, %v766
  %v803 = vpack.c.bf16 %v771, %v767
  %v804 = vld [vmem:[%s4] sm:$0xff]
  %v805 = vld [vmem:[%s4 + $0x8] sm:$0xff]
  %v806 = vld [vmem:[%s4 + $0x10] sm:$0xff]
  %v807 = vld [vmem:[%s4 + $0x18] sm:$0xff]
  %v808 = vld [vmem:[%s4 + $0x20] sm:$0xff]
  %v809 = vld [vmem:[%s4 + $0x28] sm:$0xff]
  %v810 = vld [vmem:[%s4 + $0x30] sm:$0xff]
  %v811 = vld [vmem:[%s4 + $0x38] sm:$0xff]
  %v812 = vld [vmem:[%s4 + $0x40] sm:$0xff]
  %v813 = vld [vmem:[%s4 + $0x48] sm:$0xff]
  %v814 = vld [vmem:[%s4 + $0x50] sm:$0xff]
  %v815 = vld [vmem:[%s4 + $0x58] sm:$0xff]
  %v816 = vld [vmem:[%s4 + $0x60] sm:$0xff]
  %v817 = vld [vmem:[%s4 + $0x68] sm:$0xff]
  %v818 = vld [vmem:[%s4 + $0x70] sm:$0xff]
  %v819 = vld [vmem:[%s4 + $0x78] sm:$0xff]
  %v820 = vld [vmem:[%s4 + $0x80] sm:$0xff]
  %v821 = vld [vmem:[%s4 + $0x88] sm:$0xff]
  %v822 = vld [vmem:[%s4 + $0x90] sm:$0xff]
  %v823 = vld [vmem:[%s4 + $0x98] sm:$0xff]
  %v824 = vld [vmem:[%s4 + $0xa0] sm:$0xff]
  %v825 = vld [vmem:[%s4 + $0xa8] sm:$0xff]
  %v826 = vld [vmem:[%s4 + $0xb0] sm:$0xff]
  %v827 = vld [vmem:[%s4 + $0xb8] sm:$0xff]
  %v828 = vld [vmem:[%s4 + $0xc0] sm:$0xff]
  %v829 = vld [vmem:[%s4 + $0xc8] sm:$0xff]
  %v830 = vld [vmem:[%s4 + $0xd0] sm:$0xff]
  %v831 = vld [vmem:[%s4 + $0xd8] sm:$0xff]
  %v832 = vld [vmem:[%s4 + $0xe0] sm:$0xff]
  %v833 = vld [vmem:[%s4 + $0xe8] sm:$0xff]
  %v834 = vld [vmem:[%s4 + $0xf0] sm:$0xff]
  %v835 = vld [vmem:[%s4 + $0xf8] sm:$0xff]
  %v836 = vld [vmem:[%s4 + $0x100] sm:$0xff]
  %v837 = vld [vmem:[%s4 + $0x108] sm:$0xff]
  %v838 = vld [vmem:[%s4 + $0x110] sm:$0xff]
  %v839 = vld [vmem:[%s4 + $0x118] sm:$0xff]
  %v840 = vld [vmem:[%s4 + $0x120] sm:$0xff]
  %v841 = vld [vmem:[%s4 + $0x128] sm:$0xff]
  %v842 = vld [vmem:[%s4 + $0x130] sm:$0xff]
  %v843 = vld [vmem:[%s4 + $0x138] sm:$0xff]
  %v844 = vld [vmem:[%s4 + $0x140] sm:$0xff]
  %v845 = vld [vmem:[%s4 + $0x148] sm:$0xff]
  %v846 = vld [vmem:[%s4 + $0x150] sm:$0xff]
  %v847 = vld [vmem:[%s4 + $0x158] sm:$0xff]
  %v848 = vld [vmem:[%s4 + $0x160] sm:$0xff]
  %v849 = vld [vmem:[%s4 + $0x168] sm:$0xff]
  %v850 = vld [vmem:[%s4 + $0x170] sm:$0xff]
  %v851 = vld [vmem:[%s4 + $0x178] sm:$0xff]
  %v852 = vld [vmem:[%s4 + $0x180] sm:$0xff]
  %v853 = vld [vmem:[%s4 + $0x188] sm:$0xff]
  %v854 = vld [vmem:[%s4 + $0x190] sm:$0xff]
  %v855 = vld [vmem:[%s4 + $0x198] sm:$0xff]
  %v856 = vld [vmem:[%s4 + $0x1a0] sm:$0xff]
  %v857 = vld [vmem:[%s4 + $0x1a8] sm:$0xff]
  %v858 = vld [vmem:[%s4 + $0x1b0] sm:$0xff]
  %v859 = vld [vmem:[%s4 + $0x1b8] sm:$0xff]
  %v860 = vld [vmem:[%s4 + $0x1c0] sm:$0xff]
  %v861 = vld [vmem:[%s4 + $0x1c8] sm:$0xff]
  %v862 = vld [vmem:[%s4 + $0x1d0] sm:$0xff]
  %v863 = vld [vmem:[%s4 + $0x1d8] sm:$0xff]
  %v864 = vld [vmem:[%s4 + $0x1e0] sm:$0xff]
  %v865 = vld [vmem:[%s4 + $0x1e8] sm:$0xff]
  %v866 = vld [vmem:[%s4 + $0x1f0] sm:$0xff]
  %v867 = vld [vmem:[%s4 + $0x1f8] sm:$0xff]
  %v868 = vld [vmem:[%s4 + $0x200] sm:$0xff]
  %v869 = vld [vmem:[%s4 + $0x208] sm:$0xff]
  %v870 = vld [vmem:[%s4 + $0x210] sm:$0xff]
  %v871 = vld [vmem:[%s4 + $0x218] sm:$0xff]
  %v872 = vld [vmem:[%s4 + $0x220] sm:$0xff]
  %v873 = vld [vmem:[%s4 + $0x228] sm:$0xff]
  %v874 = vld [vmem:[%s4 + $0x230] sm:$0xff]
  %v875 = vld [vmem:[%s4 + $0x238] sm:$0xff]
  %v876 = vld [vmem:[%s4 + $0x240] sm:$0xff]
  %v877 = vld [vmem:[%s4 + $0x248] sm:$0xff]
  %v878 = vld [vmem:[%s4 + $0x250] sm:$0xff]
  %v879 = vld [vmem:[%s4 + $0x258] sm:$0xff]
  %v880 = vld [vmem:[%s4 + $0x260] sm:$0xff]
  %v881 = vld [vmem:[%s4 + $0x268] sm:$0xff]
  %v882 = vld [vmem:[%s4 + $0x270] sm:$0xff]
  %v883 = vld [vmem:[%s4 + $0x278] sm:$0xff]
  %v884 = vld [vmem:[%s4 + $0x280] sm:$0xff]
  %v885 = vld [vmem:[%s4 + $0x288] sm:$0xff]
  %v886 = vld [vmem:[%s4 + $0x290] sm:$0xff]
  %v887 = vld [vmem:[%s4 + $0x298] sm:$0xff]
  %v888 = vld [vmem:[%s4 + $0x2a0] sm:$0xff]
  %v889 = vld [vmem:[%s4 + $0x2a8] sm:$0xff]
  %v890 = vld [vmem:[%s4 + $0x2b0] sm:$0xff]
  %v891 = vld [vmem:[%s4 + $0x2b8] sm:$0xff]
  %v892 = vld [vmem:[%s4 + $0x2c0] sm:$0xff]
  %v893 = vld [vmem:[%s4 + $0x2c8] sm:$0xff]
  %v894 = vld [vmem:[%s4 + $0x2d0] sm:$0xff]
  %v895 = vld [vmem:[%s4 + $0x2d8] sm:$0xff]
  %v896 = vld [vmem:[%s4 + $0x2e0] sm:$0xff]
  %v897 = vld [vmem:[%s4 + $0x2e8] sm:$0xff]
  %v898 = vld [vmem:[%s4 + $0x2f0] sm:$0xff]
  %v899 = vld [vmem:[%s4 + $0x2f8] sm:$0xff]
  %v900 = vld [vmem:[%s4 + $0x300] sm:$0xff]
  %v901 = vld [vmem:[%s4 + $0x308] sm:$0xff]
  %v902 = vld [vmem:[%s4 + $0x310] sm:$0xff]
  %v903 = vld [vmem:[%s4 + $0x318] sm:$0xff]
  %v904 = vld [vmem:[%s4 + $0x320] sm:$0xff]
  %v905 = vld [vmem:[%s4 + $0x328] sm:$0xff]
  %v906 = vld [vmem:[%s4 + $0x330] sm:$0xff]
  %v907 = vld [vmem:[%s4 + $0x338] sm:$0xff]
  %v908 = vld [vmem:[%s4 + $0x340] sm:$0xff]
  %v909 = vld [vmem:[%s4 + $0x348] sm:$0xff]
  %v910 = vld [vmem:[%s4 + $0x350] sm:$0xff]
  %v911 = vld [vmem:[%s4 + $0x358] sm:$0xff]
  %v912 = vld [vmem:[%s4 + $0x360] sm:$0xff]
  %v913 = vld [vmem:[%s4 + $0x368] sm:$0xff]
  %v914 = vld [vmem:[%s4 + $0x370] sm:$0xff]
  %v915 = vld [vmem:[%s4 + $0x378] sm:$0xff]
  %v916 = vld [vmem:[%s4 + $0x380] sm:$0xff]
  %v917 = vld [vmem:[%s4 + $0x388] sm:$0xff]
  %v918 = vld [vmem:[%s4 + $0x390] sm:$0xff]
  %v919 = vld [vmem:[%s4 + $0x398] sm:$0xff]
  %v920 = vld [vmem:[%s4 + $0x3a0] sm:$0xff]
  %v921 = vld [vmem:[%s4 + $0x3a8] sm:$0xff]
  %v922 = vld [vmem:[%s4 + $0x3b0] sm:$0xff]
  %v923 = vld [vmem:[%s4 + $0x3b8] sm:$0xff]
  %v924 = vld [vmem:[%s4 + $0x3c0] sm:$0xff]
  %v925 = vld [vmem:[%s4 + $0x3c8] sm:$0xff]
  %v926 = vld [vmem:[%s4 + $0x3d0] sm:$0xff]
  %v927 = vld [vmem:[%s4 + $0x3d8] sm:$0xff]
  %v928 = vld [vmem:[%s4 + $0x3e0] sm:$0xff]
  %v929 = vld [vmem:[%s4 + $0x3e8] sm:$0xff]
  %v930 = vld [vmem:[%s4 + $0x3f0] sm:$0xff]
  %v931 = vld [vmem:[%s4 + $0x3f8] sm:$0xff]
  %v1060 = vunpack.c.l.b16 %v804
  %v1061 = vunpack.c.h.b16 %v804
  %v1062 = vunpack.c.l.b16 %v805
  %v1063 = vunpack.c.h.b16 %v805
  %v1064 = vunpack.c.l.b16 %v806
  %v1065 = vunpack.c.h.b16 %v806
  %v1066 = vunpack.c.l.b16 %v807
  %v1067 = vunpack.c.h.b16 %v807
  %v1068 = vunpack.c.l.b16 %v808
  %v1069 = vunpack.c.h.b16 %v808
  %v1070 = vunpack.c.l.b16 %v809
  %v1071 = vunpack.c.h.b16 %v809
  %v1072 = vunpack.c.l.b16 %v810
  %v1073 = vunpack.c.h.b16 %v810
  %v1074 = vunpack.c.l.b16 %v811
  %v1075 = vunpack.c.h.b16 %v811
  %v1076 = vunpack.c.l.b16 %v812
  %v1077 = vunpack.c.h.b16 %v812
  %v1078 = vunpack.c.l.b16 %v813
  %v1079 = vunpack.c.h.b16 %v813
  %v1080 = vunpack.c.l.b16 %v814
  %v1081 = vunpack.c.h.b16 %v814
  %v1082 = vunpack.c.l.b16 %v815
  %v1083 = vunpack.c.h.b16 %v815
  %v1084 = vunpack.c.l.b16 %v816
  %v1085 = vunpack.c.h.b16 %v816
  %v1086 = vunpack.c.l.b16 %v817
  %v1087 = vunpack.c.h.b16 %v817
  %v1088 = vunpack.c.l.b16 %v818
  %v1089 = vunpack.c.h.b16 %v818
  %v1090 = vunpack.c.l.b16 %v819
  %v1091 = vunpack.c.h.b16 %v819
  %v1092 = vunpack.c.l.b16 %v820
  %v1093 = vunpack.c.h.b16 %v820
  %v1094 = vunpack.c.l.b16 %v821
  %v1095 = vunpack.c.h.b16 %v821
  %v1096 = vunpack.c.l.b16 %v822
  %v1097 = vunpack.c.h.b16 %v822
  %v1098 = vunpack.c.l.b16 %v823
  %v1099 = vunpack.c.h.b16 %v823
  %v1100 = vunpack.c.l.b16 %v824
  %v1101 = vunpack.c.h.b16 %v824
  %v1102 = vunpack.c.l.b16 %v825
  %v1103 = vunpack.c.h.b16 %v825
  %v1104 = vunpack.c.l.b16 %v826
  %v1105 = vunpack.c.h.b16 %v826
  %v1106 = vunpack.c.l.b16 %v827
  %v1107 = vunpack.c.h.b16 %v827
  %v1108 = vunpack.c.l.b16 %v828
  %v1109 = vunpack.c.h.b16 %v828
  %v1110 = vunpack.c.l.b16 %v829
  %v1111 = vunpack.c.h.b16 %v829
  %v1112 = vunpack.c.l.b16 %v830
  %v1113 = vunpack.c.h.b16 %v830
  %v1114 = vunpack.c.l.b16 %v831
  %v1115 = vunpack.c.h.b16 %v831
  %v1116 = vunpack.c.l.b16 %v832
  %v1117 = vunpack.c.h.b16 %v832
  %v1118 = vunpack.c.l.b16 %v833
  %v1119 = vunpack.c.h.b16 %v833
  %v1120 = vunpack.c.l.b16 %v834
  %v1121 = vunpack.c.h.b16 %v834
  %v1122 = vunpack.c.l.b16 %v835
  %v1123 = vunpack.c.h.b16 %v835
  %v1124 = vunpack.c.l.b16 %v836
  %v1125 = vunpack.c.h.b16 %v836
  %v1126 = vunpack.c.l.b16 %v837
  %v1127 = vunpack.c.h.b16 %v837
  %v1128 = vunpack.c.l.b16 %v838
  %v1129 = vunpack.c.h.b16 %v838
  %v1130 = vunpack.c.l.b16 %v839
  %v1131 = vunpack.c.h.b16 %v839
  %v1132 = vunpack.c.l.b16 %v840
  %v1133 = vunpack.c.h.b16 %v840
  %v1134 = vunpack.c.l.b16 %v841
  %v1135 = vunpack.c.h.b16 %v841
  %v1136 = vunpack.c.l.b16 %v842
  %v1137 = vunpack.c.h.b16 %v842
  %v1138 = vunpack.c.l.b16 %v843
  %v1139 = vunpack.c.h.b16 %v843
  %v1140 = vunpack.c.l.b16 %v844
  %v1141 = vunpack.c.h.b16 %v844
  %v1142 = vunpack.c.l.b16 %v845
  %v1143 = vunpack.c.h.b16 %v845
  %v1144 = vunpack.c.l.b16 %v846
  %v1145 = vunpack.c.h.b16 %v846
  %v1146 = vunpack.c.l.b16 %v847
  %v1147 = vunpack.c.h.b16 %v847
  %v1148 = vunpack.c.l.b16 %v848
  %v1149 = vunpack.c.h.b16 %v848
  %v1150 = vunpack.c.l.b16 %v849
  %v1151 = vunpack.c.h.b16 %v849
  %v1152 = vunpack.c.l.b16 %v850
  %v1153 = vunpack.c.h.b16 %v850
  %v1154 = vunpack.c.l.b16 %v851
  %v1155 = vunpack.c.h.b16 %v851
  %v1156 = vunpack.c.l.b16 %v852
  %v1157 = vunpack.c.h.b16 %v852
  %v1158 = vunpack.c.l.b16 %v853
  %v1159 = vunpack.c.h.b16 %v853
  %v1160 = vunpack.c.l.b16 %v854
  %v1161 = vunpack.c.h.b16 %v854
  %v1162 = vunpack.c.l.b16 %v855
  %v1163 = vunpack.c.h.b16 %v855
  %v1164 = vunpack.c.l.b16 %v856
  %v1165 = vunpack.c.h.b16 %v856
  %v1166 = vunpack.c.l.b16 %v857
  %v1167 = vunpack.c.h.b16 %v857
  %v1168 = vunpack.c.l.b16 %v858
  %v1169 = vunpack.c.h.b16 %v858
  %v1170 = vunpack.c.l.b16 %v859
  %v1171 = vunpack.c.h.b16 %v859
  %v1172 = vunpack.c.l.b16 %v860
  %v1173 = vunpack.c.h.b16 %v860
  %v1174 = vunpack.c.l.b16 %v861
  %v1175 = vunpack.c.h.b16 %v861
  %v1176 = vunpack.c.l.b16 %v862
  %v1177 = vunpack.c.h.b16 %v862
  %v1178 = vunpack.c.l.b16 %v863
  %v1179 = vunpack.c.h.b16 %v863
  %v1180 = vunpack.c.l.b16 %v864
  %v1181 = vunpack.c.h.b16 %v864
  %v1182 = vunpack.c.l.b16 %v865
  %v1183 = vunpack.c.h.b16 %v865
  %v1184 = vunpack.c.l.b16 %v866
  %v1185 = vunpack.c.h.b16 %v866
  %v1186 = vunpack.c.l.b16 %v867
  %v1187 = vunpack.c.h.b16 %v867
  %v1188 = vunpack.c.l.b16 %v868
  %v1189 = vunpack.c.h.b16 %v868
  %v1190 = vunpack.c.l.b16 %v869
  %v1191 = vunpack.c.h.b16 %v869
  %v1192 = vunpack.c.l.b16 %v870
  %v1193 = vunpack.c.h.b16 %v870
  %v1194 = vunpack.c.l.b16 %v871
  %v1195 = vunpack.c.h.b16 %v871
  %v1196 = vunpack.c.l.b16 %v872
  %v1197 = vunpack.c.h.b16 %v872
  %v1198 = vunpack.c.l.b16 %v873
  %v1199 = vunpack.c.h.b16 %v873
  %v1200 = vunpack.c.l.b16 %v874
  %v1201 = vunpack.c.h.b16 %v874
  %v1202 = vunpack.c.l.b16 %v875
  %v1203 = vunpack.c.h.b16 %v875
  %v1204 = vunpack.c.l.b16 %v876
  %v1205 = vunpack.c.h.b16 %v876
  %v1206 = vunpack.c.l.b16 %v877
  %v1207 = vunpack.c.h.b16 %v877
  %v1208 = vunpack.c.l.b16 %v878
  %v1209 = vunpack.c.h.b16 %v878
  %v1210 = vunpack.c.l.b16 %v879
  %v1211 = vunpack.c.h.b16 %v879
  %v1212 = vunpack.c.l.b16 %v880
  %v1213 = vunpack.c.h.b16 %v880
  %v1214 = vunpack.c.l.b16 %v881
  %v1215 = vunpack.c.h.b16 %v881
  %v1216 = vunpack.c.l.b16 %v882
  %v1217 = vunpack.c.h.b16 %v882
  %v1218 = vunpack.c.l.b16 %v883
  %v1219 = vunpack.c.h.b16 %v883
  %v1220 = vunpack.c.l.b16 %v884
  %v1221 = vunpack.c.h.b16 %v884
  %v1222 = vunpack.c.l.b16 %v885
  %v1223 = vunpack.c.h.b16 %v885
  %v1224 = vunpack.c.l.b16 %v886
  %v1225 = vunpack.c.h.b16 %v886
  %v1226 = vunpack.c.l.b16 %v887
  %v1227 = vunpack.c.h.b16 %v887
  %v1228 = vunpack.c.l.b16 %v888
  %v1229 = vunpack.c.h.b16 %v888
  %v1230 = vunpack.c.l.b16 %v889
  %v1231 = vunpack.c.h.b16 %v889
  %v1232 = vunpack.c.l.b16 %v890
  %v1233 = vunpack.c.h.b16 %v890
  %v1234 = vunpack.c.l.b16 %v891
  %v1235 = vunpack.c.h.b16 %v891
  %v1236 = vunpack.c.l.b16 %v892
  %v1237 = vunpack.c.h.b16 %v892
  %v1238 = vunpack.c.l.b16 %v893
  %v1239 = vunpack.c.h.b16 %v893
  %v1240 = vunpack.c.l.b16 %v894
  %v1241 = vunpack.c.h.b16 %v894
  %v1242 = vunpack.c.l.b16 %v895
  %v1243 = vunpack.c.h.b16 %v895
  %v1244 = vunpack.c.l.b16 %v896
  %v1245 = vunpack.c.h.b16 %v896
  %v1246 = vunpack.c.l.b16 %v897
  %v1247 = vunpack.c.h.b16 %v897
  %v1248 = vunpack.c.l.b16 %v898
  %v1249 = vunpack.c.h.b16 %v898
  %v1250 = vunpack.c.l.b16 %v899
  %v1251 = vunpack.c.h.b16 %v899
  %v1252 = vunpack.c.l.b16 %v900
  %v1253 = vunpack.c.h.b16 %v900
  %v1254 = vunpack.c.l.b16 %v901
  %v1255 = vunpack.c.h.b16 %v901
  %v1256 = vunpack.c.l.b16 %v902
  %v1257 = vunpack.c.h.b16 %v902
  %v1258 = vunpack.c.l.b16 %v903
  %v1259 = vunpack.c.h.b16 %v903
  %v1260 = vunpack.c.l.b16 %v904
  %v1261 = vunpack.c.h.b16 %v904
  %v1262 = vunpack.c.l.b16 %v905
  %v1263 = vunpack.c.h.b16 %v905
  %v1264 = vunpack.c.l.b16 %v906
  %v1265 = vunpack.c.h.b16 %v906
  %v1266 = vunpack.c.l.b16 %v907
  %v1267 = vunpack.c.h.b16 %v907
  %v1268 = vunpack.c.l.b16 %v908
  %v1269 = vunpack.c.h.b16 %v908
  %v1270 = vunpack.c.l.b16 %v909
  %v1271 = vunpack.c.h.b16 %v909
  %v1272 = vunpack.c.l.b16 %v910
  %v1273 = vunpack.c.h.b16 %v910
  %v1274 = vunpack.c.l.b16 %v911
  %v1275 = vunpack.c.h.b16 %v911
  %v1276 = vunpack.c.l.b16 %v912
  %v1277 = vunpack.c.h.b16 %v912
  %v1278 = vunpack.c.l.b16 %v913
  %v1279 = vunpack.c.h.b16 %v913
  %v1280 = vunpack.c.l.b16 %v914
  %v1281 = vunpack.c.h.b16 %v914
  %v1282 = vunpack.c.l.b16 %v915
  %v1283 = vunpack.c.h.b16 %v915
  %v1284 = vunpack.c.l.b16 %v916
  %v1285 = vunpack.c.h.b16 %v916
  %v1286 = vunpack.c.l.b16 %v917
  %v1287 = vunpack.c.h.b16 %v917
  %v1288 = vunpack.c.l.b16 %v918
  %v1289 = vunpack.c.h.b16 %v918
  %v1290 = vunpack.c.l.b16 %v919
  %v1291 = vunpack.c.h.b16 %v919
  %v1292 = vunpack.c.l.b16 %v920
  %v1293 = vunpack.c.h.b16 %v920
  %v1294 = vunpack.c.l.b16 %v921
  %v1295 = vunpack.c.h.b16 %v921
  %v1296 = vunpack.c.l.b16 %v922
  %v1297 = vunpack.c.h.b16 %v922
  %v1298 = vunpack.c.l.b16 %v923
  %v1299 = vunpack.c.h.b16 %v923
  %v1300 = vunpack.c.l.b16 %v924
  %v1301 = vunpack.c.h.b16 %v924
  %v1302 = vunpack.c.l.b16 %v925
  %v1303 = vunpack.c.h.b16 %v925
  %v1304 = vunpack.c.l.b16 %v926
  %v1305 = vunpack.c.h.b16 %v926
  %v1306 = vunpack.c.l.b16 %v927
  %v1307 = vunpack.c.h.b16 %v927
  %v1308 = vunpack.c.l.b16 %v928
  %v1309 = vunpack.c.h.b16 %v928
  %v1310 = vunpack.c.l.b16 %v929
  %v1311 = vunpack.c.h.b16 %v929
  %v1312 = vunpack.c.l.b16 %v930
  %v1313 = vunpack.c.h.b16 %v930
  %v1314 = vunpack.c.l.b16 %v931
  %v1315 = vunpack.c.h.b16 %v931
  %v1316 = vpack.c.b16 %v1064, %v1060
  %v1317 = vpack.c.b16 %v1065, %v1061
  %v1318 = vpack.c.b16 %v1066, %v1062
  %v1319 = vpack.c.b16 %v1067, %v1063
  %v1320 = vpack.c.b16 %v1072, %v1068
  %v1321 = vpack.c.b16 %v1073, %v1069
  %v1322 = vpack.c.b16 %v1074, %v1070
  %v1323 = vpack.c.b16 %v1075, %v1071
  %v1324 = vpack.c.b16 %v1080, %v1076
  %v1325 = vpack.c.b16 %v1081, %v1077
  %v1326 = vpack.c.b16 %v1082, %v1078
  %v1327 = vpack.c.b16 %v1083, %v1079
  %v1328 = vpack.c.b16 %v1088, %v1084
  %v1329 = vpack.c.b16 %v1089, %v1085
  %v1330 = vpack.c.b16 %v1090, %v1086
  %v1331 = vpack.c.b16 %v1091, %v1087
  %v1332 = vpack.c.b16 %v1096, %v1092
  %v1333 = vpack.c.b16 %v1097, %v1093
  %v1334 = vpack.c.b16 %v1098, %v1094
  %v1335 = vpack.c.b16 %v1099, %v1095
  %v1336 = vpack.c.b16 %v1104, %v1100
  %v1337 = vpack.c.b16 %v1105, %v1101
  %v1338 = vpack.c.b16 %v1106, %v1102
  %v1339 = vpack.c.b16 %v1107, %v1103
  %v1340 = vpack.c.b16 %v1112, %v1108
  %v1341 = vpack.c.b16 %v1113, %v1109
  %v1342 = vpack.c.b16 %v1114, %v1110
  %v1343 = vpack.c.b16 %v1115, %v1111
  %v1344 = vpack.c.b16 %v1120, %v1116
  %v1345 = vpack.c.b16 %v1121, %v1117
  %v1346 = vpack.c.b16 %v1122, %v1118
  %v1347 = vpack.c.b16 %v1123, %v1119
  %v1348 = vpack.c.b16 %v1128, %v1124
  %v1349 = vpack.c.b16 %v1129, %v1125
  %v1350 = vpack.c.b16 %v1130, %v1126
  %v1351 = vpack.c.b16 %v1131, %v1127
  %v1352 = vpack.c.b16 %v1136, %v1132
  %v1353 = vpack.c.b16 %v1137, %v1133
  %v1354 = vpack.c.b16 %v1138, %v1134
  %v1355 = vpack.c.b16 %v1139, %v1135
  %v1356 = vpack.c.b16 %v1144, %v1140
  %v1357 = vpack.c.b16 %v1145, %v1141
  %v1358 = vpack.c.b16 %v1146, %v1142
  %v1359 = vpack.c.b16 %v1147, %v1143
  %v1360 = vpack.c.b16 %v1152, %v1148
  %v1361 = vpack.c.b16 %v1153, %v1149
  %v1362 = vpack.c.b16 %v1154, %v1150
  %v1363 = vpack.c.b16 %v1155, %v1151
  %v1364 = vpack.c.b16 %v1160, %v1156
  %v1365 = vpack.c.b16 %v1161, %v1157
  %v1366 = vpack.c.b16 %v1162, %v1158
  %v1367 = vpack.c.b16 %v1163, %v1159
  %v1368 = vpack.c.b16 %v1168, %v1164
  %v1369 = vpack.c.b16 %v1169, %v1165
  %v1370 = vpack.c.b16 %v1170, %v1166
  %v1371 = vpack.c.b16 %v1171, %v1167
  %v1372 = vpack.c.b16 %v1176, %v1172
  %v1373 = vpack.c.b16 %v1177, %v1173
  %v1374 = vpack.c.b16 %v1178, %v1174
  %v1375 = vpack.c.b16 %v1179, %v1175
  %v1376 = vpack.c.b16 %v1184, %v1180
  %v1377 = vpack.c.b16 %v1185, %v1181
  %v1378 = vpack.c.b16 %v1186, %v1182
  %v1379 = vpack.c.b16 %v1187, %v1183
  %v1380 = vpack.c.b16 %v1192, %v1188
  %v1381 = vpack.c.b16 %v1193, %v1189
  %v1382 = vpack.c.b16 %v1194, %v1190
  %v1383 = vpack.c.b16 %v1195, %v1191
  %v1384 = vpack.c.b16 %v1200, %v1196
  %v1385 = vpack.c.b16 %v1201, %v1197
  %v1386 = vpack.c.b16 %v1202, %v1198
  %v1387 = vpack.c.b16 %v1203, %v1199
  %v1388 = vpack.c.b16 %v1208, %v1204
  %v1389 = vpack.c.b16 %v1209, %v1205
  %v1390 = vpack.c.b16 %v1210, %v1206
  %v1391 = vpack.c.b16 %v1211, %v1207
  %v1392 = vpack.c.b16 %v1216, %v1212
  %v1393 = vpack.c.b16 %v1217, %v1213
  %v1394 = vpack.c.b16 %v1218, %v1214
  %v1395 = vpack.c.b16 %v1219, %v1215
  %v1396 = vpack.c.b16 %v1224, %v1220
  %v1397 = vpack.c.b16 %v1225, %v1221
  %v1398 = vpack.c.b16 %v1226, %v1222
  %v1399 = vpack.c.b16 %v1227, %v1223
  %v1400 = vpack.c.b16 %v1232, %v1228
  %v1401 = vpack.c.b16 %v1233, %v1229
  %v1402 = vpack.c.b16 %v1234, %v1230
  %v1403 = vpack.c.b16 %v1235, %v1231
  %v1404 = vpack.c.b16 %v1240, %v1236
  %v1405 = vpack.c.b16 %v1241, %v1237
  %v1406 = vpack.c.b16 %v1242, %v1238
  %v1407 = vpack.c.b16 %v1243, %v1239
  %v1408 = vpack.c.b16 %v1248, %v1244
  %v1409 = vpack.c.b16 %v1249, %v1245
  %v1410 = vpack.c.b16 %v1250, %v1246
  %v1411 = vpack.c.b16 %v1251, %v1247
  %v1412 = vpack.c.b16 %v1256, %v1252
  %v1413 = vpack.c.b16 %v1257, %v1253
  %v1414 = vpack.c.b16 %v1258, %v1254
  %v1415 = vpack.c.b16 %v1259, %v1255
  %v1416 = vpack.c.b16 %v1264, %v1260
  %v1417 = vpack.c.b16 %v1265, %v1261
  %v1418 = vpack.c.b16 %v1266, %v1262
  %v1419 = vpack.c.b16 %v1267, %v1263
  %v1420 = vpack.c.b16 %v1272, %v1268
  %v1421 = vpack.c.b16 %v1273, %v1269
  %v1422 = vpack.c.b16 %v1274, %v1270
  %v1423 = vpack.c.b16 %v1275, %v1271
  %v1424 = vpack.c.b16 %v1280, %v1276
  %v1425 = vpack.c.b16 %v1281, %v1277
  %v1426 = vpack.c.b16 %v1282, %v1278
  %v1427 = vpack.c.b16 %v1283, %v1279
  %v1428 = vpack.c.b16 %v1288, %v1284
  %v1429 = vpack.c.b16 %v1289, %v1285
  %v1430 = vpack.c.b16 %v1290, %v1286
  %v1431 = vpack.c.b16 %v1291, %v1287
  %v1432 = vpack.c.b16 %v1296, %v1292
  %v1433 = vpack.c.b16 %v1297, %v1293
  %v1434 = vpack.c.b16 %v1298, %v1294
  %v1435 = vpack.c.b16 %v1299, %v1295
  %v1436 = vpack.c.b16 %v1304, %v1300
  %v1437 = vpack.c.b16 %v1305, %v1301
  %v1438 = vpack.c.b16 %v1306, %v1302
  %v1439 = vpack.c.b16 %v1307, %v1303
  %v1440 = vpack.c.b16 %v1312, %v1308
  %v1441 = vpack.c.b16 %v1313, %v1309
  %v1442 = vpack.c.b16 %v1314, %v1310
  %v1443 = vpack.c.b16 %v1315, %v1311
  %1572 = vmatprep.subr.bf16.mxu0 %v1317
  %1573 = vmatpush1.bf16.msra.mxu0 %v1316
  %1574 = vmatprep.subr.bf16.mxu0 %v1321
  %1575 = vmatpush1.bf16.msra.mxu0 %v1320
  %1576 = vmatprep.subr.bf16.mxu0 %v1325
  %1577 = vmatpush1.bf16.msra.mxu0 %v1324
  %1578 = vmatprep.subr.bf16.mxu0 %v1329
  %1579 = vmatpush1.bf16.msra.mxu0 %v1328
  %1580 = vmatprep.subr.bf16.mxu0 %v1333
  %1581 = vmatpush1.bf16.msra.mxu0 %v1332
  %1582 = vmatprep.subr.bf16.mxu0 %v1337
  %1583 = vmatpush1.bf16.msra.mxu0 %v1336
  %1584 = vmatprep.subr.bf16.mxu0 %v1341
  %1585 = vmatpush1.bf16.msra.mxu0 %v1340
  %1586 = vmatprep.subr.bf16.mxu0 %v1345
  %1587 = vmatpush1.bf16.msra.mxu0 %v1344
  %1588 = vmatprep.subr.bf16.mxu0 %v1349
  %1589 = vmatpush1.bf16.msra.mxu0 %v1348
  %1590 = vmatprep.subr.bf16.mxu0 %v1353
  %1591 = vmatpush1.bf16.msra.mxu0 %v1352
  %1592 = vmatprep.subr.bf16.mxu0 %v1357
  %1593 = vmatpush1.bf16.msra.mxu0 %v1356
  %1594 = vmatprep.subr.bf16.mxu0 %v1361
  %1595 = vmatpush1.bf16.msra.mxu0 %v1360
  %1596 = vmatprep.subr.bf16.mxu0 %v1365
  %1597 = vmatpush1.bf16.msra.mxu0 %v1364
  %1598 = vmatprep.subr.bf16.mxu0 %v1369
  %1599 = vmatpush1.bf16.msra.mxu0 %v1368
  %1600 = vmatprep.subr.bf16.mxu0 %v1373
  %1601 = vmatpush1.bf16.msra.mxu0 %v1372
  %1602 = vmatprep.subr.bf16.mxu0 %v1377
  %1603 = vmatpush1.bf16.msra.mxu0 %v1376
  %1604 = vmatprep.mubr.bf16.mxu0 %v773
  %1605 = vmatmul.mubr.bf16.gmra.mrb[0].mxu0 %v772
  %v1606 = vpop.f32.mrb[0].mxu0
  %v1607 = vadd.f32 0.0, %v1606
  %v1608 = vpop.f32.mrb[0].mxu0
  %v1609 = vadd.f32 0.0, %v1608
  %v1610 = vpop.f32.mrb[0].mxu0
  %v1611 = vadd.f32 0.0, %v1610
  %v1612 = vpop.f32.mrb[0].mxu0
  %v1613 = vadd.f32 0.0, %v1612
  %1614 = vmatprep.mubr.bf16.mxu0 %v777
  %1615 = vmatmul.mubr.bf16.gmra.mrb[0].mxu0 %v776
  %v1616 = vpop.f32.mrb[0].mxu0
  %v1617 = vadd.f32 0.0, %v1616
  %v1618 = vpop.f32.mrb[0].mxu0
  %v1619 = vadd.f32 0.0, %v1618
  %v1620 = vpop.f32.mrb[0].mxu0
  %v1621 = vadd.f32 0.0, %v1620
  %v1622 = vpop.f32.mrb[0].mxu0
  %v1623 = vadd.f32 0.0, %v1622
  %1624 = vmatprep.mubr.bf16.mxu0 %v781
  %1625 = vmatmul.mubr.bf16.gmra.mrb[0].mxu0 %v780
  %v1626 = vpop.f32.mrb[0].mxu0
  %v1627 = vadd.f32 0.0, %v1626
  %v1628 = vpop.f32.mrb[0].mxu0
  %v1629 = vadd.f32 0.0, %v1628
  %v1630 = vpop.f32.mrb[0].mxu0
  %v1631 = vadd.f32 0.0, %v1630
  %v1632 = vpop.f32.mrb[0].mxu0
  %v1633 = vadd.f32 0.0, %v1632
  %1634 = vmatprep.mubr.bf16.mxu0 %v785
  %1635 = vmatmul.mubr.bf16.gmra.mrb[0].mxu0 %v784
  %v1636 = vpop.f32.mrb[0].mxu0
  %v1637 = vadd.f32 0.0, %v1636
  %v1638 = vpop.f32.mrb[0].mxu0
  %v1639 = vadd.f32 0.0, %v1638
  %v1640 = vpop.f32.mrb[0].mxu0
  %v1641 = vadd.f32 0.0, %v1640
  %v1642 = vpop.f32.mrb[0].mxu0
  %v1643 = vadd.f32 0.0, %v1642
  %1644 = vmatprep.mubr.bf16.mxu0 %v789
  %1645 = vmatmul.mubr.bf16.gmra.mrb[0].mxu0 %v788
  %v1646 = vpop.f32.mrb[0].mxu0
  %v1647 = vadd.f32 0.0, %v1646
  %v1648 = vpop.f32.mrb[0].mxu0
  %v1649 = vadd.f32 0.0, %v1648
  %v1650 = vpop.f32.mrb[0].mxu0
  %v1651 = vadd.f32 0.0, %v1650
  %v1652 = vpop.f32.mrb[0].mxu0
  %v1653 = vadd.f32 0.0, %v1652
  %1654 = vmatprep.mubr.bf16.mxu0 %v793
  %1655 = vmatmul.mubr.bf16.gmra.mrb[0].mxu0 %v792
  %v1656 = vpop.f32.mrb[0].mxu0
  %v1657 = vadd.f32 0.0, %v1656
  %v1658 = vpop.f32.mrb[0].mxu0
  %v1659 = vadd.f32 0.0, %v1658
  %v1660 = vpop.f32.mrb[0].mxu0
  %v1661 = vadd.f32 0.0, %v1660
  %v1662 = vpop.f32.mrb[0].mxu0
  %v1663 = vadd.f32 0.0, %v1662
  %1664 = vmatprep.mubr.bf16.mxu0 %v797
  %1665 = vmatmul.mubr.bf16.gmra.mrb[0].mxu0 %v796
  %v1666 = vpop.f32.mrb[0].mxu0
  %v1667 = vadd.f32 0.0, %v1666
  %v1668 = vpop.f32.mrb[0].mxu0
  %v1669 = vadd.f32 0.0, %v1668
  %v1670 = vpop.f32.mrb[0].mxu0
  %v1671 = vadd.f32 0.0, %v1670
  %v1672 = vpop.f32.mrb[0].mxu0
  %v1673 = vadd.f32 0.0, %v1672
  %1674 = vmatprep.mubr.bf16.mxu0 %v801
  %1675 = vmatmul.mubr.bf16.gmra.mrb[0].mxu0 %v800
  %v1676 = vpop.f32.mrb[0].mxu0
  %v1677 = vadd.f32 0.0, %v1676
  %v1678 = vpop.f32.mrb[0].mxu0
  %v1679 = vadd.f32 0.0, %v1678
  %v1680 = vpop.f32.mrb[0].mxu0
  %v1681 = vadd.f32 0.0, %v1680
  %v1682 = vpop.f32.mrb[0].mxu0
  %v1683 = vadd.f32 0.0, %v1682
  %1684 = vdwg.mxu0
  %1685 = vmatprep.subr.bf16.mxu0 %v1381
  %1686 = vmatpush1.bf16.msra.mxu0 %v1380
  %1687 = vmatprep.subr.bf16.mxu0 %v1385
  %1688 = vmatpush1.bf16.msra.mxu0 %v1384
  %1689 = vmatprep.subr.bf16.mxu0 %v1389
  %1690 = vmatpush1.bf16.msra.mxu0 %v1388
  %1691 = vmatprep.subr.bf16.mxu0 %v1393
  %1692 = vmatpush1.bf16.msra.mxu0 %v1392
  %1693 = vmatprep.subr.bf16.mxu0 %v1397
  %1694 = vmatpush1.bf16.msra.mxu0 %v1396
  %1695 = vmatprep.subr.bf16.mxu0 %v1401
  %1696 = vmatpush1.bf16.msra.mxu0 %v1400
  %1697 = vmatprep.subr.bf16.mxu0 %v1405
  %1698 = vmatpush1.bf16.msra.mxu0 %v1404
  %1699 = vmatprep.subr.bf16.mxu0 %v1409
  %1700 = vmatpush1.bf16.msra.mxu0 %v1408
  %1701 = vmatprep.subr.bf16.mxu0 %v1413
  %1702 = vmatpush1.bf16.msra.mxu0 %v1412
  %1703 = vmatprep.subr.bf16.mxu0 %v1417
  %1704 = vmatpush1.bf16.msra.mxu0 %v1416
  %1705 = vmatprep.subr.bf16.mxu0 %v1421
  %1706 = vmatpush1.bf16.msra.mxu0 %v1420
  %1707 = vmatprep.subr.bf16.mxu0 %v1425
  %1708 = vmatpush1.bf16.msra.mxu0 %v1424
  %1709 = vmatprep.subr.bf16.mxu0 %v1429
  %1710 = vmatpush1.bf16.msra.mxu0 %v1428
  %1711 = vmatprep.subr.bf16.mxu0 %v1433
  %1712 = vmatpush1.bf16.msra.mxu0 %v1432
  %1713 = vmatprep.subr.bf16.mxu0 %v1437
  %1714 = vmatpush1.bf16.msra.mxu0 %v1436
  %1715 = vmatprep.subr.bf16.mxu0 %v1441
  %1716 = vmatpush1.bf16.msra.mxu0 %v1440
  %1717 = vmatprep.mubr.bf16.mxu0 %v775
  %1718 = vmatmul.mubr.bf16.gmra.mrb[0].mxu0 %v774
  %v1719 = vpop.f32.mrb[0].mxu0
  %v1720 = vadd.f32 %v1607, %v1719
  %v1721 = vpop.f32.mrb[0].mxu0
  %v1722 = vadd.f32 %v1609, %v1721
  %v1723 = vpop.f32.mrb[0].mxu0
  %v1724 = vadd.f32 %v1611, %v1723
  %v1725 = vpop.f32.mrb[0].mxu0
  %v1726 = vadd.f32 %v1613, %v1725
  %1727 = vmatprep.mubr.bf16.mxu0 %v779
  %1728 = vmatmul.mubr.bf16.gmra.mrb[0].mxu0 %v778
  %v1729 = vpop.f32.mrb[0].mxu0
  %v1730 = vadd.f32 %v1617, %v1729
  %v1731 = vpop.f32.mrb[0].mxu0
  %v1732 = vadd.f32 %v1619, %v1731
  %v1733 = vpop.f32.mrb[0].mxu0
  %v1734 = vadd.f32 %v1621, %v1733
  %v1735 = vpop.f32.mrb[0].mxu0
  %v1736 = vadd.f32 %v1623, %v1735
  %1737 = vmatprep.mubr.bf16.mxu0 %v783
  %1738 = vmatmul.mubr.bf16.gmra.mrb[0].mxu0 %v782
  %v1739 = vpop.f32.mrb[0].mxu0
  %v1740 = vadd.f32 %v1627, %v1739
  %v1741 = vpop.f32.mrb[0].mxu0
  %v1742 = vadd.f32 %v1629, %v1741
  %v1743 = vpop.f32.mrb[0].mxu0
  %v1744 = vadd.f32 %v1631, %v1743
  %v1745 = vpop.f32.mrb[0].mxu0
  %v1746 = vadd.f32 %v1633, %v1745
  %1747 = vmatprep.mubr.bf16.mxu0 %v787
  %1748 = vmatmul.mubr.bf16.gmra.mrb[0].mxu0 %v786
  %v1749 = vpop.f32.mrb[0].mxu0
  %v1750 = vadd.f32 %v1637, %v1749
  %v1751 = vpop.f32.mrb[0].mxu0
  %v1752 = vadd.f32 %v1639, %v1751
  %v1753 = vpop.f32.mrb[0].mxu0
  %v1754 = vadd.f32 %v1641, %v1753
  %v1755 = vpop.f32.mrb[0].mxu0
  %v1756 = vadd.f32 %v1643, %v1755
  %1757 = vmatprep.mubr.bf16.mxu0 %v791
  %1758 = vmatmul.mubr.bf16.gmra.mrb[0].mxu0 %v790
  %v1759 = vpop.f32.mrb[0].mxu0
  %v1760 = vadd.f32 %v1647, %v1759
  %v1761 = vpop.f32.mrb[0].mxu0
  %v1762 = vadd.f32 %v1649, %v1761
  %v1763 = vpop.f32.mrb[0].mxu0
  %v1764 = vadd.f32 %v1651, %v1763
  %v1765 = vpop.f32.mrb[0].mxu0
  %v1766 = vadd.f32 %v1653, %v1765
  %1767 = vmatprep.mubr.bf16.mxu0 %v795
  %1768 = vmatmul.mubr.bf16.gmra.mrb[0].mxu0 %v794
  %v1769 = vpop.f32.mrb[0].mxu0
  %v1770 = vadd.f32 %v1657, %v1769
  %v1771 = vpop.f32.mrb[0].mxu0
  %v1772 = vadd.f32 %v1659, %v1771
  %v1773 = vpop.f32.mrb[0].mxu0
  %v1774 = vadd.f32 %v1661, %v1773
  %v1775 = vpop.f32.mrb[0].mxu0
  %v1776 = vadd.f32 %v1663, %v1775
  %1777 = vmatprep.mubr.bf16.mxu0 %v799
  %1778 = vmatmul.mubr.bf16.gmra.mrb[0].mxu0 %v798
  %v1779 = vpop.f32.mrb[0].mxu0
  %v1780 = vadd.f32 %v1667, %v1779
  %v1781 = vpop.f32.mrb[0].mxu0
  %v1782 = vadd.f32 %v1669, %v1781
  %v1783 = vpop.f32.mrb[0].mxu0
  %v1784 = vadd.f32 %v1671, %v1783
  %v1785 = vpop.f32.mrb[0].mxu0
  %v1786 = vadd.f32 %v1673, %v1785
  %1787 = vmatprep.mubr.bf16.mxu0 %v803
  %1788 = vmatmul.mubr.bf16.gmra.mrb[0].mxu0 %v802
  %v1789 = vpop.f32.mrb[0].mxu0
  %v1790 = vadd.f32 %v1677, %v1789
  %v1791 = vpop.f32.mrb[0].mxu0
  %v1792 = vadd.f32 %v1679, %v1791
  %v1793 = vpop.f32.mrb[0].mxu0
  %v1794 = vadd.f32 %v1681, %v1793
  %v1795 = vpop.f32.mrb[0].mxu0
  %v1796 = vadd.f32 %v1683, %v1795
  %1797 = vdwg.mxu0
  %1798 = vmatprep.subr.bf16.mxu0 %v1319
  %1799 = vmatpush1.bf16.msra.mxu0 %v1318
  %1800 = vmatprep.subr.bf16.mxu0 %v1323
  %1801 = vmatpush1.bf16.msra.mxu0 %v1322
  %1802 = vmatprep.subr.bf16.mxu0 %v1327
  %1803 = vmatpush1.bf16.msra.mxu0 %v1326
  %1804 = vmatprep.subr.bf16.mxu0 %v1331
  %1805 = vmatpush1.bf16.msra.mxu0 %v1330
  %1806 = vmatprep.subr.bf16.mxu0 %v1335
  %1807 = vmatpush1.bf16.msra.mxu0 %v1334
  %1808 = vmatprep.subr.bf16.mxu0 %v1339
  %1809 = vmatpush1.bf16.msra.mxu0 %v1338
  %1810 = vmatprep.subr.bf16.mxu0 %v1343
  %1811 = vmatpush1.bf16.msra.mxu0 %v1342
  %1812 = vmatprep.subr.bf16.mxu0 %v1347
  %1813 = vmatpush1.bf16.msra.mxu0 %v1346
  %1814 = vmatprep.subr.bf16.mxu0 %v1351
  %1815 = vmatpush1.bf16.msra.mxu0 %v1350
  %1816 = vmatprep.subr.bf16.mxu0 %v1355
  %1817 = vmatpush1.bf16.msra.mxu0 %v1354
  %1818 = vmatprep.subr.bf16.mxu0 %v1359
  %1819 = vmatpush1.bf16.msra.mxu0 %v1358
  %1820 = vmatprep.subr.bf16.mxu0 %v1363
  %1821 = vmatpush1.bf16.msra.mxu0 %v1362
  %1822 = vmatprep.subr.bf16.mxu0 %v1367
  %1823 = vmatpush1.bf16.msra.mxu0 %v1366
  %1824 = vmatprep.subr.bf16.mxu0 %v1371
  %1825 = vmatpush1.bf16.msra.mxu0 %v1370
  %1826 = vmatprep.subr.bf16.mxu0 %v1375
  %1827 = vmatpush1.bf16.msra.mxu0 %v1374
  %1828 = vmatprep.subr.bf16.mxu0 %v1379
  %1829 = vmatpush1.bf16.msra.mxu0 %v1378
  %1830 = vmatprep.mubr.bf16.mxu0 %v773
  %1831 = vmatmul.mubr.bf16.gmra.mrb[0].mxu0 %v772
  %v1832 = vpop.f32.mrb[0].mxu0
  %v1833 = vadd.f32 0.0, %v1832
  %v1834 = vpop.f32.mrb[0].mxu0
  %v1835 = vadd.f32 0.0, %v1834
  %v1836 = vpop.f32.mrb[0].mxu0
  %v1837 = vadd.f32 0.0, %v1836
  %v1838 = vpop.f32.mrb[0].mxu0
  %v1839 = vadd.f32 0.0, %v1838
  %1840 = vmatprep.mubr.bf16.mxu0 %v777
  %1841 = vmatmul.mubr.bf16.gmra.mrb[0].mxu0 %v776
  %v1842 = vpop.f32.mrb[0].mxu0
  %v1843 = vadd.f32 0.0, %v1842
  %v1844 = vpop.f32.mrb[0].mxu0
  %v1845 = vadd.f32 0.0, %v1844
  %v1846 = vpop.f32.mrb[0].mxu0
  %v1847 = vadd.f32 0.0, %v1846
  %v1848 = vpop.f32.mrb[0].mxu0
  %v1849 = vadd.f32 0.0, %v1848
  %1850 = vmatprep.mubr.bf16.mxu0 %v781
  %1851 = vmatmul.mubr.bf16.gmra.mrb[0].mxu0 %v780
  %v1852 = vpop.f32.mrb[0].mxu0
  %v1853 = vadd.f32 0.0, %v1852
  %v1854 = vpop.f32.mrb[0].mxu0
  %v1855 = vadd.f32 0.0, %v1854
  %v1856 = vpop.f32.mrb[0].mxu0
  %v1857 = vadd.f32 0.0, %v1856
  %v1858 = vpop.f32.mrb[0].mxu0
  %v1859 = vadd.f32 0.0, %v1858
  %1860 = vmatprep.mubr.bf16.mxu0 %v785
  %1861 = vmatmul.mubr.bf16.gmra.mrb[0].mxu0 %v784
  %v1862 = vpop.f32.mrb[0].mxu0
  %v1863 = vadd.f32 0.0, %v1862
  %v1864 = vpop.f32.mrb[0].mxu0
  %v1865 = vadd.f32 0.0, %v1864
  %v1866 = vpop.f32.mrb[0].mxu0
  %v1867 = vadd.f32 0.0, %v1866
  %v1868 = vpop.f32.mrb[0].mxu0
  %v1869 = vadd.f32 0.0, %v1868
  %1870 = vmatprep.mubr.bf16.mxu0 %v789
  %1871 = vmatmul.mubr.bf16.gmra.mrb[0].mxu0 %v788
  %v1872 = vpop.f32.mrb[0].mxu0
  %v1873 = vadd.f32 0.0, %v1872
  %v1874 = vpop.f32.mrb[0].mxu0
  %v1875 = vadd.f32 0.0, %v1874
  %v1876 = vpop.f32.mrb[0].mxu0
  %v1877 = vadd.f32 0.0, %v1876
  %v1878 = vpop.f32.mrb[0].mxu0
  %v1879 = vadd.f32 0.0, %v1878
  %1880 = vmatprep.mubr.bf16.mxu0 %v793
  %1881 = vmatmul.mubr.bf16.gmra.mrb[0].mxu0 %v792
  %v1882 = vpop.f32.mrb[0].mxu0
  %v1883 = vadd.f32 0.0, %v1882
  %v1884 = vpop.f32.mrb[0].mxu0
  %v1885 = vadd.f32 0.0, %v1884
  %v1886 = vpop.f32.mrb[0].mxu0
  %v1887 = vadd.f32 0.0, %v1886
  %v1888 = vpop.f32.mrb[0].mxu0
  %v1889 = vadd.f32 0.0, %v1888
  %1890 = vmatprep.mubr.bf16.mxu0 %v797
  %1891 = vmatmul.mubr.bf16.gmra.mrb[0].mxu0 %v796
  %v1892 = vpop.f32.mrb[0].mxu0
  %v1893 = vadd.f32 0.0, %v1892
  %v1894 = vpop.f32.mrb[0].mxu0
  %v1895 = vadd.f32 0.0, %v1894
  %v1896 = vpop.f32.mrb[0].mxu0
  %v1897 = vadd.f32 0.0, %v1896
  %v1898 = vpop.f32.mrb[0].mxu0
  %v1899 = vadd.f32 0.0, %v1898
  %1900 = vmatprep.mubr.bf16.mxu0 %v801
  %1901 = vmatmul.mubr.bf16.gmra.mrb[0].mxu0 %v800
  %v1902 = vpop.f32.mrb[0].mxu0
  %v1903 = vadd.f32 0.0, %v1902
  %v1904 = vpop.f32.mrb[0].mxu0
  %v1905 = vadd.f32 0.0, %v1904
  %v1906 = vpop.f32.mrb[0].mxu0
  %v1907 = vadd.f32 0.0, %v1906
  %v1908 = vpop.f32.mrb[0].mxu0
  %v1909 = vadd.f32 0.0, %v1908
  %1910 = vdwg.mxu0
  %1911 = vmatprep.subr.bf16.mxu0 %v1383
  %1912 = vmatpush1.bf16.msra.mxu0 %v1382
  %1913 = vmatprep.subr.bf16.mxu0 %v1387
  %1914 = vmatpush1.bf16.msra.mxu0 %v1386
  %1915 = vmatprep.subr.bf16.mxu0 %v1391
  %1916 = vmatpush1.bf16.msra.mxu0 %v1390
  %1917 = vmatprep.subr.bf16.mxu0 %v1395
  %1918 = vmatpush1.bf16.msra.mxu0 %v1394
  %1919 = vmatprep.subr.bf16.mxu0 %v1399
  %1920 = vmatpush1.bf16.msra.mxu0 %v1398
  %1921 = vmatprep.subr.bf16.mxu0 %v1403
  %1922 = vmatpush1.bf16.msra.mxu0 %v1402
  %1923 = vmatprep.subr.bf16.mxu0 %v1407
  %1924 = vmatpush1.bf16.msra.mxu0 %v1406
  %1925 = vmatprep.subr.bf16.mxu0 %v1411
  %1926 = vmatpush1.bf16.msra.mxu0 %v1410
  %1927 = vmatprep.subr.bf16.mxu0 %v1415
  %1928 = vmatpush1.bf16.msra.mxu0 %v1414
  %1929 = vmatprep.subr.bf16.mxu0 %v1419
  %1930 = vmatpush1.bf16.msra.mxu0 %v1418
  %1931 = vmatprep.subr.bf16.mxu0 %v1423
  %1932 = vmatpush1.bf16.msra.mxu0 %v1422
  %1933 = vmatprep.subr.bf16.mxu0 %v1427
  %1934 = vmatpush1.bf16.msra.mxu0 %v1426
  %1935 = vmatprep.subr.bf16.mxu0 %v1431
  %1936 = vmatpush1.bf16.msra.mxu0 %v1430
  %1937 = vmatprep.subr.bf16.mxu0 %v1435
  %1938 = vmatpush1.bf16.msra.mxu0 %v1434
  %1939 = vmatprep.subr.bf16.mxu0 %v1439
  %1940 = vmatpush1.bf16.msra.mxu0 %v1438
  %1941 = vmatprep.subr.bf16.mxu0 %v1443
  %1942 = vmatpush1.bf16.msra.mxu0 %v1442
  %1943 = vmatprep.mubr.bf16.mxu0 %v775
  %1944 = vmatmul.mubr.bf16.gmra.mrb[0].mxu0 %v774
  %v1945 = vpop.f32.mrb[0].mxu0
  %v1946 = vadd.f32 %v1833, %v1945
  %v1947 = vpop.f32.mrb[0].mxu0
  %v1948 = vadd.f32 %v1835, %v1947
  %v1949 = vpop.f32.mrb[0].mxu0
  %v1950 = vadd.f32 %v1837, %v1949
  %v1951 = vpop.f32.mrb[0].mxu0
  %v1952 = vadd.f32 %v1839, %v1951
  %1953 = vmatprep.mubr.bf16.mxu0 %v779
  %1954 = vmatmul.mubr.bf16.gmra.mrb[0].mxu0 %v778
  %v1955 = vpop.f32.mrb[0].mxu0
  %v1956 = vadd.f32 %v1843, %v1955
  %v1957 = vpop.f32.mrb[0].mxu0
  %v1958 = vadd.f32 %v1845, %v1957
  %v1959 = vpop.f32.mrb[0].mxu0
  %v1960 = vadd.f32 %v1847, %v1959
  %v1961 = vpop.f32.mrb[0].mxu0
  %v1962 = vadd.f32 %v1849, %v1961
  %1963 = vmatprep.mubr.bf16.mxu0 %v783
  %1964 = vmatmul.mubr.bf16.gmra.mrb[0].mxu0 %v782
  %v1965 = vpop.f32.mrb[0].mxu0
  %v1966 = vadd.f32 %v1853, %v1965
  %v1967 = vpop.f32.mrb[0].mxu0
  %v1968 = vadd.f32 %v1855, %v1967
  %v1969 = vpop.f32.mrb[0].mxu0
  %v1970 = vadd.f32 %v1857, %v1969
  %v1971 = vpop.f32.mrb[0].mxu0
  %v1972 = vadd.f32 %v1859, %v1971
  %1973 = vmatprep.mubr.bf16.mxu0 %v787
  %1974 = vmatmul.mubr.bf16.gmra.mrb[0].mxu0 %v786
  %v1975 = vpop.f32.mrb[0].mxu0
  %v1976 = vadd.f32 %v1863, %v1975
  %v1977 = vpop.f32.mrb[0].mxu0
  %v1978 = vadd.f32 %v1865, %v1977
  %v1979 = vpop.f32.mrb[0].mxu0
  %v1980 = vadd.f32 %v1867, %v1979
  %v1981 = vpop.f32.mrb[0].mxu0
  %v1982 = vadd.f32 %v1869, %v1981
  %1983 = vmatprep.mubr.bf16.mxu0 %v791
  %1984 = vmatmul.mubr.bf16.gmra.mrb[0].mxu0 %v790
  %v1985 = vpop.f32.mrb[0].mxu0
  %v1986 = vadd.f32 %v1873, %v1985
  %v1987 = vpop.f32.mrb[0].mxu0
  %v1988 = vadd.f32 %v1875, %v1987
  %v1989 = vpop.f32.mrb[0].mxu0
  %v1990 = vadd.f32 %v1877, %v1989
  %v1991 = vpop.f32.mrb[0].mxu0
  %v1992 = vadd.f32 %v1879, %v1991
  %1993 = vmatprep.mubr.bf16.mxu0 %v795
  %1994 = vmatmul.mubr.bf16.gmra.mrb[0].mxu0 %v794
  %v1995 = vpop.f32.mrb[0].mxu0
  %v1996 = vadd.f32 %v1883, %v1995
  %v1997 = vpop.f32.mrb[0].mxu0
  %v1998 = vadd.f32 %v1885, %v1997
  %v1999 = vpop.f32.mrb[0].mxu0
  %v2000 = vadd.f32 %v1887, %v1999
  %v2001 = vpop.f32.mrb[0].mxu0
  %v2002 = vadd.f32 %v1889, %v2001
  %2003 = vmatprep.mubr.bf16.mxu0 %v799
  %2004 = vmatmul.mubr.bf16.gmra.mrb[0].mxu0 %v798
  %v2005 = vpop.f32.mrb[0].mxu0
  %v2006 = vadd.f32 %v1893, %v2005
  %v2007 = vpop.f32.mrb[0].mxu0
  %v2008 = vadd.f32 %v1895, %v2007
  %v2009 = vpop.f32.mrb[0].mxu0
  %v2010 = vadd.f32 %v1897, %v2009
  %v2011 = vpop.f32.mrb[0].mxu0
  %v2012 = vadd.f32 %v1899, %v2011
  %2013 = vmatprep.mubr.bf16.mxu0 %v803
  %2014 = vmatmul.mubr.bf16.gmra.mrb[0].mxu0 %v802
  %v2015 = vpop.f32.mrb[0].mxu0
  %v2016 = vadd.f32 %v1903, %v2015
  %v2017 = vpop.f32.mrb[0].mxu0
  %v2018 = vadd.f32 %v1905, %v2017
  %v2019 = vpop.f32.mrb[0].mxu0
  %v2020 = vadd.f32 %v1907, %v2019
  %v2021 = vpop.f32.mrb[0].mxu0
  %v2022 = vadd.f32 %v1909, %v2021
  %2023 = vdwg.mxu0
  %v2024 = vpack.c.bf16 %v1724, %v1720
  %v2025 = vpack.c.bf16 %v1726, %v1722
  %v2026 = vpack.c.bf16 %v1950, %v1946
  %v2027 = vpack.c.bf16 %v1952, %v1948
  %v2028 = vpack.c.bf16 %v1734, %v1730
  %v2029 = vpack.c.bf16 %v1736, %v1732
  %v2030 = vpack.c.bf16 %v1960, %v1956
  %v2031 = vpack.c.bf16 %v1962, %v1958
  %v2032 = vpack.c.bf16 %v1744, %v1740
  %v2033 = vpack.c.bf16 %v1746, %v1742
  %v2034 = vpack.c.bf16 %v1970, %v1966
  %v2035 = vpack.c.bf16 %v1972, %v1968
  %v2036 = vpack.c.bf16 %v1754, %v1750
  %v2037 = vpack.c.bf16 %v1756, %v1752
  %v2038 = vpack.c.bf16 %v1980, %v1976
  %v2039 = vpack.c.bf16 %v1982, %v1978
  %v2040 = vpack.c.bf16 %v1764, %v1760
  %v2041 = vpack.c.bf16 %v1766, %v1762
  %v2042 = vpack.c.bf16 %v1990, %v1986
  %v2043 = vpack.c.bf16 %v1992, %v1988
  %v2044 = vpack.c.bf16 %v1774, %v1770
  %v2045 = vpack.c.bf16 %v1776, %v1772
  %v2046 = vpack.c.bf16 %v2000, %v1996
  %v2047 = vpack.c.bf16 %v2002, %v1998
  %v2048 = vpack.c.bf16 %v1784, %v1780
  %v2049 = vpack.c.bf16 %v1786, %v1782
  %v2050 = vpack.c.bf16 %v2010, %v2006
  %v2051 = vpack.c.bf16 %v2012, %v2008
  %v2052 = vpack.c.bf16 %v1794, %v1790
  %v2053 = vpack.c.bf16 %v1796, %v1792
  %v2054 = vpack.c.bf16 %v2020, %v2016
  %v2055 = vpack.c.bf16 %v2022, %v2018
  %v2056 = vld [vmem:[%s5] sm:$0xf]
  %v2058 = vlaneseq
  %v2059 = vshrl.u32 %v2058, 7
  %v2060 = vsub.s32 0, %v2059
  %v2061 = vrot.slane %v2056, %v2060
  %v2062 = vlaneseq
  %v2063 = vshrl.u32 %v2062, 7
  %v2064 = vsub.s32 1, %v2063
  %v2065 = vrot.slane %v2056, %v2064
  %v2066 = vlaneseq
  %v2067 = vshrl.u32 %v2066, 7
  %v2068 = vsub.s32 2, %v2067
  %v2069 = vrot.slane %v2056, %v2068
  %v2070 = vlaneseq
  %v2071 = vshrl.u32 %v2070, 7
  %v2072 = vsub.s32 3, %v2071
  %v2073 = vrot.slane %v2056, %v2072
  %2078 = vmatprep.subr.bf16.mxu0 %v2025
  %2079 = vmatpush1.bf16.msra.mxu0 %v2024
  %2080 = vmatprep.subr.bf16.mxu0 %v2029
  %2081 = vmatpush1.bf16.msra.mxu0 %v2028
  %2082 = vmatprep.subr.bf16.mxu0 %v2033
  %2083 = vmatpush1.bf16.msra.mxu0 %v2032
  %2084 = vmatprep.subr.bf16.mxu0 %v2037
  %2085 = vmatpush1.bf16.msra.mxu0 %v2036
  %2086 = vmatprep.subr.bf16.mxu0 %v2041
  %2087 = vmatpush1.bf16.msra.mxu0 %v2040
  %2088 = vmatprep.subr.bf16.mxu0 %v2045
  %2089 = vmatpush1.bf16.msra.mxu0 %v2044
  %2090 = vmatprep.subr.bf16.mxu0 %v2049
  %2091 = vmatpush1.bf16.msra.mxu0 %v2048
  %2092 = vmatprep.subr.bf16.mxu0 %v2053
  %2093 = vmatpush1.bf16.msra.mxu0 %v2052
  %2094 = vmatprep.subr.bf16.mxu0 0
  %2095 = vmatpush1.bf16.msra.mxu0 0
  %2096 = vmatprep.subr.bf16.mxu0 0
  %2097 = vmatpush1.bf16.msra.mxu0 0
  %2098 = vmatprep.subr.bf16.mxu0 0
  %2099 = vmatpush1.bf16.msra.mxu0 0
  %2100 = vmatprep.subr.bf16.mxu0 0
  %2101 = vmatpush1.bf16.msra.mxu0 0
  %2102 = vmatprep.subr.bf16.mxu0 0
  %2103 = vmatpush1.bf16.msra.mxu0 0
  %2104 = vmatprep.subr.bf16.mxu0 0
  %2105 = vmatpush1.bf16.msra.mxu0 0
  %2106 = vmatprep.subr.bf16.mxu0 0
  %2107 = vmatpush1.bf16.msra.mxu0 0
  %2108 = vmatprep.subr.bf16.mxu0 0
  %2109 = vmatpush1.bf16.msra.mxu0 0
  %2110 = vmatprep.mubr.bf16.mxu0 0
  %2111 = vmatmul.mubr.bf16.gmra.mrb[0].mxu0 %v99
  %v2112 = vpop.f32.mrb[0].mxu0
  %v2113 = vadd.f32 %v2061, %v2112
  %v2114 = vpop.f32.mrb[0].mxu0
  %v2115 = vadd.f32 %v2065, %v2114
  %v2116 = vpop.f32.mrb[0].mxu0
  %v2117 = vadd.f32 %v2061, %v2116
  %v2118 = vpop.f32.mrb[0].mxu0
  %v2119 = vadd.f32 %v2065, %v2118
  %2120 = vmatprep.mubr.bf16.mxu0 0
  %2121 = vmatmul.mubr.bf16.gmra.mrb[0].mxu0 %v100
  %v2122 = vpop.f32.mrb[0].mxu0
  %v2123 = vadd.f32 %v2061, %v2122
  %v2124 = vpop.f32.mrb[0].mxu0
  %v2125 = vadd.f32 %v2065, %v2124
  %v2126 = vpop.f32.mrb[0].mxu0
  %v2127 = vadd.f32 %v2061, %v2126
  %v2128 = vpop.f32.mrb[0].mxu0
  %v2129 = vadd.f32 %v2065, %v2128
  %2130 = vmatprep.mubr.bf16.mxu0 0
  %2131 = vmatmul.mubr.bf16.gmra.mrb[0].mxu0 %v101
  %v2132 = vpop.f32.mrb[0].mxu0
  %v2133 = vadd.f32 %v2061, %v2132
  %v2134 = vpop.f32.mrb[0].mxu0
  %v2135 = vadd.f32 %v2065, %v2134
  %v2136 = vpop.f32.mrb[0].mxu0
  %v2137 = vadd.f32 %v2061, %v2136
  %v2138 = vpop.f32.mrb[0].mxu0
  %v2139 = vadd.f32 %v2065, %v2138
  %2140 = vmatprep.mubr.bf16.mxu0 0
  %2141 = vmatmul.mubr.bf16.gmra.mrb[0].mxu0 %v102
  %v2142 = vpop.f32.mrb[0].mxu0
  %v2143 = vadd.f32 %v2061, %v2142
  %v2144 = vpop.f32.mrb[0].mxu0
  %v2145 = vadd.f32 %v2065, %v2144
  %v2146 = vpop.f32.mrb[0].mxu0
  %v2147 = vadd.f32 %v2061, %v2146
  %v2148 = vpop.f32.mrb[0].mxu0
  %v2149 = vadd.f32 %v2065, %v2148
  %2150 = vmatprep.mubr.bf16.mxu0 0
  %2151 = vmatmul.mubr.bf16.gmra.mrb[0].mxu0 %v103
  %v2152 = vpop.f32.mrb[0].mxu0
  %v2153 = vadd.f32 %v2061, %v2152
  %v2154 = vpop.f32.mrb[0].mxu0
  %v2155 = vadd.f32 %v2065, %v2154
  %v2156 = vpop.f32.mrb[0].mxu0
  %v2157 = vadd.f32 %v2061, %v2156
  %v2158 = vpop.f32.mrb[0].mxu0
  %v2159 = vadd.f32 %v2065, %v2158
  %2160 = vmatprep.mubr.bf16.mxu0 0
  %2161 = vmatmul.mubr.bf16.gmra.mrb[0].mxu0 %v104
  %v2162 = vpop.f32.mrb[0].mxu0
  %v2163 = vadd.f32 %v2061, %v2162
  %v2164 = vpop.f32.mrb[0].mxu0
  %v2165 = vadd.f32 %v2065, %v2164
  %v2166 = vpop.f32.mrb[0].mxu0
  %v2167 = vadd.f32 %v2061, %v2166
  %v2168 = vpop.f32.mrb[0].mxu0
  %v2169 = vadd.f32 %v2065, %v2168
  %2170 = vmatprep.mubr.bf16.mxu0 0
  %2171 = vmatmul.mubr.bf16.gmra.mrb[0].mxu0 %v105
  %v2172 = vpop.f32.mrb[0].mxu0
  %v2173 = vadd.f32 %v2061, %v2172
  %v2174 = vpop.f32.mrb[0].mxu0
  %v2175 = vadd.f32 %v2065, %v2174
  %v2176 = vpop.f32.mrb[0].mxu0
  %v2177 = vadd.f32 %v2061, %v2176
  %v2178 = vpop.f32.mrb[0].mxu0
  %v2179 = vadd.f32 %v2065, %v2178
  %2180 = vmatprep.mubr.bf16.mxu0 0
  %2181 = vmatmul.mubr.bf16.gmra.mrb[0].mxu0 %v106
  %v2182 = vpop.f32.mrb[0].mxu0
  %v2183 = vadd.f32 %v2061, %v2182
  %v2184 = vpop.f32.mrb[0].mxu0
  %v2185 = vadd.f32 %v2065, %v2184
  %v2186 = vpop.f32.mrb[0].mxu0
  %v2187 = vadd.f32 %v2061, %v2186
  %v2188 = vpop.f32.mrb[0].mxu0
  %v2189 = vadd.f32 %v2065, %v2188
  %2190 = vdwg.mxu0
  %2191 = vmatprep.subr.bf16.mxu0 %v2027
  %2192 = vmatpush1.bf16.msra.mxu0 %v2026
  %2193 = vmatprep.subr.bf16.mxu0 %v2031
  %2194 = vmatpush1.bf16.msra.mxu0 %v2030
  %2195 = vmatprep.subr.bf16.mxu0 %v2035
  %2196 = vmatpush1.bf16.msra.mxu0 %v2034
  %2197 = vmatprep.subr.bf16.mxu0 %v2039
  %2198 = vmatpush1.bf16.msra.mxu0 %v2038
  %2199 = vmatprep.subr.bf16.mxu0 %v2043
  %2200 = vmatpush1.bf16.msra.mxu0 %v2042
  %2201 = vmatprep.subr.bf16.mxu0 %v2047
  %2202 = vmatpush1.bf16.msra.mxu0 %v2046
  %2203 = vmatprep.subr.bf16.mxu0 %v2051
  %2204 = vmatpush1.bf16.msra.mxu0 %v2050
  %2205 = vmatprep.subr.bf16.mxu0 %v2055
  %2206 = vmatpush1.bf16.msra.mxu0 %v2054
  %2207 = vmatprep.subr.bf16.mxu0 0
  %2208 = vmatpush1.bf16.msra.mxu0 0
  %2209 = vmatprep.subr.bf16.mxu0 0
  %2210 = vmatpush1.bf16.msra.mxu0 0
  %2211 = vmatprep.subr.bf16.mxu0 0
  %2212 = vmatpush1.bf16.msra.mxu0 0
  %2213 = vmatprep.subr.bf16.mxu0 0
  %2214 = vmatpush1.bf16.msra.mxu0 0
  %2215 = vmatprep.subr.bf16.mxu0 0
  %2216 = vmatpush1.bf16.msra.mxu0 0
  %2217 = vmatprep.subr.bf16.mxu0 0
  %2218 = vmatpush1.bf16.msra.mxu0 0
  %2219 = vmatprep.subr.bf16.mxu0 0
  %2220 = vmatpush1.bf16.msra.mxu0 0
  %2221 = vmatprep.subr.bf16.mxu0 0
  %2222 = vmatpush1.bf16.msra.mxu0 0
  %2223 = vmatprep.mubr.bf16.mxu0 0
  %2224 = vmatmul.mubr.bf16.gmra.mrb[0].mxu0 %v99
  %v2225 = vpop.f32.mrb[0].mxu0
  %v2226 = vadd.f32 %v2069, %v2225
  %v2227 = vpop.f32.mrb[0].mxu0
  %v2228 = vadd.f32 %v2073, %v2227
  %v2229 = vpop.f32.mrb[0].mxu0
  %v2230 = vadd.f32 %v2069, %v2229
  %v2231 = vpop.f32.mrb[0].mxu0
  %v2232 = vadd.f32 %v2073, %v2231
  %2233 = vmatprep.mubr.bf16.mxu0 0
  %2234 = vmatmul.mubr.bf16.gmra.mrb[0].mxu0 %v100
  %v2235 = vpop.f32.mrb[0].mxu0
  %v2236 = vadd.f32 %v2069, %v2235
  %v2237 = vpop.f32.mrb[0].mxu0
  %v2238 = vadd.f32 %v2073, %v2237
  %v2239 = vpop.f32.mrb[0].mxu0
  %v2240 = vadd.f32 %v2069, %v2239
  %v2241 = vpop.f32.mrb[0].mxu0
  %v2242 = vadd.f32 %v2073, %v2241
  %2243 = vmatprep.mubr.bf16.mxu0 0
  %2244 = vmatmul.mubr.bf16.gmra.mrb[0].mxu0 %v101
  %v2245 = vpop.f32.mrb[0].mxu0
  %v2246 = vadd.f32 %v2069, %v2245
  %v2247 = vpop.f32.mrb[0].mxu0
  %v2248 = vadd.f32 %v2073, %v2247
  %v2249 = vpop.f32.mrb[0].mxu0
  %v2250 = vadd.f32 %v2069, %v2249
  %v2251 = vpop.f32.mrb[0].mxu0
  %v2252 = vadd.f32 %v2073, %v2251
  %2253 = vmatprep.mubr.bf16.mxu0 0
  %2254 = vmatmul.mubr.bf16.gmra.mrb[0].mxu0 %v102
  %v2255 = vpop.f32.mrb[0].mxu0
  %v2256 = vadd.f32 %v2069, %v2255
  %v2257 = vpop.f32.mrb[0].mxu0
  %v2258 = vadd.f32 %v2073, %v2257
  %v2259 = vpop.f32.mrb[0].mxu0
  %v2260 = vadd.f32 %v2069, %v2259
  %v2261 = vpop.f32.mrb[0].mxu0
  %v2262 = vadd.f32 %v2073, %v2261
  %2263 = vmatprep.mubr.bf16.mxu0 0
  %2264 = vmatmul.mubr.bf16.gmra.mrb[0].mxu0 %v103
  %v2265 = vpop.f32.mrb[0].mxu0
  %v2266 = vadd.f32 %v2069, %v2265
  %v2267 = vpop.f32.mrb[0].mxu0
  %v2268 = vadd.f32 %v2073, %v2267
  %v2269 = vpop.f32.mrb[0].mxu0
  %v2270 = vadd.f32 %v2069, %v2269
  %v2271 = vpop.f32.mrb[0].mxu0
  %v2272 = vadd.f32 %v2073, %v2271
  %2273 = vmatprep.mubr.bf16.mxu0 0
  %2274 = vmatmul.mubr.bf16.gmra.mrb[0].mxu0 %v104
  %v2275 = vpop.f32.mrb[0].mxu0
  %v2276 = vadd.f32 %v2069, %v2275
  %v2277 = vpop.f32.mrb[0].mxu0
  %v2278 = vadd.f32 %v2073, %v2277
  %v2279 = vpop.f32.mrb[0].mxu0
  %v2280 = vadd.f32 %v2069, %v2279
  %v2281 = vpop.f32.mrb[0].mxu0
  %v2282 = vadd.f32 %v2073, %v2281
  %2283 = vmatprep.mubr.bf16.mxu0 0
  %2284 = vmatmul.mubr.bf16.gmra.mrb[0].mxu0 %v105
  %v2285 = vpop.f32.mrb[0].mxu0
  %v2286 = vadd.f32 %v2069, %v2285
  %v2287 = vpop.f32.mrb[0].mxu0
  %v2288 = vadd.f32 %v2073, %v2287
  %v2289 = vpop.f32.mrb[0].mxu0
  %v2290 = vadd.f32 %v2069, %v2289
  %v2291 = vpop.f32.mrb[0].mxu0
  %v2292 = vadd.f32 %v2073, %v2291
  %2293 = vmatprep.mubr.bf16.mxu0 0
  %2294 = vmatmul.mubr.bf16.gmra.mrb[0].mxu0 %v106
  %v2295 = vpop.f32.mrb[0].mxu0
  %v2296 = vadd.f32 %v2069, %v2295
  %v2297 = vpop.f32.mrb[0].mxu0
  %v2298 = vadd.f32 %v2073, %v2297
  %v2299 = vpop.f32.mrb[0].mxu0
  %v2300 = vadd.f32 %v2069, %v2299
  %v2301 = vpop.f32.mrb[0].mxu0
  %v2302 = vadd.f32 %v2073, %v2301
  %2303 = vdwg.mxu0
  %v2304 = vmax.f32 %v2113, 0.0
  %v2305 = vmax.f32 %v2115, 0.0
  %v2306 = vmax.f32 %v2226, 0.0
  %v2307 = vmax.f32 %v2228, 0.0
  %v2308 = vmax.f32 %v2117, 0.0
  %v2309 = vmax.f32 %v2119, 0.0
  %v2310 = vmax.f32 %v2230, 0.0
  %v2311 = vmax.f32 %v2232, 0.0
  %v2312 = vmax.f32 %v2123, 0.0
  %v2313 = vmax.f32 %v2125, 0.0
  %v2314 = vmax.f32 %v2236, 0.0
  %v2315 = vmax.f32 %v2238, 0.0
  %v2316 = vmax.f32 %v2127, 0.0
  %v2317 = vmax.f32 %v2129, 0.0
  %v2318 = vmax.f32 %v2240, 0.0
  %v2319 = vmax.f32 %v2242, 0.0
  %v2320 = vmax.f32 %v2133, 0.0
  %v2321 = vmax.f32 %v2135, 0.0
  %v2322 = vmax.f32 %v2246, 0.0
  %v2323 = vmax.f32 %v2248, 0.0
  %v2324 = vmax.f32 %v2137, 0.0
  %v2325 = vmax.f32 %v2139, 0.0
  %v2326 = vmax.f32 %v2250, 0.0
  %v2327 = vmax.f32 %v2252, 0.0
  %v2328 = vmax.f32 %v2143, 0.0
  %v2329 = vmax.f32 %v2145, 0.0
  %v2330 = vmax.f32 %v2256, 0.0
  %v2331 = vmax.f32 %v2258, 0.0
  %v2332 = vmax.f32 %v2147, 0.0
  %v2333 = vmax.f32 %v2149, 0.0
  %v2334 = vmax.f32 %v2260, 0.0
  %v2335 = vmax.f32 %v2262, 0.0
  %v2336 = vmax.f32 %v2153, 0.0
  %v2337 = vmax.f32 %v2155, 0.0
  %v2338 = vmax.f32 %v2266, 0.0
  %v2339 = vmax.f32 %v2268, 0.0
  %v2340 = vmax.f32 %v2157, 0.0
  %v2341 = vmax.f32 %v2159, 0.0
  %v2342 = vmax.f32 %v2270, 0.0
  %v2343 = vmax.f32 %v2272, 0.0
  %v2344 = vmax.f32 %v2163, 0.0
  %v2345 = vmax.f32 %v2165, 0.0
  %v2346 = vmax.f32 %v2276, 0.0
  %v2347 = vmax.f32 %v2278, 0.0
  %v2348 = vmax.f32 %v2167, 0.0
  %v2349 = vmax.f32 %v2169, 0.0
  %v2350 = vmax.f32 %v2280, 0.0
  %v2351 = vmax.f32 %v2282, 0.0
  %v2352 = vmax.f32 %v2173, 0.0
  %v2353 = vmax.f32 %v2175, 0.0
  %v2354 = vmax.f32 %v2286, 0.0
  %v2355 = vmax.f32 %v2288, 0.0
  %v2356 = vmax.f32 %v2177, 0.0
  %v2357 = vmax.f32 %v2179, 0.0
  %v2358 = vmax.f32 %v2290, 0.0
  %v2359 = vmax.f32 %v2292, 0.0
  %v2360 = vmax.f32 %v2183, 0.0
  %v2361 = vmax.f32 %v2185, 0.0
  %v2362 = vmax.f32 %v2296, 0.0
  %v2363 = vmax.f32 %v2298, 0.0
  %v2364 = vmax.f32 %v2187, 0.0
  %v2365 = vmax.f32 %v2189, 0.0
  %v2366 = vmax.f32 %v2300, 0.0
  %v2367 = vmax.f32 %v2302, 0.0
  %2368 = vst [vmem:[%s9] sm:$0xff] %v2304
  %2369 = vst [vmem:[%s9 + $0x8] sm:$0xff] %v2305
  %2370 = vst [vmem:[%s9 + $0x10] sm:$0xff] %v2306
  %2371 = vst [vmem:[%s9 + $0x18] sm:$0xff] %v2307
  %2372 = vst [vmem:[%s9 + $0x20] sm:$0xff] %v2308
  %2373 = vst [vmem:[%s9 + $0x28] sm:$0xff] %v2309
  %2374 = vst [vmem:[%s9 + $0x30] sm:$0xff] %v2310
  %2375 = vst [vmem:[%s9 + $0x38] sm:$0xff] %v2311
  %2376 = vst [vmem:[%s9 + $0x40] sm:$0xff] %v2312
  %2377 = vst [vmem:[%s9 + $0x48] sm:$0xff] %v2313
  %2378 = vst [vmem:[%s9 + $0x50] sm:$0xff] %v2314
  %2379 = vst [vmem:[%s9 + $0x58] sm:$0xff] %v2315
  %2380 = vst [vmem:[%s9 + $0x60] sm:$0xff] %v2316
  %2381 = vst [vmem:[%s9 + $0x68] sm:$0xff] %v2317
  %2382 = vst [vmem:[%s9 + $0x70] sm:$0xff] %v2318
  %2383 = vst [vmem:[%s9 + $0x78] sm:$0xff] %v2319
  %2384 = vst [vmem:[%s9 + $0x80] sm:$0xff] %v2320
  %2385 = vst [vmem:[%s9 + $0x88] sm:$0xff] %v2321
  %2386 = vst [vmem:[%s9 + $0x90] sm:$0xff] %v2322
  %2387 = vst [vmem:[%s9 + $0x98] sm:$0xff] %v2323
  %2388 = vst [vmem:[%s9 + $0xa0] sm:$0xff] %v2324
  %2389 = vst [vmem:[%s9 + $0xa8] sm:$0xff] %v2325
  %2390 = vst [vmem:[%s9 + $0xb0] sm:$0xff] %v2326
  %2391 = vst [vmem:[%s9 + $0xb8] sm:$0xff] %v2327
  %2392 = vst [vmem:[%s9 + $0xc0] sm:$0xff] %v2328
  %2393 = vst [vmem:[%s9 + $0xc8] sm:$0xff] %v2329
  %2394 = vst [vmem:[%s9 + $0xd0] sm:$0xff] %v2330
  %2395 = vst [vmem:[%s9 + $0xd8] sm:$0xff] %v2331
  %2396 = vst [vmem:[%s9 + $0xe0] sm:$0xff] %v2332
  %2397 = vst [vmem:[%s9 + $0xe8] sm:$0xff] %v2333
  %2398 = vst [vmem:[%s9 + $0xf0] sm:$0xff] %v2334
  %2399 = vst [vmem:[%s9 + $0xf8] sm:$0xff] %v2335
  %2400 = vst [vmem:[%s9 + $0x100] sm:$0xff] %v2336
  %2401 = vst [vmem:[%s9 + $0x108] sm:$0xff] %v2337
  %2402 = vst [vmem:[%s9 + $0x110] sm:$0xff] %v2338
  %2403 = vst [vmem:[%s9 + $0x118] sm:$0xff] %v2339
  %2404 = vst [vmem:[%s9 + $0x120] sm:$0xff] %v2340
  %2405 = vst [vmem:[%s9 + $0x128] sm:$0xff] %v2341
  %2406 = vst [vmem:[%s9 + $0x130] sm:$0xff] %v2342
  %2407 = vst [vmem:[%s9 + $0x138] sm:$0xff] %v2343
  %2408 = vst [vmem:[%s9 + $0x140] sm:$0xff] %v2344
  %2409 = vst [vmem:[%s9 + $0x148] sm:$0xff] %v2345
  %2410 = vst [vmem:[%s9 + $0x150] sm:$0xff] %v2346
  %2411 = vst [vmem:[%s9 + $0x158] sm:$0xff] %v2347
  %2412 = vst [vmem:[%s9 + $0x160] sm:$0xff] %v2348
  %2413 = vst [vmem:[%s9 + $0x168] sm:$0xff] %v2349
  %2414 = vst [vmem:[%s9 + $0x170] sm:$0xff] %v2350
  %2415 = vst [vmem:[%s9 + $0x178] sm:$0xff] %v2351
  %2416 = vst [vmem:[%s9 + $0x180] sm:$0xff] %v2352
  %2417 = vst [vmem:[%s9 + $0x188] sm:$0xff] %v2353
  %2418 = vst [vmem:[%s9 + $0x190] sm:$0xff] %v2354
  %2419 = vst [vmem:[%s9 + $0x198] sm:$0xff] %v2355
  %2420 = vst [vmem:[%s9 + $0x1a0] sm:$0xff] %v2356
  %2421 = vst [vmem:[%s9 + $0x1a8] sm:$0xff] %v2357
  %2422 = vst [vmem:[%s9 + $0x1b0] sm:$0xff] %v2358
  %2423 = vst [vmem:[%s9 + $0x1b8] sm:$0xff] %v2359
  %2424 = vst [vmem:[%s9 + $0x1c0] sm:$0xff] %v2360
  %2425 = vst [vmem:[%s9 + $0x1c8] sm:$0xff] %v2361
  %2426 = vst [vmem:[%s9 + $0x1d0] sm:$0xff] %v2362
  %2427 = vst [vmem:[%s9 + $0x1d8] sm:$0xff] %v2363
  %2428 = vst [vmem:[%s9 + $0x1e0] sm:$0xff] %v2364
  %2429 = vst [vmem:[%s9 + $0x1e8] sm:$0xff] %v2365
  %2430 = vst [vmem:[%s9 + $0x1f0] sm:$0xff] %v2366
  %2431 = vst [vmem:[%s9 + $0x1f8] sm:$0xff] %v2367
  %v2432 = vpack.c.bf16 %v2308, %v2304
  %v2433 = vpack.c.bf16 %v2309, %v2305
  %v2434 = vpack.c.bf16 %v2310, %v2306
  %v2435 = vpack.c.bf16 %v2311, %v2307
  %v2436 = vpack.c.bf16 %v2316, %v2312
  %v2437 = vpack.c.bf16 %v2317, %v2313
  %v2438 = vpack.c.bf16 %v2318, %v2314
  %v2439 = vpack.c.bf16 %v2319, %v2315
  %v2440 = vpack.c.bf16 %v2324, %v2320
  %v2441 = vpack.c.bf16 %v2325, %v2321
  %v2442 = vpack.c.bf16 %v2326, %v2322
  %v2443 = vpack.c.bf16 %v2327, %v2323
  %v2444 = vpack.c.bf16 %v2332, %v2328
  %v2445 = vpack.c.bf16 %v2333, %v2329
  %v2446 = vpack.c.bf16 %v2334, %v2330
  %v2447 = vpack.c.bf16 %v2335, %v2331
  %v2448 = vpack.c.bf16 %v2340, %v2336
  %v2449 = vpack.c.bf16 %v2341, %v2337
  %v2450 = vpack.c.bf16 %v2342, %v2338
  %v2451 = vpack.c.bf16 %v2343, %v2339
  %v2452 = vpack.c.bf16 %v2348, %v2344
  %v2453 = vpack.c.bf16 %v2349, %v2345
  %v2454 = vpack.c.bf16 %v2350, %v2346
  %v2455 = vpack.c.bf16 %v2351, %v2347
  %v2456 = vpack.c.bf16 %v2356, %v2352
  %v2457 = vpack.c.bf16 %v2357, %v2353
  %v2458 = vpack.c.bf16 %v2358, %v2354
  %v2459 = vpack.c.bf16 %v2359, %v2355
  %v2460 = vpack.c.bf16 %v2364, %v2360
  %v2461 = vpack.c.bf16 %v2365, %v2361
  %v2462 = vpack.c.bf16 %v2366, %v2362
  %v2463 = vpack.c.bf16 %v2367, %v2363
  %v2464 = vld [vmem:[%s6] sm:$0xff]
  %v2465 = vld [vmem:[%s6 + $0x8] sm:$0xff]
  %v2466 = vld [vmem:[%s6 + $0x10] sm:$0xff]
  %v2467 = vld [vmem:[%s6 + $0x18] sm:$0xff]
  %v2468 = vld [vmem:[%s6 + $0x20] sm:$0xff]
  %v2469 = vld [vmem:[%s6 + $0x28] sm:$0xff]
  %v2470 = vld [vmem:[%s6 + $0x30] sm:$0xff]
  %v2471 = vld [vmem:[%s6 + $0x38] sm:$0xff]
  %v2472 = vld [vmem:[%s6 + $0x40] sm:$0xff]
  %v2473 = vld [vmem:[%s6 + $0x48] sm:$0xff]
  %v2474 = vld [vmem:[%s6 + $0x50] sm:$0xff]
  %v2475 = vld [vmem:[%s6 + $0x58] sm:$0xff]
  %v2476 = vld [vmem:[%s6 + $0x60] sm:$0xff]
  %v2477 = vld [vmem:[%s6 + $0x68] sm:$0xff]
  %v2478 = vld [vmem:[%s6 + $0x70] sm:$0xff]
  %v2479 = vld [vmem:[%s6 + $0x78] sm:$0xff]
  %v2480 = vld [vmem:[%s6 + $0x80] sm:$0xff]
  %v2481 = vld [vmem:[%s6 + $0x88] sm:$0xff]
  %v2482 = vld [vmem:[%s6 + $0x90] sm:$0xff]
  %v2483 = vld [vmem:[%s6 + $0x98] sm:$0xff]
  %v2484 = vld [vmem:[%s6 + $0xa0] sm:$0xff]
  %v2485 = vld [vmem:[%s6 + $0xa8] sm:$0xff]
  %v2486 = vld [vmem:[%s6 + $0xb0] sm:$0xff]
  %v2487 = vld [vmem:[%s6 + $0xb8] sm:$0xff]
  %v2488 = vld [vmem:[%s6 + $0xc0] sm:$0xff]
  %v2489 = vld [vmem:[%s6 + $0xc8] sm:$0xff]
  %v2490 = vld [vmem:[%s6 + $0xd0] sm:$0xff]
  %v2491 = vld [vmem:[%s6 + $0xd8] sm:$0xff]
  %v2492 = vld [vmem:[%s6 + $0xe0] sm:$0xff]
  %v2493 = vld [vmem:[%s6 + $0xe8] sm:$0xff]
  %v2494 = vld [vmem:[%s6 + $0xf0] sm:$0xff]
  %v2495 = vld [vmem:[%s6 + $0xf8] sm:$0xff]
  %v2496 = vld [vmem:[%s6 + $0x100] sm:$0xff]
  %v2497 = vld [vmem:[%s6 + $0x108] sm:$0xff]
  %v2498 = vld [vmem:[%s6 + $0x110] sm:$0xff]
  %v2499 = vld [vmem:[%s6 + $0x118] sm:$0xff]
  %v2500 = vld [vmem:[%s6 + $0x120] sm:$0xff]
  %v2501 = vld [vmem:[%s6 + $0x128] sm:$0xff]
  %v2502 = vld [vmem:[%s6 + $0x130] sm:$0xff]
  %v2503 = vld [vmem:[%s6 + $0x138] sm:$0xff]
  %v2504 = vld [vmem:[%s6 + $0x140] sm:$0xff]
  %v2505 = vld [vmem:[%s6 + $0x148] sm:$0xff]
  %v2506 = vld [vmem:[%s6 + $0x150] sm:$0xff]
  %v2507 = vld [vmem:[%s6 + $0x158] sm:$0xff]
  %v2508 = vld [vmem:[%s6 + $0x160] sm:$0xff]
  %v2509 = vld [vmem:[%s6 + $0x168] sm:$0xff]
  %v2510 = vld [vmem:[%s6 + $0x170] sm:$0xff]
  %v2511 = vld [vmem:[%s6 + $0x178] sm:$0xff]
  %v2512 = vld [vmem:[%s6 + $0x180] sm:$0xff]
  %v2513 = vld [vmem:[%s6 + $0x188] sm:$0xff]
  %v2514 = vld [vmem:[%s6 + $0x190] sm:$0xff]
  %v2515 = vld [vmem:[%s6 + $0x198] sm:$0xff]
  %v2516 = vld [vmem:[%s6 + $0x1a0] sm:$0xff]
  %v2517 = vld [vmem:[%s6 + $0x1a8] sm:$0xff]
  %v2518 = vld [vmem:[%s6 + $0x1b0] sm:$0xff]
  %v2519 = vld [vmem:[%s6 + $0x1b8] sm:$0xff]
  %v2520 = vld [vmem:[%s6 + $0x1c0] sm:$0xff]
  %v2521 = vld [vmem:[%s6 + $0x1c8] sm:$0xff]
  %v2522 = vld [vmem:[%s6 + $0x1d0] sm:$0xff]
  %v2523 = vld [vmem:[%s6 + $0x1d8] sm:$0xff]
  %v2524 = vld [vmem:[%s6 + $0x1e0] sm:$0xff]
  %v2525 = vld [vmem:[%s6 + $0x1e8] sm:$0xff]
  %v2526 = vld [vmem:[%s6 + $0x1f0] sm:$0xff]
  %v2527 = vld [vmem:[%s6 + $0x1f8] sm:$0xff]
  %v2528 = vld [vmem:[%s6 + $0x200] sm:$0xff]
  %v2529 = vld [vmem:[%s6 + $0x208] sm:$0xff]
  %v2530 = vld [vmem:[%s6 + $0x210] sm:$0xff]
  %v2531 = vld [vmem:[%s6 + $0x218] sm:$0xff]
  %v2532 = vld [vmem:[%s6 + $0x220] sm:$0xff]
  %v2533 = vld [vmem:[%s6 + $0x228] sm:$0xff]
  %v2534 = vld [vmem:[%s6 + $0x230] sm:$0xff]
  %v2535 = vld [vmem:[%s6 + $0x238] sm:$0xff]
  %v2536 = vld [vmem:[%s6 + $0x240] sm:$0xff]
  %v2537 = vld [vmem:[%s6 + $0x248] sm:$0xff]
  %v2538 = vld [vmem:[%s6 + $0x250] sm:$0xff]
  %v2539 = vld [vmem:[%s6 + $0x258] sm:$0xff]
  %v2540 = vld [vmem:[%s6 + $0x260] sm:$0xff]
  %v2541 = vld [vmem:[%s6 + $0x268] sm:$0xff]
  %v2542 = vld [vmem:[%s6 + $0x270] sm:$0xff]
  %v2543 = vld [vmem:[%s6 + $0x278] sm:$0xff]
  %v2544 = vld [vmem:[%s6 + $0x280] sm:$0xff]
  %v2545 = vld [vmem:[%s6 + $0x288] sm:$0xff]
  %v2546 = vld [vmem:[%s6 + $0x290] sm:$0xff]
  %v2547 = vld [vmem:[%s6 + $0x298] sm:$0xff]
  %v2548 = vld [vmem:[%s6 + $0x2a0] sm:$0xff]
  %v2549 = vld [vmem:[%s6 + $0x2a8] sm:$0xff]
  %v2550 = vld [vmem:[%s6 + $0x2b0] sm:$0xff]
  %v2551 = vld [vmem:[%s6 + $0x2b8] sm:$0xff]
  %v2552 = vld [vmem:[%s6 + $0x2c0] sm:$0xff]
  %v2553 = vld [vmem:[%s6 + $0x2c8] sm:$0xff]
  %v2554 = vld [vmem:[%s6 + $0x2d0] sm:$0xff]
  %v2555 = vld [vmem:[%s6 + $0x2d8] sm:$0xff]
  %v2556 = vld [vmem:[%s6 + $0x2e0] sm:$0xff]
  %v2557 = vld [vmem:[%s6 + $0x2e8] sm:$0xff]
  %v2558 = vld [vmem:[%s6 + $0x2f0] sm:$0xff]
  %v2559 = vld [vmem:[%s6 + $0x2f8] sm:$0xff]
  %v2560 = vld [vmem:[%s6 + $0x300] sm:$0xff]
  %v2561 = vld [vmem:[%s6 + $0x308] sm:$0xff]
  %v2562 = vld [vmem:[%s6 + $0x310] sm:$0xff]
  %v2563 = vld [vmem:[%s6 + $0x318] sm:$0xff]
  %v2564 = vld [vmem:[%s6 + $0x320] sm:$0xff]
  %v2565 = vld [vmem:[%s6 + $0x328] sm:$0xff]
  %v2566 = vld [vmem:[%s6 + $0x330] sm:$0xff]
  %v2567 = vld [vmem:[%s6 + $0x338] sm:$0xff]
  %v2568 = vld [vmem:[%s6 + $0x340] sm:$0xff]
  %v2569 = vld [vmem:[%s6 + $0x348] sm:$0xff]
  %v2570 = vld [vmem:[%s6 + $0x350] sm:$0xff]
  %v2571 = vld [vmem:[%s6 + $0x358] sm:$0xff]
  %v2572 = vld [vmem:[%s6 + $0x360] sm:$0xff]
  %v2573 = vld [vmem:[%s6 + $0x368] sm:$0xff]
  %v2574 = vld [vmem:[%s6 + $0x370] sm:$0xff]
  %v2575 = vld [vmem:[%s6 + $0x378] sm:$0xff]
  %v2576 = vld [vmem:[%s6 + $0x380] sm:$0xff]
  %v2577 = vld [vmem:[%s6 + $0x388] sm:$0xff]
  %v2578 = vld [vmem:[%s6 + $0x390] sm:$0xff]
  %v2579 = vld [vmem:[%s6 + $0x398] sm:$0xff]
  %v2580 = vld [vmem:[%s6 + $0x3a0] sm:$0xff]
  %v2581 = vld [vmem:[%s6 + $0x3a8] sm:$0xff]
  %v2582 = vld [vmem:[%s6 + $0x3b0] sm:$0xff]
  %v2583 = vld [vmem:[%s6 + $0x3b8] sm:$0xff]
  %v2584 = vld [vmem:[%s6 + $0x3c0] sm:$0xff]
  %v2585 = vld [vmem:[%s6 + $0x3c8] sm:$0xff]
  %v2586 = vld [vmem:[%s6 + $0x3d0] sm:$0xff]
  %v2587 = vld [vmem:[%s6 + $0x3d8] sm:$0xff]
  %v2588 = vld [vmem:[%s6 + $0x3e0] sm:$0xff]
  %v2589 = vld [vmem:[%s6 + $0x3e8] sm:$0xff]
  %v2590 = vld [vmem:[%s6 + $0x3f0] sm:$0xff]
  %v2591 = vld [vmem:[%s6 + $0x3f8] sm:$0xff]
  %v2720 = vunpack.c.l.b16 %v2464
  %v2721 = vunpack.c.h.b16 %v2464
  %v2722 = vunpack.c.l.b16 %v2465
  %v2723 = vunpack.c.h.b16 %v2465
  %v2724 = vunpack.c.l.b16 %v2466
  %v2725 = vunpack.c.h.b16 %v2466
  %v2726 = vunpack.c.l.b16 %v2467
  %v2727 = vunpack.c.h.b16 %v2467
  %v2728 = vunpack.c.l.b16 %v2468
  %v2729 = vunpack.c.h.b16 %v2468
  %v2730 = vunpack.c.l.b16 %v2469
  %v2731 = vunpack.c.h.b16 %v2469
  %v2732 = vunpack.c.l.b16 %v2470
  %v2733 = vunpack.c.h.b16 %v2470
  %v2734 = vunpack.c.l.b16 %v2471
  %v2735 = vunpack.c.h.b16 %v2471
  %v2736 = vunpack.c.l.b16 %v2472
  %v2737 = vunpack.c.h.b16 %v2472
  %v2738 = vunpack.c.l.b16 %v2473
  %v2739 = vunpack.c.h.b16 %v2473
  %v2740 = vunpack.c.l.b16 %v2474
  %v2741 = vunpack.c.h.b16 %v2474
  %v2742 = vunpack.c.l.b16 %v2475
  %v2743 = vunpack.c.h.b16 %v2475
  %v2744 = vunpack.c.l.b16 %v2476
  %v2745 = vunpack.c.h.b16 %v2476
  %v2746 = vunpack.c.l.b16 %v2477
  %v2747 = vunpack.c.h.b16 %v2477
  %v2748 = vunpack.c.l.b16 %v2478
  %v2749 = vunpack.c.h.b16 %v2478
  %v2750 = vunpack.c.l.b16 %v2479
  %v2751 = vunpack.c.h.b16 %v2479
  %v2752 = vunpack.c.l.b16 %v2480
  %v2753 = vunpack.c.h.b16 %v2480
  %v2754 = vunpack.c.l.b16 %v2481
  %v2755 = vunpack.c.h.b16 %v2481
  %v2756 = vunpack.c.l.b16 %v2482
  %v2757 = vunpack.c.h.b16 %v2482
  %v2758 = vunpack.c.l.b16 %v2483
  %v2759 = vunpack.c.h.b16 %v2483
  %v2760 = vunpack.c.l.b16 %v2484
  %v2761 = vunpack.c.h.b16 %v2484
  %v2762 = vunpack.c.l.b16 %v2485
  %v2763 = vunpack.c.h.b16 %v2485
  %v2764 = vunpack.c.l.b16 %v2486
  %v2765 = vunpack.c.h.b16 %v2486
  %v2766 = vunpack.c.l.b16 %v2487
  %v2767 = vunpack.c.h.b16 %v2487
  %v2768 = vunpack.c.l.b16 %v2488
  %v2769 = vunpack.c.h.b16 %v2488
  %v2770 = vunpack.c.l.b16 %v2489
  %v2771 = vunpack.c.h.b16 %v2489
  %v2772 = vunpack.c.l.b16 %v2490
  %v2773 = vunpack.c.h.b16 %v2490
  %v2774 = vunpack.c.l.b16 %v2491
  %v2775 = vunpack.c.h.b16 %v2491
  %v2776 = vunpack.c.l.b16 %v2492
  %v2777 = vunpack.c.h.b16 %v2492
  %v2778 = vunpack.c.l.b16 %v2493
  %v2779 = vunpack.c.h.b16 %v2493
  %v2780 = vunpack.c.l.b16 %v2494
  %v2781 = vunpack.c.h.b16 %v2494
  %v2782 = vunpack.c.l.b16 %v2495
  %v2783 = vunpack.c.h.b16 %v2495
  %v2784 = vunpack.c.l.b16 %v2496
  %v2785 = vunpack.c.h.b16 %v2496
  %v2786 = vunpack.c.l.b16 %v2497
  %v2787 = vunpack.c.h.b16 %v2497
  %v2788 = vunpack.c.l.b16 %v2498
  %v2789 = vunpack.c.h.b16 %v2498
  %v2790 = vunpack.c.l.b16 %v2499
  %v2791 = vunpack.c.h.b16 %v2499
  %v2792 = vunpack.c.l.b16 %v2500
  %v2793 = vunpack.c.h.b16 %v2500
  %v2794 = vunpack.c.l.b16 %v2501
  %v2795 = vunpack.c.h.b16 %v2501
  %v2796 = vunpack.c.l.b16 %v2502
  %v2797 = vunpack.c.h.b16 %v2502
  %v2798 = vunpack.c.l.b16 %v2503
  %v2799 = vunpack.c.h.b16 %v2503
  %v2800 = vunpack.c.l.b16 %v2504
  %v2801 = vunpack.c.h.b16 %v2504
  %v2802 = vunpack.c.l.b16 %v2505
  %v2803 = vunpack.c.h.b16 %v2505
  %v2804 = vunpack.c.l.b16 %v2506
  %v2805 = vunpack.c.h.b16 %v2506
  %v2806 = vunpack.c.l.b16 %v2507
  %v2807 = vunpack.c.h.b16 %v2507
  %v2808 = vunpack.c.l.b16 %v2508
  %v2809 = vunpack.c.h.b16 %v2508
  %v2810 = vunpack.c.l.b16 %v2509
  %v2811 = vunpack.c.h.b16 %v2509
  %v2812 = vunpack.c.l.b16 %v2510
  %v2813 = vunpack.c.h.b16 %v2510
  %v2814 = vunpack.c.l.b16 %v2511
  %v2815 = vunpack.c.h.b16 %v2511
  %v2816 = vunpack.c.l.b16 %v2512
  %v2817 = vunpack.c.h.b16 %v2512
  %v2818 = vunpack.c.l.b16 %v2513
  %v2819 = vunpack.c.h.b16 %v2513
  %v2820 = vunpack.c.l.b16 %v2514
  %v2821 = vunpack.c.h.b16 %v2514
  %v2822 = vunpack.c.l.b16 %v2515
  %v2823 = vunpack.c.h.b16 %v2515
  %v2824 = vunpack.c.l.b16 %v2516
  %v2825 = vunpack.c.h.b16 %v2516
  %v2826 = vunpack.c.l.b16 %v2517
  %v2827 = vunpack.c.h.b16 %v2517
  %v2828 = vunpack.c.l.b16 %v2518
  %v2829 = vunpack.c.h.b16 %v2518
  %v2830 = vunpack.c.l.b16 %v2519
  %v2831 = vunpack.c.h.b16 %v2519
  %v2832 = vunpack.c.l.b16 %v2520
  %v2833 = vunpack.c.h.b16 %v2520
  %v2834 = vunpack.c.l.b16 %v2521
  %v2835 = vunpack.c.h.b16 %v2521
  %v2836 = vunpack.c.l.b16 %v2522
  %v2837 = vunpack.c.h.b16 %v2522
  %v2838 = vunpack.c.l.b16 %v2523
  %v2839 = vunpack.c.h.b16 %v2523
  %v2840 = vunpack.c.l.b16 %v2524
  %v2841 = vunpack.c.h.b16 %v2524
  %v2842 = vunpack.c.l.b16 %v2525
  %v2843 = vunpack.c.h.b16 %v2525
  %v2844 = vunpack.c.l.b16 %v2526
  %v2845 = vunpack.c.h.b16 %v2526
  %v2846 = vunpack.c.l.b16 %v2527
  %v2847 = vunpack.c.h.b16 %v2527
  %v2848 = vunpack.c.l.b16 %v2528
  %v2849 = vunpack.c.h.b16 %v2528
  %v2850 = vunpack.c.l.b16 %v2529
  %v2851 = vunpack.c.h.b16 %v2529
  %v2852 = vunpack.c.l.b16 %v2530
  %v2853 = vunpack.c.h.b16 %v2530
  %v2854 = vunpack.c.l.b16 %v2531
  %v2855 = vunpack.c.h.b16 %v2531
  %v2856 = vunpack.c.l.b16 %v2532
  %v2857 = vunpack.c.h.b16 %v2532
  %v2858 = vunpack.c.l.b16 %v2533
  %v2859 = vunpack.c.h.b16 %v2533
  %v2860 = vunpack.c.l.b16 %v2534
  %v2861 = vunpack.c.h.b16 %v2534
  %v2862 = vunpack.c.l.b16 %v2535
  %v2863 = vunpack.c.h.b16 %v2535
  %v2864 = vunpack.c.l.b16 %v2536
  %v2865 = vunpack.c.h.b16 %v2536
  %v2866 = vunpack.c.l.b16 %v2537
  %v2867 = vunpack.c.h.b16 %v2537
  %v2868 = vunpack.c.l.b16 %v2538
  %v2869 = vunpack.c.h.b16 %v2538
  %v2870 = vunpack.c.l.b16 %v2539
  %v2871 = vunpack.c.h.b16 %v2539
  %v2872 = vunpack.c.l.b16 %v2540
  %v2873 = vunpack.c.h.b16 %v2540
  %v2874 = vunpack.c.l.b16 %v2541
  %v2875 = vunpack.c.h.b16 %v2541
  %v2876 = vunpack.c.l.b16 %v2542
  %v2877 = vunpack.c.h.b16 %v2542
  %v2878 = vunpack.c.l.b16 %v2543
  %v2879 = vunpack.c.h.b16 %v2543
  %v2880 = vunpack.c.l.b16 %v2544
  %v2881 = vunpack.c.h.b16 %v2544
  %v2882 = vunpack.c.l.b16 %v2545
  %v2883 = vunpack.c.h.b16 %v2545
  %v2884 = vunpack.c.l.b16 %v2546
  %v2885 = vunpack.c.h.b16 %v2546
  %v2886 = vunpack.c.l.b16 %v2547
  %v2887 = vunpack.c.h.b16 %v2547
  %v2888 = vunpack.c.l.b16 %v2548
  %v2889 = vunpack.c.h.b16 %v2548
  %v2890 = vunpack.c.l.b16 %v2549
  %v2891 = vunpack.c.h.b16 %v2549
  %v2892 = vunpack.c.l.b16 %v2550
  %v2893 = vunpack.c.h.b16 %v2550
  %v2894 = vunpack.c.l.b16 %v2551
  %v2895 = vunpack.c.h.b16 %v2551
  %v2896 = vunpack.c.l.b16 %v2552
  %v2897 = vunpack.c.h.b16 %v2552
  %v2898 = vunpack.c.l.b16 %v2553
  %v2899 = vunpack.c.h.b16 %v2553
  %v2900 = vunpack.c.l.b16 %v2554
  %v2901 = vunpack.c.h.b16 %v2554
  %v2902 = vunpack.c.l.b16 %v2555
  %v2903 = vunpack.c.h.b16 %v2555
  %v2904 = vunpack.c.l.b16 %v2556
  %v2905 = vunpack.c.h.b16 %v2556
  %v2906 = vunpack.c.l.b16 %v2557
  %v2907 = vunpack.c.h.b16 %v2557
  %v2908 = vunpack.c.l.b16 %v2558
  %v2909 = vunpack.c.h.b16 %v2558
  %v2910 = vunpack.c.l.b16 %v2559
  %v2911 = vunpack.c.h.b16 %v2559
  %v2912 = vunpack.c.l.b16 %v2560
  %v2913 = vunpack.c.h.b16 %v2560
  %v2914 = vunpack.c.l.b16 %v2561
  %v2915 = vunpack.c.h.b16 %v2561
  %v2916 = vunpack.c.l.b16 %v2562
  %v2917 = vunpack.c.h.b16 %v2562
  %v2918 = vunpack.c.l.b16 %v2563
  %v2919 = vunpack.c.h.b16 %v2563
  %v2920 = vunpack.c.l.b16 %v2564
  %v2921 = vunpack.c.h.b16 %v2564
  %v2922 = vunpack.c.l.b16 %v2565
  %v2923 = vunpack.c.h.b16 %v2565
  %v2924 = vunpack.c.l.b16 %v2566
  %v2925 = vunpack.c.h.b16 %v2566
  %v2926 = vunpack.c.l.b16 %v2567
  %v2927 = vunpack.c.h.b16 %v2567
  %v2928 = vunpack.c.l.b16 %v2568
  %v2929 = vunpack.c.h.b16 %v2568
  %v2930 = vunpack.c.l.b16 %v2569
  %v2931 = vunpack.c.h.b16 %v2569
  %v2932 = vunpack.c.l.b16 %v2570
  %v2933 = vunpack.c.h.b16 %v2570
  %v2934 = vunpack.c.l.b16 %v2571
  %v2935 = vunpack.c.h.b16 %v2571
  %v2936 = vunpack.c.l.b16 %v2572
  %v2937 = vunpack.c.h.b16 %v2572
  %v2938 = vunpack.c.l.b16 %v2573
  %v2939 = vunpack.c.h.b16 %v2573
  %v2940 = vunpack.c.l.b16 %v2574
  %v2941 = vunpack.c.h.b16 %v2574
  %v2942 = vunpack.c.l.b16 %v2575
  %v2943 = vunpack.c.h.b16 %v2575
  %v2944 = vunpack.c.l.b16 %v2576
  %v2945 = vunpack.c.h.b16 %v2576
  %v2946 = vunpack.c.l.b16 %v2577
  %v2947 = vunpack.c.h.b16 %v2577
  %v2948 = vunpack.c.l.b16 %v2578
  %v2949 = vunpack.c.h.b16 %v2578
  %v2950 = vunpack.c.l.b16 %v2579
  %v2951 = vunpack.c.h.b16 %v2579
  %v2952 = vunpack.c.l.b16 %v2580
  %v2953 = vunpack.c.h.b16 %v2580
  %v2954 = vunpack.c.l.b16 %v2581
  %v2955 = vunpack.c.h.b16 %v2581
  %v2956 = vunpack.c.l.b16 %v2582
  %v2957 = vunpack.c.h.b16 %v2582
  %v2958 = vunpack.c.l.b16 %v2583
  %v2959 = vunpack.c.h.b16 %v2583
  %v2960 = vunpack.c.l.b16 %v2584
  %v2961 = vunpack.c.h.b16 %v2584
  %v2962 = vunpack.c.l.b16 %v2585
  %v2963 = vunpack.c.h.b16 %v2585
  %v2964 = vunpack.c.l.b16 %v2586
  %v2965 = vunpack.c.h.b16 %v2586
  %v2966 = vunpack.c.l.b16 %v2587
  %v2967 = vunpack.c.h.b16 %v2587
  %v2968 = vunpack.c.l.b16 %v2588
  %v2969 = vunpack.c.h.b16 %v2588
  %v2970 = vunpack.c.l.b16 %v2589
  %v2971 = vunpack.c.h.b16 %v2589
  %v2972 = vunpack.c.l.b16 %v2590
  %v2973 = vunpack.c.h.b16 %v2590
  %v2974 = vunpack.c.l.b16 %v2591
  %v2975 = vunpack.c.h.b16 %v2591
  %v2976 = vpack.c.b16 %v2724, %v2720
  %v2977 = vpack.c.b16 %v2725, %v2721
  %v2978 = vpack.c.b16 %v2726, %v2722
  %v2979 = vpack.c.b16 %v2727, %v2723
  %v2980 = vpack.c.b16 %v2732, %v2728
  %v2981 = vpack.c.b16 %v2733, %v2729
  %v2982 = vpack.c.b16 %v2734, %v2730
  %v2983 = vpack.c.b16 %v2735, %v2731
  %v2984 = vpack.c.b16 %v2740, %v2736
  %v2985 = vpack.c.b16 %v2741, %v2737
  %v2986 = vpack.c.b16 %v2742, %v2738
  %v2987 = vpack.c.b16 %v2743, %v2739
  %v2988 = vpack.c.b16 %v2748, %v2744
  %v2989 = vpack.c.b16 %v2749, %v2745
  %v2990 = vpack.c.b16 %v2750, %v2746
  %v2991 = vpack.c.b16 %v2751, %v2747
  %v2992 = vpack.c.b16 %v2756, %v2752
  %v2993 = vpack.c.b16 %v2757, %v2753
  %v2994 = vpack.c.b16 %v2758, %v2754
  %v2995 = vpack.c.b16 %v2759, %v2755
  %v2996 = vpack.c.b16 %v2764, %v2760
  %v2997 = vpack.c.b16 %v2765, %v2761
  %v2998 = vpack.c.b16 %v2766, %v2762
  %v2999 = vpack.c.b16 %v2767, %v2763
  %v3000 = vpack.c.b16 %v2772, %v2768
  %v3001 = vpack.c.b16 %v2773, %v2769
  %v3002 = vpack.c.b16 %v2774, %v2770
  %v3003 = vpack.c.b16 %v2775, %v2771
  %v3004 = vpack.c.b16 %v2780, %v2776
  %v3005 = vpack.c.b16 %v2781, %v2777
  %v3006 = vpack.c.b16 %v2782, %v2778
  %v3007 = vpack.c.b16 %v2783, %v2779
  %v3008 = vpack.c.b16 %v2788, %v2784
  %v3009 = vpack.c.b16 %v2789, %v2785
  %v3010 = vpack.c.b16 %v2790, %v2786
  %v3011 = vpack.c.b16 %v2791, %v2787
  %v3012 = vpack.c.b16 %v2796, %v2792
  %v3013 = vpack.c.b16 %v2797, %v2793
  %v3014 = vpack.c.b16 %v2798, %v2794
  %v3015 = vpack.c.b16 %v2799, %v2795
  %v3016 = vpack.c.b16 %v2804, %v2800
  %v3017 = vpack.c.b16 %v2805, %v2801
  %v3018 = vpack.c.b16 %v2806, %v2802
  %v3019 = vpack.c.b16 %v2807, %v2803
  %v3020 = vpack.c.b16 %v2812, %v2808
  %v3021 = vpack.c.b16 %v2813, %v2809
  %v3022 = vpack.c.b16 %v2814, %v2810
  %v3023 = vpack.c.b16 %v2815, %v2811
  %v3024 = vpack.c.b16 %v2820, %v2816
  %v3025 = vpack.c.b16 %v2821, %v2817
  %v3026 = vpack.c.b16 %v2822, %v2818
  %v3027 = vpack.c.b16 %v2823, %v2819
  %v3028 = vpack.c.b16 %v2828, %v2824
  %v3029 = vpack.c.b16 %v2829, %v2825
  %v3030 = vpack.c.b16 %v2830, %v2826
  %v3031 = vpack.c.b16 %v2831, %v2827
  %v3032 = vpack.c.b16 %v2836, %v2832
  %v3033 = vpack.c.b16 %v2837, %v2833
  %v3034 = vpack.c.b16 %v2838, %v2834
  %v3035 = vpack.c.b16 %v2839, %v2835
  %v3036 = vpack.c.b16 %v2844, %v2840
  %v3037 = vpack.c.b16 %v2845, %v2841
  %v3038 = vpack.c.b16 %v2846, %v2842
  %v3039 = vpack.c.b16 %v2847, %v2843
  %v3040 = vpack.c.b16 %v2852, %v2848
  %v3041 = vpack.c.b16 %v2853, %v2849
  %v3042 = vpack.c.b16 %v2854, %v2850
  %v3043 = vpack.c.b16 %v2855, %v2851
  %v3044 = vpack.c.b16 %v2860, %v2856
  %v3045 = vpack.c.b16 %v2861, %v2857
  %v3046 = vpack.c.b16 %v2862, %v2858
  %v3047 = vpack.c.b16 %v2863, %v2859
  %v3048 = vpack.c.b16 %v2868, %v2864
  %v3049 = vpack.c.b16 %v2869, %v2865
  %v3050 = vpack.c.b16 %v2870, %v2866
  %v3051 = vpack.c.b16 %v2871, %v2867
  %v3052 = vpack.c.b16 %v2876, %v2872
  %v3053 = vpack.c.b16 %v2877, %v2873
  %v3054 = vpack.c.b16 %v2878, %v2874
  %v3055 = vpack.c.b16 %v2879, %v2875
  %v3056 = vpack.c.b16 %v2884, %v2880
  %v3057 = vpack.c.b16 %v2885, %v2881
  %v3058 = vpack.c.b16 %v2886, %v2882
  %v3059 = vpack.c.b16 %v2887, %v2883
  %v3060 = vpack.c.b16 %v2892, %v2888
  %v3061 = vpack.c.b16 %v2893, %v2889
  %v3062 = vpack.c.b16 %v2894, %v2890
  %v3063 = vpack.c.b16 %v2895, %v2891
  %v3064 = vpack.c.b16 %v2900, %v2896
  %v3065 = vpack.c.b16 %v2901, %v2897
  %v3066 = vpack.c.b16 %v2902, %v2898
  %v3067 = vpack.c.b16 %v2903, %v2899
  %v3068 = vpack.c.b16 %v2908, %v2904
  %v3069 = vpack.c.b16 %v2909, %v2905
  %v3070 = vpack.c.b16 %v2910, %v2906
  %v3071 = vpack.c.b16 %v2911, %v2907
  %v3072 = vpack.c.b16 %v2916, %v2912
  %v3073 = vpack.c.b16 %v2917, %v2913
  %v3074 = vpack.c.b16 %v2918, %v2914
  %v3075 = vpack.c.b16 %v2919, %v2915
  %v3076 = vpack.c.b16 %v2924, %v2920
  %v3077 = vpack.c.b16 %v2925, %v2921
  %v3078 = vpack.c.b16 %v2926, %v2922
  %v3079 = vpack.c.b16 %v2927, %v2923
  %v3080 = vpack.c.b16 %v2932, %v2928
  %v3081 = vpack.c.b16 %v2933, %v2929
  %v3082 = vpack.c.b16 %v2934, %v2930
  %v3083 = vpack.c.b16 %v2935, %v2931
  %v3084 = vpack.c.b16 %v2940, %v2936
  %v3085 = vpack.c.b16 %v2941, %v2937
  %v3086 = vpack.c.b16 %v2942, %v2938
  %v3087 = vpack.c.b16 %v2943, %v2939
  %v3088 = vpack.c.b16 %v2948, %v2944
  %v3089 = vpack.c.b16 %v2949, %v2945
  %v3090 = vpack.c.b16 %v2950, %v2946
  %v3091 = vpack.c.b16 %v2951, %v2947
  %v3092 = vpack.c.b16 %v2956, %v2952
  %v3093 = vpack.c.b16 %v2957, %v2953
  %v3094 = vpack.c.b16 %v2958, %v2954
  %v3095 = vpack.c.b16 %v2959, %v2955
  %v3096 = vpack.c.b16 %v2964, %v2960
  %v3097 = vpack.c.b16 %v2965, %v2961
  %v3098 = vpack.c.b16 %v2966, %v2962
  %v3099 = vpack.c.b16 %v2967, %v2963
  %v3100 = vpack.c.b16 %v2972, %v2968
  %v3101 = vpack.c.b16 %v2973, %v2969
  %v3102 = vpack.c.b16 %v2974, %v2970
  %v3103 = vpack.c.b16 %v2975, %v2971
  %3232 = vmatprep.subr.bf16.mxu0 %v2977
  %3233 = vmatpush1.bf16.msra.mxu0 %v2976
  %3234 = vmatprep.subr.bf16.mxu0 %v2981
  %3235 = vmatpush1.bf16.msra.mxu0 %v2980
  %3236 = vmatprep.subr.bf16.mxu0 %v2985
  %3237 = vmatpush1.bf16.msra.mxu0 %v2984
  %3238 = vmatprep.subr.bf16.mxu0 %v2989
  %3239 = vmatpush1.bf16.msra.mxu0 %v2988
  %3240 = vmatprep.subr.bf16.mxu0 %v2993
  %3241 = vmatpush1.bf16.msra.mxu0 %v2992
  %3242 = vmatprep.subr.bf16.mxu0 %v2997
  %3243 = vmatpush1.bf16.msra.mxu0 %v2996
  %3244 = vmatprep.subr.bf16.mxu0 %v3001
  %3245 = vmatpush1.bf16.msra.mxu0 %v3000
  %3246 = vmatprep.subr.bf16.mxu0 %v3005
  %3247 = vmatpush1.bf16.msra.mxu0 %v3004
  %3248 = vmatprep.subr.bf16.mxu0 %v3009
  %3249 = vmatpush1.bf16.msra.mxu0 %v3008
  %3250 = vmatprep.subr.bf16.mxu0 %v3013
  %3251 = vmatpush1.bf16.msra.mxu0 %v3012
  %3252 = vmatprep.subr.bf16.mxu0 %v3017
  %3253 = vmatpush1.bf16.msra.mxu0 %v3016
  %3254 = vmatprep.subr.bf16.mxu0 %v3021
  %3255 = vmatpush1.bf16.msra.mxu0 %v3020
  %3256 = vmatprep.subr.bf16.mxu0 %v3025
  %3257 = vmatpush1.bf16.msra.mxu0 %v3024
  %3258 = vmatprep.subr.bf16.mxu0 %v3029
  %3259 = vmatpush1.bf16.msra.mxu0 %v3028
  %3260 = vmatprep.subr.bf16.mxu0 %v3033
  %3261 = vmatpush1.bf16.msra.mxu0 %v3032
  %3262 = vmatprep.subr.bf16.mxu0 %v3037
  %3263 = vmatpush1.bf16.msra.mxu0 %v3036
  %3264 = vmatprep.mubr.bf16.mxu0 %v2433
  %3265 = vmatmul.mubr.bf16.gmra.mrb[0].mxu0 %v2432
  %v3266 = vpop.f32.mrb[0].mxu0
  %v3267 = vadd.f32 0.0, %v3266
  %v3268 = vpop.f32.mrb[0].mxu0
  %v3269 = vadd.f32 0.0, %v3268
  %v3270 = vpop.f32.mrb[0].mxu0
  %v3271 = vadd.f32 0.0, %v3270
  %v3272 = vpop.f32.mrb[0].mxu0
  %v3273 = vadd.f32 0.0, %v3272
  %3274 = vmatprep.mubr.bf16.mxu0 %v2437
  %3275 = vmatmul.mubr.bf16.gmra.mrb[0].mxu0 %v2436
  %v3276 = vpop.f32.mrb[0].mxu0
  %v3277 = vadd.f32 0.0, %v3276
  %v3278 = vpop.f32.mrb[0].mxu0
  %v3279 = vadd.f32 0.0, %v3278
  %v3280 = vpop.f32.mrb[0].mxu0
  %v3281 = vadd.f32 0.0, %v3280
  %v3282 = vpop.f32.mrb[0].mxu0
  %v3283 = vadd.f32 0.0, %v3282
  %3284 = vmatprep.mubr.bf16.mxu0 %v2441
  %3285 = vmatmul.mubr.bf16.gmra.mrb[0].mxu0 %v2440
  %v3286 = vpop.f32.mrb[0].mxu0
  %v3287 = vadd.f32 0.0, %v3286
  %v3288 = vpop.f32.mrb[0].mxu0
  %v3289 = vadd.f32 0.0, %v3288
  %v3290 = vpop.f32.mrb[0].mxu0
  %v3291 = vadd.f32 0.0, %v3290
  %v3292 = vpop.f32.mrb[0].mxu0
  %v3293 = vadd.f32 0.0, %v3292
  %3294 = vmatprep.mubr.bf16.mxu0 %v2445
  %3295 = vmatmul.mubr.bf16.gmra.mrb[0].mxu0 %v2444
  %v3296 = vpop.f32.mrb[0].mxu0
  %v3297 = vadd.f32 0.0, %v3296
  %v3298 = vpop.f32.mrb[0].mxu0
  %v3299 = vadd.f32 0.0, %v3298
  %v3300 = vpop.f32.mrb[0].mxu0
  %v3301 = vadd.f32 0.0, %v3300
  %v3302 = vpop.f32.mrb[0].mxu0
  %v3303 = vadd.f32 0.0, %v3302
  %3304 = vmatprep.mubr.bf16.mxu0 %v2449
  %3305 = vmatmul.mubr.bf16.gmra.mrb[0].mxu0 %v2448
  %v3306 = vpop.f32.mrb[0].mxu0
  %v3307 = vadd.f32 0.0, %v3306
  %v3308 = vpop.f32.mrb[0].mxu0
  %v3309 = vadd.f32 0.0, %v3308
  %v3310 = vpop.f32.mrb[0].mxu0
  %v3311 = vadd.f32 0.0, %v3310
  %v3312 = vpop.f32.mrb[0].mxu0
  %v3313 = vadd.f32 0.0, %v3312
  %3314 = vmatprep.mubr.bf16.mxu0 %v2453
  %3315 = vmatmul.mubr.bf16.gmra.mrb[0].mxu0 %v2452
  %v3316 = vpop.f32.mrb[0].mxu0
  %v3317 = vadd.f32 0.0, %v3316
  %v3318 = vpop.f32.mrb[0].mxu0
  %v3319 = vadd.f32 0.0, %v3318
  %v3320 = vpop.f32.mrb[0].mxu0
  %v3321 = vadd.f32 0.0, %v3320
  %v3322 = vpop.f32.mrb[0].mxu0
  %v3323 = vadd.f32 0.0, %v3322
  %3324 = vmatprep.mubr.bf16.mxu0 %v2457
  %3325 = vmatmul.mubr.bf16.gmra.mrb[0].mxu0 %v2456
  %v3326 = vpop.f32.mrb[0].mxu0
  %v3327 = vadd.f32 0.0, %v3326
  %v3328 = vpop.f32.mrb[0].mxu0
  %v3329 = vadd.f32 0.0, %v3328
  %v3330 = vpop.f32.mrb[0].mxu0
  %v3331 = vadd.f32 0.0, %v3330
  %v3332 = vpop.f32.mrb[0].mxu0
  %v3333 = vadd.f32 0.0, %v3332
  %3334 = vmatprep.mubr.bf16.mxu0 %v2461
  %3335 = vmatmul.mubr.bf16.gmra.mrb[0].mxu0 %v2460
  %v3336 = vpop.f32.mrb[0].mxu0
  %v3337 = vadd.f32 0.0, %v3336
  %v3338 = vpop.f32.mrb[0].mxu0
  %v3339 = vadd.f32 0.0, %v3338
  %v3340 = vpop.f32.mrb[0].mxu0
  %v3341 = vadd.f32 0.0, %v3340
  %v3342 = vpop.f32.mrb[0].mxu0
  %v3343 = vadd.f32 0.0, %v3342
  %3344 = vdwg.mxu0
  %3345 = vmatprep.subr.bf16.mxu0 %v3041
  %3346 = vmatpush1.bf16.msra.mxu0 %v3040
  %3347 = vmatprep.subr.bf16.mxu0 %v3045
  %3348 = vmatpush1.bf16.msra.mxu0 %v3044
  %3349 = vmatprep.subr.bf16.mxu0 %v3049
  %3350 = vmatpush1.bf16.msra.mxu0 %v3048
  %3351 = vmatprep.subr.bf16.mxu0 %v3053
  %3352 = vmatpush1.bf16.msra.mxu0 %v3052
  %3353 = vmatprep.subr.bf16.mxu0 %v3057
  %3354 = vmatpush1.bf16.msra.mxu0 %v3056
  %3355 = vmatprep.subr.bf16.mxu0 %v3061
  %3356 = vmatpush1.bf16.msra.mxu0 %v3060
  %3357 = vmatprep.subr.bf16.mxu0 %v3065
  %3358 = vmatpush1.bf16.msra.mxu0 %v3064
  %3359 = vmatprep.subr.bf16.mxu0 %v3069
  %3360 = vmatpush1.bf16.msra.mxu0 %v3068
  %3361 = vmatprep.subr.bf16.mxu0 %v3073
  %3362 = vmatpush1.bf16.msra.mxu0 %v3072
  %3363 = vmatprep.subr.bf16.mxu0 %v3077
  %3364 = vmatpush1.bf16.msra.mxu0 %v3076
  %3365 = vmatprep.subr.bf16.mxu0 %v3081
  %3366 = vmatpush1.bf16.msra.mxu0 %v3080
  %3367 = vmatprep.subr.bf16.mxu0 %v3085
  %3368 = vmatpush1.bf16.msra.mxu0 %v3084
  %3369 = vmatprep.subr.bf16.mxu0 %v3089
  %3370 = vmatpush1.bf16.msra.mxu0 %v3088
  %3371 = vmatprep.subr.bf16.mxu0 %v3093
  %3372 = vmatpush1.bf16.msra.mxu0 %v3092
  %3373 = vmatprep.subr.bf16.mxu0 %v3097
  %3374 = vmatpush1.bf16.msra.mxu0 %v3096
  %3375 = vmatprep.subr.bf16.mxu0 %v3101
  %3376 = vmatpush1.bf16.msra.mxu0 %v3100
  %3377 = vmatprep.mubr.bf16.mxu0 %v2435
  %3378 = vmatmul.mubr.bf16.gmra.mrb[0].mxu0 %v2434
  %v3379 = vpop.f32.mrb[0].mxu0
  %v3380 = vadd.f32 %v3267, %v3379
  %v3381 = vpop.f32.mrb[0].mxu0
  %v3382 = vadd.f32 %v3269, %v3381
  %v3383 = vpop.f32.mrb[0].mxu0
  %v3384 = vadd.f32 %v3271, %v3383
  %v3385 = vpop.f32.mrb[0].mxu0
  %v3386 = vadd.f32 %v3273, %v3385
  %3387 = vmatprep.mubr.bf16.mxu0 %v2439
  %3388 = vmatmul.mubr.bf16.gmra.mrb[0].mxu0 %v2438
  %v3389 = vpop.f32.mrb[0].mxu0
  %v3390 = vadd.f32 %v3277, %v3389
  %v3391 = vpop.f32.mrb[0].mxu0
  %v3392 = vadd.f32 %v3279, %v3391
  %v3393 = vpop.f32.mrb[0].mxu0
  %v3394 = vadd.f32 %v3281, %v3393
  %v3395 = vpop.f32.mrb[0].mxu0
  %v3396 = vadd.f32 %v3283, %v3395
  %3397 = vmatprep.mubr.bf16.mxu0 %v2443
  %3398 = vmatmul.mubr.bf16.gmra.mrb[0].mxu0 %v2442
  %v3399 = vpop.f32.mrb[0].mxu0
  %v3400 = vadd.f32 %v3287, %v3399
  %v3401 = vpop.f32.mrb[0].mxu0
  %v3402 = vadd.f32 %v3289, %v3401
  %v3403 = vpop.f32.mrb[0].mxu0
  %v3404 = vadd.f32 %v3291, %v3403
  %v3405 = vpop.f32.mrb[0].mxu0
  %v3406 = vadd.f32 %v3293, %v3405
  %3407 = vmatprep.mubr.bf16.mxu0 %v2447
  %3408 = vmatmul.mubr.bf16.gmra.mrb[0].mxu0 %v2446
  %v3409 = vpop.f32.mrb[0].mxu0
  %v3410 = vadd.f32 %v3297, %v3409
  %v3411 = vpop.f32.mrb[0].mxu0
  %v3412 = vadd.f32 %v3299, %v3411
  %v3413 = vpop.f32.mrb[0].mxu0
  %v3414 = vadd.f32 %v3301, %v3413
  %v3415 = vpop.f32.mrb[0].mxu0
  %v3416 = vadd.f32 %v3303, %v3415
  %3417 = vmatprep.mubr.bf16.mxu0 %v2451
  %3418 = vmatmul.mubr.bf16.gmra.mrb[0].mxu0 %v2450
  %v3419 = vpop.f32.mrb[0].mxu0
  %v3420 = vadd.f32 %v3307, %v3419
  %v3421 = vpop.f32.mrb[0].mxu0
  %v3422 = vadd.f32 %v3309, %v3421
  %v3423 = vpop.f32.mrb[0].mxu0
  %v3424 = vadd.f32 %v3311, %v3423
  %v3425 = vpop.f32.mrb[0].mxu0
  %v3426 = vadd.f32 %v3313, %v3425
  %3427 = vmatprep.mubr.bf16.mxu0 %v2455
  %3428 = vmatmul.mubr.bf16.gmra.mrb[0].mxu0 %v2454
  %v3429 = vpop.f32.mrb[0].mxu0
  %v3430 = vadd.f32 %v3317, %v3429
  %v3431 = vpop.f32.mrb[0].mxu0
  %v3432 = vadd.f32 %v3319, %v3431
  %v3433 = vpop.f32.mrb[0].mxu0
  %v3434 = vadd.f32 %v3321, %v3433
  %v3435 = vpop.f32.mrb[0].mxu0
  %v3436 = vadd.f32 %v3323, %v3435
  %3437 = vmatprep.mubr.bf16.mxu0 %v2459
  %3438 = vmatmul.mubr.bf16.gmra.mrb[0].mxu0 %v2458
  %v3439 = vpop.f32.mrb[0].mxu0
  %v3440 = vadd.f32 %v3327, %v3439
  %v3441 = vpop.f32.mrb[0].mxu0
  %v3442 = vadd.f32 %v3329, %v3441
  %v3443 = vpop.f32.mrb[0].mxu0
  %v3444 = vadd.f32 %v3331, %v3443
  %v3445 = vpop.f32.mrb[0].mxu0
  %v3446 = vadd.f32 %v3333, %v3445
  %3447 = vmatprep.mubr.bf16.mxu0 %v2463
  %3448 = vmatmul.mubr.bf16.gmra.mrb[0].mxu0 %v2462
  %v3449 = vpop.f32.mrb[0].mxu0
  %v3450 = vadd.f32 %v3337, %v3449
  %v3451 = vpop.f32.mrb[0].mxu0
  %v3452 = vadd.f32 %v3339, %v3451
  %v3453 = vpop.f32.mrb[0].mxu0
  %v3454 = vadd.f32 %v3341, %v3453
  %v3455 = vpop.f32.mrb[0].mxu0
  %v3456 = vadd.f32 %v3343, %v3455
  %3457 = vdwg.mxu0
  %3458 = vmatprep.subr.bf16.mxu0 %v2979
  %3459 = vmatpush1.bf16.msra.mxu0 %v2978
  %3460 = vmatprep.subr.bf16.mxu0 %v2983
  %3461 = vmatpush1.bf16.msra.mxu0 %v2982
  %3462 = vmatprep.subr.bf16.mxu0 %v2987
  %3463 = vmatpush1.bf16.msra.mxu0 %v2986
  %3464 = vmatprep.subr.bf16.mxu0 %v2991
  %3465 = vmatpush1.bf16.msra.mxu0 %v2990
  %3466 = vmatprep.subr.bf16.mxu0 %v2995
  %3467 = vmatpush1.bf16.msra.mxu0 %v2994
  %3468 = vmatprep.subr.bf16.mxu0 %v2999
  %3469 = vmatpush1.bf16.msra.mxu0 %v2998
  %3470 = vmatprep.subr.bf16.mxu0 %v3003
  %3471 = vmatpush1.bf16.msra.mxu0 %v3002
  %3472 = vmatprep.subr.bf16.mxu0 %v3007
  %3473 = vmatpush1.bf16.msra.mxu0 %v3006
  %3474 = vmatprep.subr.bf16.mxu0 %v3011
  %3475 = vmatpush1.bf16.msra.mxu0 %v3010
  %3476 = vmatprep.subr.bf16.mxu0 %v3015
  %3477 = vmatpush1.bf16.msra.mxu0 %v3014
  %3478 = vmatprep.subr.bf16.mxu0 %v3019
  %3479 = vmatpush1.bf16.msra.mxu0 %v3018
  %3480 = vmatprep.subr.bf16.mxu0 %v3023
  %3481 = vmatpush1.bf16.msra.mxu0 %v3022
  %3482 = vmatprep.subr.bf16.mxu0 %v3027
  %3483 = vmatpush1.bf16.msra.mxu0 %v3026
  %3484 = vmatprep.subr.bf16.mxu0 %v3031
  %3485 = vmatpush1.bf16.msra.mxu0 %v3030
  %3486 = vmatprep.subr.bf16.mxu0 %v3035
  %3487 = vmatpush1.bf16.msra.mxu0 %v3034
  %3488 = vmatprep.subr.bf16.mxu0 %v3039
  %3489 = vmatpush1.bf16.msra.mxu0 %v3038
  %3490 = vmatprep.mubr.bf16.mxu0 %v2433
  %3491 = vmatmul.mubr.bf16.gmra.mrb[0].mxu0 %v2432
  %v3492 = vpop.f32.mrb[0].mxu0
  %v3493 = vadd.f32 0.0, %v3492
  %v3494 = vpop.f32.mrb[0].mxu0
  %v3495 = vadd.f32 0.0, %v3494
  %v3496 = vpop.f32.mrb[0].mxu0
  %v3497 = vadd.f32 0.0, %v3496
  %v3498 = vpop.f32.mrb[0].mxu0
  %v3499 = vadd.f32 0.0, %v3498
  %3500 = vmatprep.mubr.bf16.mxu0 %v2437
  %3501 = vmatmul.mubr.bf16.gmra.mrb[0].mxu0 %v2436
  %v3502 = vpop.f32.mrb[0].mxu0
  %v3503 = vadd.f32 0.0, %v3502
  %v3504 = vpop.f32.mrb[0].mxu0
  %v3505 = vadd.f32 0.0, %v3504
  %v3506 = vpop.f32.mrb[0].mxu0
  %v3507 = vadd.f32 0.0, %v3506
  %v3508 = vpop.f32.mrb[0].mxu0
  %v3509 = vadd.f32 0.0, %v3508
  %3510 = vmatprep.mubr.bf16.mxu0 %v2441
  %3511 = vmatmul.mubr.bf16.gmra.mrb[0].mxu0 %v2440
  %v3512 = vpop.f32.mrb[0].mxu0
  %v3513 = vadd.f32 0.0, %v3512
  %v3514 = vpop.f32.mrb[0].mxu0
  %v3515 = vadd.f32 0.0, %v3514
  %v3516 = vpop.f32.mrb[0].mxu0
  %v3517 = vadd.f32 0.0, %v3516
  %v3518 = vpop.f32.mrb[0].mxu0
  %v3519 = vadd.f32 0.0, %v3518
  %3520 = vmatprep.mubr.bf16.mxu0 %v2445
  %3521 = vmatmul.mubr.bf16.gmra.mrb[0].mxu0 %v2444
  %v3522 = vpop.f32.mrb[0].mxu0
  %v3523 = vadd.f32 0.0, %v3522
  %v3524 = vpop.f32.mrb[0].mxu0
  %v3525 = vadd.f32 0.0, %v3524
  %v3526 = vpop.f32.mrb[0].mxu0
  %v3527 = vadd.f32 0.0, %v3526
  %v3528 = vpop.f32.mrb[0].mxu0
  %v3529 = vadd.f32 0.0, %v3528
  %3530 = vmatprep.mubr.bf16.mxu0 %v2449
  %3531 = vmatmul.mubr.bf16.gmra.mrb[0].mxu0 %v2448
  %v3532 = vpop.f32.mrb[0].mxu0
  %v3533 = vadd.f32 0.0, %v3532
  %v3534 = vpop.f32.mrb[0].mxu0
  %v3535 = vadd.f32 0.0, %v3534
  %v3536 = vpop.f32.mrb[0].mxu0
  %v3537 = vadd.f32 0.0, %v3536
  %v3538 = vpop.f32.mrb[0].mxu0
  %v3539 = vadd.f32 0.0, %v3538
  %3540 = vmatprep.mubr.bf16.mxu0 %v2453
  %3541 = vmatmul.mubr.bf16.gmra.mrb[0].mxu0 %v2452
  %v3542 = vpop.f32.mrb[0].mxu0
  %v3543 = vadd.f32 0.0, %v3542
  %v3544 = vpop.f32.mrb[0].mxu0
  %v3545 = vadd.f32 0.0, %v3544
  %v3546 = vpop.f32.mrb[0].mxu0
  %v3547 = vadd.f32 0.0, %v3546
  %v3548 = vpop.f32.mrb[0].mxu0
  %v3549 = vadd.f32 0.0, %v3548
  %3550 = vmatprep.mubr.bf16.mxu0 %v2457
  %3551 = vmatmul.mubr.bf16.gmra.mrb[0].mxu0 %v2456
  %v3552 = vpop.f32.mrb[0].mxu0
  %v3553 = vadd.f32 0.0, %v3552
  %v3554 = vpop.f32.mrb[0].mxu0
  %v3555 = vadd.f32 0.0, %v3554
  %v3556 = vpop.f32.mrb[0].mxu0
  %v3557 = vadd.f32 0.0, %v3556
  %v3558 = vpop.f32.mrb[0].mxu0
  %v3559 = vadd.f32 0.0, %v3558
  %3560 = vmatprep.mubr.bf16.mxu0 %v2461
  %3561 = vmatmul.mubr.bf16.gmra.mrb[0].mxu0 %v2460
  %v3562 = vpop.f32.mrb[0].mxu0
  %v3563 = vadd.f32 0.0, %v3562
  %v3564 = vpop.f32.mrb[0].mxu0
  %v3565 = vadd.f32 0.0, %v3564
  %v3566 = vpop.f32.mrb[0].mxu0
  %v3567 = vadd.f32 0.0, %v3566
  %v3568 = vpop.f32.mrb[0].mxu0
  %v3569 = vadd.f32 0.0, %v3568
  %3570 = vdwg.mxu0
  %3571 = vmatprep.subr.bf16.mxu0 %v3043
  %3572 = vmatpush1.bf16.msra.mxu0 %v3042
  %3573 = vmatprep.subr.bf16.mxu0 %v3047
  %3574 = vmatpush1.bf16.msra.mxu0 %v3046
  %3575 = vmatprep.subr.bf16.mxu0 %v3051
  %3576 = vmatpush1.bf16.msra.mxu0 %v3050
  %3577 = vmatprep.subr.bf16.mxu0 %v3055
  %3578 = vmatpush1.bf16.msra.mxu0 %v3054
  %3579 = vmatprep.subr.bf16.mxu0 %v3059
  %3580 = vmatpush1.bf16.msra.mxu0 %v3058
  %3581 = vmatprep.subr.bf16.mxu0 %v3063
  %3582 = vmatpush1.bf16.msra.mxu0 %v3062
  %3583 = vmatprep.subr.bf16.mxu0 %v3067
  %3584 = vmatpush1.bf16.msra.mxu0 %v3066
  %3585 = vmatprep.subr.bf16.mxu0 %v3071
  %3586 = vmatpush1.bf16.msra.mxu0 %v3070
  %3587 = vmatprep.subr.bf16.mxu0 %v3075
  %3588 = vmatpush1.bf16.msra.mxu0 %v3074
  %3589 = vmatprep.subr.bf16.mxu0 %v3079
  %3590 = vmatpush1.bf16.msra.mxu0 %v3078
  %3591 = vmatprep.subr.bf16.mxu0 %v3083
  %3592 = vmatpush1.bf16.msra.mxu0 %v3082
  %3593 = vmatprep.subr.bf16.mxu0 %v3087
  %3594 = vmatpush1.bf16.msra.mxu0 %v3086
  %3595 = vmatprep.subr.bf16.mxu0 %v3091
  %3596 = vmatpush1.bf16.msra.mxu0 %v3090
  %3597 = vmatprep.subr.bf16.mxu0 %v3095
  %3598 = vmatpush1.bf16.msra.mxu0 %v3094
  %3599 = vmatprep.subr.bf16.mxu0 %v3099
  %3600 = vmatpush1.bf16.msra.mxu0 %v3098
  %3601 = vmatprep.subr.bf16.mxu0 %v3103
  %3602 = vmatpush1.bf16.msra.mxu0 %v3102
  %3603 = vmatprep.mubr.bf16.mxu0 %v2435
  %3604 = vmatmul.mubr.bf16.gmra.mrb[0].mxu0 %v2434
  %v3605 = vpop.f32.mrb[0].mxu0
  %v3606 = vadd.f32 %v3493, %v3605
  %v3607 = vpop.f32.mrb[0].mxu0
  %v3608 = vadd.f32 %v3495, %v3607
  %v3609 = vpop.f32.mrb[0].mxu0
  %v3610 = vadd.f32 %v3497, %v3609
  %v3611 = vpop.f32.mrb[0].mxu0
  %v3612 = vadd.f32 %v3499, %v3611
  %3613 = vmatprep.mubr.bf16.mxu0 %v2439
  %3614 = vmatmul.mubr.bf16.gmra.mrb[0].mxu0 %v2438
  %v3615 = vpop.f32.mrb[0].mxu0
  %v3616 = vadd.f32 %v3503, %v3615
  %v3617 = vpop.f32.mrb[0].mxu0
  %v3618 = vadd.f32 %v3505, %v3617
  %v3619 = vpop.f32.mrb[0].mxu0
  %v3620 = vadd.f32 %v3507, %v3619
  %v3621 = vpop.f32.mrb[0].mxu0
  %v3622 = vadd.f32 %v3509, %v3621
  %3623 = vmatprep.mubr.bf16.mxu0 %v2443
  %3624 = vmatmul.mubr.bf16.gmra.mrb[0].mxu0 %v2442
  %v3625 = vpop.f32.mrb[0].mxu0
  %v3626 = vadd.f32 %v3513, %v3625
  %v3627 = vpop.f32.mrb[0].mxu0
  %v3628 = vadd.f32 %v3515, %v3627
  %v3629 = vpop.f32.mrb[0].mxu0
  %v3630 = vadd.f32 %v3517, %v3629
  %v3631 = vpop.f32.mrb[0].mxu0
  %v3632 = vadd.f32 %v3519, %v3631
  %3633 = vmatprep.mubr.bf16.mxu0 %v2447
  %3634 = vmatmul.mubr.bf16.gmra.mrb[0].mxu0 %v2446
  %v3635 = vpop.f32.mrb[0].mxu0
  %v3636 = vadd.f32 %v3523, %v3635
  %v3637 = vpop.f32.mrb[0].mxu0
  %v3638 = vadd.f32 %v3525, %v3637
  %v3639 = vpop.f32.mrb[0].mxu0
  %v3640 = vadd.f32 %v3527, %v3639
  %v3641 = vpop.f32.mrb[0].mxu0
  %v3642 = vadd.f32 %v3529, %v3641
  %3643 = vmatprep.mubr.bf16.mxu0 %v2451
  %3644 = vmatmul.mubr.bf16.gmra.mrb[0].mxu0 %v2450
  %v3645 = vpop.f32.mrb[0].mxu0
  %v3646 = vadd.f32 %v3533, %v3645
  %v3647 = vpop.f32.mrb[0].mxu0
  %v3648 = vadd.f32 %v3535, %v3647
  %v3649 = vpop.f32.mrb[0].mxu0
  %v3650 = vadd.f32 %v3537, %v3649
  %v3651 = vpop.f32.mrb[0].mxu0
  %v3652 = vadd.f32 %v3539, %v3651
  %3653 = vmatprep.mubr.bf16.mxu0 %v2455
  %3654 = vmatmul.mubr.bf16.gmra.mrb[0].mxu0 %v2454
  %v3655 = vpop.f32.mrb[0].mxu0
  %v3656 = vadd.f32 %v3543, %v3655
  %v3657 = vpop.f32.mrb[0].mxu0
  %v3658 = vadd.f32 %v3545, %v3657
  %v3659 = vpop.f32.mrb[0].mxu0
  %v3660 = vadd.f32 %v3547, %v3659
  %v3661 = vpop.f32.mrb[0].mxu0
  %v3662 = vadd.f32 %v3549, %v3661
  %3663 = vmatprep.mubr.bf16.mxu0 %v2459
  %3664 = vmatmul.mubr.bf16.gmra.mrb[0].mxu0 %v2458
  %v3665 = vpop.f32.mrb[0].mxu0
  %v3666 = vadd.f32 %v3553, %v3665
  %v3667 = vpop.f32.mrb[0].mxu0
  %v3668 = vadd.f32 %v3555, %v3667
  %v3669 = vpop.f32.mrb[0].mxu0
  %v3670 = vadd.f32 %v3557, %v3669
  %v3671 = vpop.f32.mrb[0].mxu0
  %v3672 = vadd.f32 %v3559, %v3671
  %3673 = vmatprep.mubr.bf16.mxu0 %v2463
  %3674 = vmatmul.mubr.bf16.gmra.mrb[0].mxu0 %v2462
  %v3675 = vpop.f32.mrb[0].mxu0
  %v3676 = vadd.f32 %v3563, %v3675
  %v3677 = vpop.f32.mrb[0].mxu0
  %v3678 = vadd.f32 %v3565, %v3677
  %v3679 = vpop.f32.mrb[0].mxu0
  %v3680 = vadd.f32 %v3567, %v3679
  %v3681 = vpop.f32.mrb[0].mxu0
  %v3682 = vadd.f32 %v3569, %v3681
  %3683 = vdwg.mxu0
  %v3684 = vpack.c.bf16 %v3384, %v3380
  %v3685 = vpack.c.bf16 %v3386, %v3382
  %v3686 = vpack.c.bf16 %v3610, %v3606
  %v3687 = vpack.c.bf16 %v3612, %v3608
  %v3688 = vpack.c.bf16 %v3394, %v3390
  %v3689 = vpack.c.bf16 %v3396, %v3392
  %v3690 = vpack.c.bf16 %v3620, %v3616
  %v3691 = vpack.c.bf16 %v3622, %v3618
  %v3692 = vpack.c.bf16 %v3404, %v3400
  %v3693 = vpack.c.bf16 %v3406, %v3402
  %v3694 = vpack.c.bf16 %v3630, %v3626
  %v3695 = vpack.c.bf16 %v3632, %v3628
  %v3696 = vpack.c.bf16 %v3414, %v3410
  %v3697 = vpack.c.bf16 %v3416, %v3412
  %v3698 = vpack.c.bf16 %v3640, %v3636
  %v3699 = vpack.c.bf16 %v3642, %v3638
  %v3700 = vpack.c.bf16 %v3424, %v3420
  %v3701 = vpack.c.bf16 %v3426, %v3422
  %v3702 = vpack.c.bf16 %v3650, %v3646
  %v3703 = vpack.c.bf16 %v3652, %v3648
  %v3704 = vpack.c.bf16 %v3434, %v3430
  %v3705 = vpack.c.bf16 %v3436, %v3432
  %v3706 = vpack.c.bf16 %v3660, %v3656
  %v3707 = vpack.c.bf16 %v3662, %v3658
  %v3708 = vpack.c.bf16 %v3444, %v3440
  %v3709 = vpack.c.bf16 %v3446, %v3442
  %v3710 = vpack.c.bf16 %v3670, %v3666
  %v3711 = vpack.c.bf16 %v3672, %v3668
  %v3712 = vpack.c.bf16 %v3454, %v3450
  %v3713 = vpack.c.bf16 %v3456, %v3452
  %v3714 = vpack.c.bf16 %v3680, %v3676
  %v3715 = vpack.c.bf16 %v3682, %v3678
  %v3716 = vld [vmem:[%s7] sm:$0xf]
  %v3718 = vlaneseq
  %v3719 = vshrl.u32 %v3718, 7
  %v3720 = vsub.s32 0, %v3719
  %v3721 = vrot.slane %v3716, %v3720
  %v3722 = vlaneseq
  %v3723 = vshrl.u32 %v3722, 7
  %v3724 = vsub.s32 1, %v3723
  %v3725 = vrot.slane %v3716, %v3724
  %v3726 = vlaneseq
  %v3727 = vshrl.u32 %v3726, 7
  %v3728 = vsub.s32 2, %v3727
  %v3729 = vrot.slane %v3716, %v3728
  %v3730 = vlaneseq
  %v3731 = vshrl.u32 %v3730, 7
  %v3732 = vsub.s32 3, %v3731
  %v3733 = vrot.slane %v3716, %v3732
  %3738 = vmatprep.subr.bf16.mxu0 %v3685
  %3739 = vmatpush1.bf16.msra.mxu0 %v3684
  %3740 = vmatprep.subr.bf16.mxu0 %v3689
  %3741 = vmatpush1.bf16.msra.mxu0 %v3688
  %3742 = vmatprep.subr.bf16.mxu0 %v3693
  %3743 = vmatpush1.bf16.msra.mxu0 %v3692
  %3744 = vmatprep.subr.bf16.mxu0 %v3697
  %3745 = vmatpush1.bf16.msra.mxu0 %v3696
  %3746 = vmatprep.subr.bf16.mxu0 %v3701
  %3747 = vmatpush1.bf16.msra.mxu0 %v3700
  %3748 = vmatprep.subr.bf16.mxu0 %v3705
  %3749 = vmatpush1.bf16.msra.mxu0 %v3704
  %3750 = vmatprep.subr.bf16.mxu0 %v3709
  %3751 = vmatpush1.bf16.msra.mxu0 %v3708
  %3752 = vmatprep.subr.bf16.mxu0 %v3713
  %3753 = vmatpush1.bf16.msra.mxu0 %v3712
  %3754 = vmatprep.subr.bf16.mxu0 0
  %3755 = vmatpush1.bf16.msra.mxu0 0
  %3756 = vmatprep.subr.bf16.mxu0 0
  %3757 = vmatpush1.bf16.msra.mxu0 0
  %3758 = vmatprep.subr.bf16.mxu0 0
  %3759 = vmatpush1.bf16.msra.mxu0 0
  %3760 = vmatprep.subr.bf16.mxu0 0
  %3761 = vmatpush1.bf16.msra.mxu0 0
  %3762 = vmatprep.subr.bf16.mxu0 0
  %3763 = vmatpush1.bf16.msra.mxu0 0
  %3764 = vmatprep.subr.bf16.mxu0 0
  %3765 = vmatpush1.bf16.msra.mxu0 0
  %3766 = vmatprep.subr.bf16.mxu0 0
  %3767 = vmatpush1.bf16.msra.mxu0 0
  %3768 = vmatprep.subr.bf16.mxu0 0
  %3769 = vmatpush1.bf16.msra.mxu0 0
  %3770 = vmatprep.mubr.bf16.mxu0 0
  %3771 = vmatmul.mubr.bf16.gmra.mrb[0].mxu0 %v99
  %v3772 = vpop.f32.mrb[0].mxu0
  %v3773 = vadd.f32 %v3721, %v3772
  %v3774 = vpop.f32.mrb[0].mxu0
  %v3775 = vadd.f32 %v3725, %v3774
  %v3776 = vpop.f32.mrb[0].mxu0
  %v3777 = vadd.f32 %v3721, %v3776
  %v3778 = vpop.f32.mrb[0].mxu0
  %v3779 = vadd.f32 %v3725, %v3778
  %3780 = vmatprep.mubr.bf16.mxu0 0
  %3781 = vmatmul.mubr.bf16.gmra.mrb[0].mxu0 %v100
  %v3782 = vpop.f32.mrb[0].mxu0
  %v3783 = vadd.f32 %v3721, %v3782
  %v3784 = vpop.f32.mrb[0].mxu0
  %v3785 = vadd.f32 %v3725, %v3784
  %v3786 = vpop.f32.mrb[0].mxu0
  %v3787 = vadd.f32 %v3721, %v3786
  %v3788 = vpop.f32.mrb[0].mxu0
  %v3789 = vadd.f32 %v3725, %v3788
  %3790 = vmatprep.mubr.bf16.mxu0 0
  %3791 = vmatmul.mubr.bf16.gmra.mrb[0].mxu0 %v101
  %v3792 = vpop.f32.mrb[0].mxu0
  %v3793 = vadd.f32 %v3721, %v3792
  %v3794 = vpop.f32.mrb[0].mxu0
  %v3795 = vadd.f32 %v3725, %v3794
  %v3796 = vpop.f32.mrb[0].mxu0
  %v3797 = vadd.f32 %v3721, %v3796
  %v3798 = vpop.f32.mrb[0].mxu0
  %v3799 = vadd.f32 %v3725, %v3798
  %3800 = vmatprep.mubr.bf16.mxu0 0
  %3801 = vmatmul.mubr.bf16.gmra.mrb[0].mxu0 %v102
  %v3802 = vpop.f32.mrb[0].mxu0
  %v3803 = vadd.f32 %v3721, %v3802
  %v3804 = vpop.f32.mrb[0].mxu0
  %v3805 = vadd.f32 %v3725, %v3804
  %v3806 = vpop.f32.mrb[0].mxu0
  %v3807 = vadd.f32 %v3721, %v3806
  %v3808 = vpop.f32.mrb[0].mxu0
  %v3809 = vadd.f32 %v3725, %v3808
  %3810 = vmatprep.mubr.bf16.mxu0 0
  %3811 = vmatmul.mubr.bf16.gmra.mrb[0].mxu0 %v103
  %v3812 = vpop.f32.mrb[0].mxu0
  %v3813 = vadd.f32 %v3721, %v3812
  %v3814 = vpop.f32.mrb[0].mxu0
  %v3815 = vadd.f32 %v3725, %v3814
  %v3816 = vpop.f32.mrb[0].mxu0
  %v3817 = vadd.f32 %v3721, %v3816
  %v3818 = vpop.f32.mrb[0].mxu0
  %v3819 = vadd.f32 %v3725, %v3818
  %3820 = vmatprep.mubr.bf16.mxu0 0
  %3821 = vmatmul.mubr.bf16.gmra.mrb[0].mxu0 %v104
  %v3822 = vpop.f32.mrb[0].mxu0
  %v3823 = vadd.f32 %v3721, %v3822
  %v3824 = vpop.f32.mrb[0].mxu0
  %v3825 = vadd.f32 %v3725, %v3824
  %v3826 = vpop.f32.mrb[0].mxu0
  %v3827 = vadd.f32 %v3721, %v3826
  %v3828 = vpop.f32.mrb[0].mxu0
  %v3829 = vadd.f32 %v3725, %v3828
  %3830 = vmatprep.mubr.bf16.mxu0 0
  %3831 = vmatmul.mubr.bf16.gmra.mrb[0].mxu0 %v105
  %v3832 = vpop.f32.mrb[0].mxu0
  %v3833 = vadd.f32 %v3721, %v3832
  %v3834 = vpop.f32.mrb[0].mxu0
  %v3835 = vadd.f32 %v3725, %v3834
  %v3836 = vpop.f32.mrb[0].mxu0
  %v3837 = vadd.f32 %v3721, %v3836
  %v3838 = vpop.f32.mrb[0].mxu0
  %v3839 = vadd.f32 %v3725, %v3838
  %3840 = vmatprep.mubr.bf16.mxu0 0
  %3841 = vmatmul.mubr.bf16.gmra.mrb[0].mxu0 %v106
  %v3842 = vpop.f32.mrb[0].mxu0
  %v3843 = vadd.f32 %v3721, %v3842
  %v3844 = vpop.f32.mrb[0].mxu0
  %v3845 = vadd.f32 %v3725, %v3844
  %v3846 = vpop.f32.mrb[0].mxu0
  %v3847 = vadd.f32 %v3721, %v3846
  %v3848 = vpop.f32.mrb[0].mxu0
  %v3849 = vadd.f32 %v3725, %v3848
  %3850 = vdwg.mxu0
  %3851 = vmatprep.subr.bf16.mxu0 %v3687
  %3852 = vmatpush1.bf16.msra.mxu0 %v3686
  %3853 = vmatprep.subr.bf16.mxu0 %v3691
  %3854 = vmatpush1.bf16.msra.mxu0 %v3690
  %3855 = vmatprep.subr.bf16.mxu0 %v3695
  %3856 = vmatpush1.bf16.msra.mxu0 %v3694
  %3857 = vmatprep.subr.bf16.mxu0 %v3699
  %3858 = vmatpush1.bf16.msra.mxu0 %v3698
  %3859 = vmatprep.subr.bf16.mxu0 %v3703
  %3860 = vmatpush1.bf16.msra.mxu0 %v3702
  %3861 = vmatprep.subr.bf16.mxu0 %v3707
  %3862 = vmatpush1.bf16.msra.mxu0 %v3706
  %3863 = vmatprep.subr.bf16.mxu0 %v3711
  %3864 = vmatpush1.bf16.msra.mxu0 %v3710
  %3865 = vmatprep.subr.bf16.mxu0 %v3715
  %3866 = vmatpush1.bf16.msra.mxu0 %v3714
  %3867 = vmatprep.subr.bf16.mxu0 0
  %3868 = vmatpush1.bf16.msra.mxu0 0
  %3869 = vmatprep.subr.bf16.mxu0 0
  %3870 = vmatpush1.bf16.msra.mxu0 0
  %3871 = vmatprep.subr.bf16.mxu0 0
  %3872 = vmatpush1.bf16.msra.mxu0 0
  %3873 = vmatprep.subr.bf16.mxu0 0
  %3874 = vmatpush1.bf16.msra.mxu0 0
  %3875 = vmatprep.subr.bf16.mxu0 0
  %3876 = vmatpush1.bf16.msra.mxu0 0
  %3877 = vmatprep.subr.bf16.mxu0 0
  %3878 = vmatpush1.bf16.msra.mxu0 0
  %3879 = vmatprep.subr.bf16.mxu0 0
  %3880 = vmatpush1.bf16.msra.mxu0 0
  %3881 = vmatprep.subr.bf16.mxu0 0
  %3882 = vmatpush1.bf16.msra.mxu0 0
  %3883 = vmatprep.mubr.bf16.mxu0 0
  %3884 = vmatmul.mubr.bf16.gmra.mrb[0].mxu0 %v99
  %v3885 = vpop.f32.mrb[0].mxu0
  %v3886 = vadd.f32 %v3729, %v3885
  %v3887 = vpop.f32.mrb[0].mxu0
  %v3888 = vadd.f32 %v3733, %v3887
  %v3889 = vpop.f32.mrb[0].mxu0
  %v3890 = vadd.f32 %v3729, %v3889
  %v3891 = vpop.f32.mrb[0].mxu0
  %v3892 = vadd.f32 %v3733, %v3891
  %3893 = vmatprep.mubr.bf16.mxu0 0
  %3894 = vmatmul.mubr.bf16.gmra.mrb[0].mxu0 %v100
  %v3895 = vpop.f32.mrb[0].mxu0
  %v3896 = vadd.f32 %v3729, %v3895
  %v3897 = vpop.f32.mrb[0].mxu0
  %v3898 = vadd.f32 %v3733, %v3897
  %v3899 = vpop.f32.mrb[0].mxu0
  %v3900 = vadd.f32 %v3729, %v3899
  %v3901 = vpop.f32.mrb[0].mxu0
  %v3902 = vadd.f32 %v3733, %v3901
  %3903 = vmatprep.mubr.bf16.mxu0 0
  %3904 = vmatmul.mubr.bf16.gmra.mrb[0].mxu0 %v101
  %v3905 = vpop.f32.mrb[0].mxu0
  %v3906 = vadd.f32 %v3729, %v3905
  %v3907 = vpop.f32.mrb[0].mxu0
  %v3908 = vadd.f32 %v3733, %v3907
  %v3909 = vpop.f32.mrb[0].mxu0
  %v3910 = vadd.f32 %v3729, %v3909
  %v3911 = vpop.f32.mrb[0].mxu0
  %v3912 = vadd.f32 %v3733, %v3911
  %3913 = vmatprep.mubr.bf16.mxu0 0
  %3914 = vmatmul.mubr.bf16.gmra.mrb[0].mxu0 %v102
  %v3915 = vpop.f32.mrb[0].mxu0
  %v3916 = vadd.f32 %v3729, %v3915
  %v3917 = vpop.f32.mrb[0].mxu0
  %v3918 = vadd.f32 %v3733, %v3917
  %v3919 = vpop.f32.mrb[0].mxu0
  %v3920 = vadd.f32 %v3729, %v3919
  %v3921 = vpop.f32.mrb[0].mxu0
  %v3922 = vadd.f32 %v3733, %v3921
  %3923 = vmatprep.mubr.bf16.mxu0 0
  %3924 = vmatmul.mubr.bf16.gmra.mrb[0].mxu0 %v103
  %v3925 = vpop.f32.mrb[0].mxu0
  %v3926 = vadd.f32 %v3729, %v3925
  %v3927 = vpop.f32.mrb[0].mxu0
  %v3928 = vadd.f32 %v3733, %v3927
  %v3929 = vpop.f32.mrb[0].mxu0
  %v3930 = vadd.f32 %v3729, %v3929
  %v3931 = vpop.f32.mrb[0].mxu0
  %v3932 = vadd.f32 %v3733, %v3931
  %3933 = vmatprep.mubr.bf16.mxu0 0
  %3934 = vmatmul.mubr.bf16.gmra.mrb[0].mxu0 %v104
  %v3935 = vpop.f32.mrb[0].mxu0
  %v3936 = vadd.f32 %v3729, %v3935
  %v3937 = vpop.f32.mrb[0].mxu0
  %v3938 = vadd.f32 %v3733, %v3937
  %v3939 = vpop.f32.mrb[0].mxu0
  %v3940 = vadd.f32 %v3729, %v3939
  %v3941 = vpop.f32.mrb[0].mxu0
  %v3942 = vadd.f32 %v3733, %v3941
  %3943 = vmatprep.mubr.bf16.mxu0 0
  %3944 = vmatmul.mubr.bf16.gmra.mrb[0].mxu0 %v105
  %v3945 = vpop.f32.mrb[0].mxu0
  %v3946 = vadd.f32 %v3729, %v3945
  %v3947 = vpop.f32.mrb[0].mxu0
  %v3948 = vadd.f32 %v3733, %v3947
  %v3949 = vpop.f32.mrb[0].mxu0
  %v3950 = vadd.f32 %v3729, %v3949
  %v3951 = vpop.f32.mrb[0].mxu0
  %v3952 = vadd.f32 %v3733, %v3951
  %3953 = vmatprep.mubr.bf16.mxu0 0
  %3954 = vmatmul.mubr.bf16.gmra.mrb[0].mxu0 %v106
  %v3955 = vpop.f32.mrb[0].mxu0
  %v3956 = vadd.f32 %v3729, %v3955
  %v3957 = vpop.f32.mrb[0].mxu0
  %v3958 = vadd.f32 %v3733, %v3957
  %v3959 = vpop.f32.mrb[0].mxu0
  %v3960 = vadd.f32 %v3729, %v3959
  %v3961 = vpop.f32.mrb[0].mxu0
  %v3962 = vadd.f32 %v3733, %v3961
  %3963 = vdwg.mxu0
  %v3964 = vmax.f32 %v3773, 0.0
  %v3965 = vmax.f32 %v3775, 0.0
  %v3966 = vmax.f32 %v3886, 0.0
  %v3967 = vmax.f32 %v3888, 0.0
  %v3968 = vmax.f32 %v3777, 0.0
  %v3969 = vmax.f32 %v3779, 0.0
  %v3970 = vmax.f32 %v3890, 0.0
  %v3971 = vmax.f32 %v3892, 0.0
  %v3972 = vmax.f32 %v3783, 0.0
  %v3973 = vmax.f32 %v3785, 0.0
  %v3974 = vmax.f32 %v3896, 0.0
  %v3975 = vmax.f32 %v3898, 0.0
  %v3976 = vmax.f32 %v3787, 0.0
  %v3977 = vmax.f32 %v3789, 0.0
  %v3978 = vmax.f32 %v3900, 0.0
  %v3979 = vmax.f32 %v3902, 0.0
  %v3980 = vmax.f32 %v3793, 0.0
  %v3981 = vmax.f32 %v3795, 0.0
  %v3982 = vmax.f32 %v3906, 0.0
  %v3983 = vmax.f32 %v3908, 0.0
  %v3984 = vmax.f32 %v3797, 0.0
  %v3985 = vmax.f32 %v3799, 0.0
  %v3986 = vmax.f32 %v3910, 0.0
  %v3987 = vmax.f32 %v3912, 0.0
  %v3988 = vmax.f32 %v3803, 0.0
  %v3989 = vmax.f32 %v3805, 0.0
  %v3990 = vmax.f32 %v3916, 0.0
  %v3991 = vmax.f32 %v3918, 0.0
  %v3992 = vmax.f32 %v3807, 0.0
  %v3993 = vmax.f32 %v3809, 0.0
  %v3994 = vmax.f32 %v3920, 0.0
  %v3995 = vmax.f32 %v3922, 0.0
  %v3996 = vmax.f32 %v3813, 0.0
  %v3997 = vmax.f32 %v3815, 0.0
  %v3998 = vmax.f32 %v3926, 0.0
  %v3999 = vmax.f32 %v3928, 0.0
  %v4000 = vmax.f32 %v3817, 0.0
  %v4001 = vmax.f32 %v3819, 0.0
  %v4002 = vmax.f32 %v3930, 0.0
  %v4003 = vmax.f32 %v3932, 0.0
  %v4004 = vmax.f32 %v3823, 0.0
  %v4005 = vmax.f32 %v3825, 0.0
  %v4006 = vmax.f32 %v3936, 0.0
  %v4007 = vmax.f32 %v3938, 0.0
  %v4008 = vmax.f32 %v3827, 0.0
  %v4009 = vmax.f32 %v3829, 0.0
  %v4010 = vmax.f32 %v3940, 0.0
  %v4011 = vmax.f32 %v3942, 0.0
  %v4012 = vmax.f32 %v3833, 0.0
  %v4013 = vmax.f32 %v3835, 0.0
  %v4014 = vmax.f32 %v3946, 0.0
  %v4015 = vmax.f32 %v3948, 0.0
  %v4016 = vmax.f32 %v3837, 0.0
  %v4017 = vmax.f32 %v3839, 0.0
  %v4018 = vmax.f32 %v3950, 0.0
  %v4019 = vmax.f32 %v3952, 0.0
  %v4020 = vmax.f32 %v3843, 0.0
  %v4021 = vmax.f32 %v3845, 0.0
  %v4022 = vmax.f32 %v3956, 0.0
  %v4023 = vmax.f32 %v3958, 0.0
  %v4024 = vmax.f32 %v3847, 0.0
  %v4025 = vmax.f32 %v3849, 0.0
  %v4026 = vmax.f32 %v3960, 0.0
  %v4027 = vmax.f32 %v3962, 0.0
  %v4028 = vld [vmem:[%s8] sm:$0xff]
  %4029 = vmatprep.subr.mxu0 %v3965
  %4030 = vmatpush1.msra.mxu0 %v3964
  %4031 = vmatprep.subr.mxu0 %v3969
  %4032 = vmatpush1.msra.mxu0 %v3968
  %4033 = vmatprep.subr.mxu0 %v3973
  %4034 = vmatpush1.msra.mxu0 %v3972
  %4035 = vmatprep.subr.mxu0 %v3977
  %4036 = vmatpush1.msra.mxu0 %v3976
  %4037 = vmatprep.subr.mxu0 %v3981
  %4038 = vmatpush1.msra.mxu0 %v3980
  %4039 = vmatprep.subr.mxu0 %v3985
  %4040 = vmatpush1.msra.mxu0 %v3984
  %4041 = vmatprep.subr.mxu0 %v3989
  %4042 = vmatpush1.msra.mxu0 %v3988
  %4043 = vmatprep.subr.mxu0 %v3993
  %4044 = vmatpush1.msra.mxu0 %v3992
  %4045 = vmatprep.subr.mxu0 %v3997
  %4046 = vmatpush1.msra.mxu0 %v3996
  %4047 = vmatprep.subr.mxu0 %v4001
  %4048 = vmatpush1.msra.mxu0 %v4000
  %4049 = vmatprep.subr.mxu0 %v4005
  %4050 = vmatpush1.msra.mxu0 %v4004
  %4051 = vmatprep.subr.mxu0 %v4009
  %4052 = vmatpush1.msra.mxu0 %v4008
  %4053 = vmatprep.subr.mxu0 %v4013
  %4054 = vmatpush1.msra.mxu0 %v4012
  %4055 = vmatprep.subr.mxu0 %v4017
  %4056 = vmatpush1.msra.mxu0 %v4016
  %4057 = vmatprep.subr.mxu0 %v4021
  %4058 = vmatpush1.msra.mxu0 %v4020
  %4059 = vmatprep.subr.mxu0 %v4025
  %4060 = vmatpush1.msra.mxu0 %v4024
  %4061 = vmatprep.subr.mxu0 0.0
  %4062 = vmatpush1.msra.mxu0 0.0
  %4063 = vmatprep.subr.mxu0 0.0
  %4064 = vmatpush1.msra.mxu0 0.0
  %4065 = vmatprep.subr.mxu0 0.0
  %4066 = vmatpush1.msra.mxu0 0.0
  %4067 = vmatprep.subr.mxu0 0.0
  %4068 = vmatpush1.msra.mxu0 0.0
  %4069 = vmatprep.subr.mxu0 0.0
  %4070 = vmatpush1.msra.mxu0 0.0
  %4071 = vmatprep.subr.mxu0 0.0
  %4072 = vmatpush1.msra.mxu0 0.0
  %4073 = vmatprep.subr.mxu0 0.0
  %4074 = vmatpush1.msra.mxu0 0.0
  %4075 = vmatprep.subr.mxu0 0.0
  %4076 = vmatpush1.msra.mxu0 0.0
  %4077 = vmatprep.subr.mxu0 0.0
  %4078 = vmatpush1.msra.mxu0 0.0
  %4079 = vmatprep.subr.mxu0 0.0
  %4080 = vmatpush1.msra.mxu0 0.0
  %4081 = vmatprep.subr.mxu0 0.0
  %4082 = vmatpush1.msra.mxu0 0.0
  %4083 = vmatprep.subr.mxu0 0.0
  %4084 = vmatpush1.msra.mxu0 0.0
  %4085 = vmatprep.subr.mxu0 0.0
  %4086 = vmatpush1.msra.mxu0 0.0
  %4087 = vmatprep.subr.mxu0 0.0
  %4088 = vmatpush1.msra.mxu0 0.0
  %4089 = vmatprep.subr.mxu0 0.0
  %4090 = vmatpush1.msra.mxu0 0.0
  %4091 = vmatprep.subr.mxu0 0.0
  %4092 = vmatpush1.msra.mxu0 0.0
  %4093 = vmatprep.mubr.f32.mxu0 0.0
  %4094 = vmatmul.mubr.f32.gmra.mrb[0].mxu0 %v4028
  %v4095 = vpop.f32.mrb[0].mxu0
  %v4096 = vadd.f32 0.0, %v4095
  %v4097 = vpop.f32.mrb[0].mxu0
  %v4098 = vadd.f32 0.0, %v4097
  %4099 = vdwg.mxu0
  %4100 = vmatprep.subr.mxu0 %v3967
  %4101 = vmatpush1.msra.mxu0 %v3966
  %4102 = vmatprep.subr.mxu0 %v3971
  %4103 = vmatpush1.msra.mxu0 %v3970
  %4104 = vmatprep.subr.mxu0 %v3975
  %4105 = vmatpush1.msra.mxu0 %v3974
  %4106 = vmatprep.subr.mxu0 %v3979
  %4107 = vmatpush1.msra.mxu0 %v3978
  %4108 = vmatprep.subr.mxu0 %v3983
  %4109 = vmatpush1.msra.mxu0 %v3982
  %4110 = vmatprep.subr.mxu0 %v3987
  %4111 = vmatpush1.msra.mxu0 %v3986
  %4112 = vmatprep.subr.mxu0 %v3991
  %4113 = vmatpush1.msra.mxu0 %v3990
  %4114 = vmatprep.subr.mxu0 %v3995
  %4115 = vmatpush1.msra.mxu0 %v3994
  %4116 = vmatprep.subr.mxu0 %v3999
  %4117 = vmatpush1.msra.mxu0 %v3998
  %4118 = vmatprep.subr.mxu0 %v4003
  %4119 = vmatpush1.msra.mxu0 %v4002
  %4120 = vmatprep.subr.mxu0 %v4007
  %4121 = vmatpush1.msra.mxu0 %v4006
  %4122 = vmatprep.subr.mxu0 %v4011
  %4123 = vmatpush1.msra.mxu0 %v4010
  %4124 = vmatprep.subr.mxu0 %v4015
  %4125 = vmatpush1.msra.mxu0 %v4014
  %4126 = vmatprep.subr.mxu0 %v4019
  %4127 = vmatpush1.msra.mxu0 %v4018
  %4128 = vmatprep.subr.mxu0 %v4023
  %4129 = vmatpush1.msra.mxu0 %v4022
  %4130 = vmatprep.subr.mxu0 %v4027
  %4131 = vmatpush1.msra.mxu0 %v4026
  %4132 = vmatprep.subr.mxu0 0.0
  %4133 = vmatpush1.msra.mxu0 0.0
  %4134 = vmatprep.subr.mxu0 0.0
  %4135 = vmatpush1.msra.mxu0 0.0
  %4136 = vmatprep.subr.mxu0 0.0
  %4137 = vmatpush1.msra.mxu0 0.0
  %4138 = vmatprep.subr.mxu0 0.0
  %4139 = vmatpush1.msra.mxu0 0.0
  %4140 = vmatprep.subr.mxu0 0.0
  %4141 = vmatpush1.msra.mxu0 0.0
  %4142 = vmatprep.subr.mxu0 0.0
  %4143 = vmatpush1.msra.mxu0 0.0
  %4144 = vmatprep.subr.mxu0 0.0
  %4145 = vmatpush1.msra.mxu0 0.0
  %4146 = vmatprep.subr.mxu0 0.0
  %4147 = vmatpush1.msra.mxu0 0.0
  %4148 = vmatprep.subr.mxu0 0.0
  %4149 = vmatpush1.msra.mxu0 0.0
  %4150 = vmatprep.subr.mxu0 0.0
  %4151 = vmatpush1.msra.mxu0 0.0
  %4152 = vmatprep.subr.mxu0 0.0
  %4153 = vmatpush1.msra.mxu0 0.0
  %4154 = vmatprep.subr.mxu0 0.0
  %4155 = vmatpush1.msra.mxu0 0.0
  %4156 = vmatprep.subr.mxu0 0.0
  %4157 = vmatpush1.msra.mxu0 0.0
  %4158 = vmatprep.subr.mxu0 0.0
  %4159 = vmatpush1.msra.mxu0 0.0
  %4160 = vmatprep.subr.mxu0 0.0
  %4161 = vmatpush1.msra.mxu0 0.0
  %4162 = vmatprep.subr.mxu0 0.0
  %4163 = vmatpush1.msra.mxu0 0.0
  %4164 = vmatprep.mubr.f32.mxu0 0.0
  %4165 = vmatmul.mubr.f32.gmra.mrb[0].mxu0 %v4028
  %v4166 = vpop.f32.mrb[0].mxu0
  %v4167 = vadd.f32 0.0, %v4166
  %v4168 = vpop.f32.mrb[0].mxu0
  %v4169 = vadd.f32 0.0, %v4168
  %4170 = vdwg.mxu0
  %4171 = vst [vmem:[%s10] sm:$0xff] %v4096
  %4172 = vst [vmem:[%s10 + $0x8] sm:$0xff] %v4098
  %4173 = vst [vmem:[%s10 + $0x10] sm:$0xff] %v4167
  %4174 = vst [vmem:[%s10 + $0x18] sm:$0xff] %v4169
  // Predicated region
  $region38: #{embedding_model_forward.1} parent=0 // pred_check
    _
  $region39: #{embedding_model_forward.1} parent=0 // pred_check_branch
    %4176 = sbr.rel (0) target = $region41
  $region40: #{embedding_model_forward.1} parent=0 // pred_region
    _
  $region41: #{embedding_model_forward.1} parent=0 // pred_fallthru
    _
  // Predicated region
  $region42: #{embedding_model_forward.1} parent=0 // pred_check
    _
  $region43: #{embedding_model_forward.1} parent=0 // pred_check_branch
    %4178 = sbr.rel (0) target = $region45
  $region44: #{embedding_model_forward.1} parent=0 // pred_region
    _
  $region45: #{embedding_model_forward.1} parent=0 // pred_fallthru
    _
  // Predicated region
  $region46: #{embedding_model_forward.1} parent=0 // pred_check
    _
  $region47: #{embedding_model_forward.1} parent=0 // pred_check_branch
    %4180 = sbr.rel (0) target = $region49
  $region48: #{embedding_model_forward.1} parent=0 // pred_region
    _
  $region49: #{embedding_model_forward.1} parent=0 // pred_fallthru
    _
  // Predicated region
  $region50: #{embedding_model_forward.1} parent=0 // pred_check
    _
  $region51: #{embedding_model_forward.1} parent=0 // pred_check_branch
    %4182 = sbr.rel (0) target = $region53
  $region52: #{embedding_model_forward.1} parent=0 // pred_region
    _
  $region53: #{embedding_model_forward.1} parent=0 // pred_fallthru
    _

</llo_original>
